<compile_context>
chip_gen: v6e
topology: v6e:2x2x1
jax: 0.10.0
libtpu: 0.0.40
codegen_flags: <defaults>
</compile_context>

<pallas_src>
import jax
import jax.numpy as jnp
from jax.experimental import pallas as pl
from jax.experimental.pallas import tpu as pltpu

H1, H2, H3 = 512, 256, 1
LEAKY_SLOPE = 0.2


# ----------------------------- hardware helpers -----------------------------

def _batch_axis_semantics():
    """CORE_PARALLEL on v7x (2 TensorCores/chip); PARALLEL elsewhere."""
    try:
        kind = jax.devices()[0].device_kind.lower()
    except Exception:
        kind = ""
    return pltpu.CORE_PARALLEL if "v7" in kind else pltpu.PARALLEL


def _vmem_capacity_bytes():
    try:
        return int(pltpu.get_tpu_info().vmem_capacity_bytes)
    except Exception:
        return 64 << 20  # conservative (v7x per-core VMEM)


# --------------------------------- kernels ----------------------------------

def _disc_kernel(x_ref, w1_ref, b1_ref, w2_ref, b2_ref, w3_ref, b3_ref, o_ref):
    """Fused MLP forward for one (tb, D) batch tile, resident weights.

    x_ref : (tb, D)    f32 input tile (cast to bf16 in-kernel)
    w1_ref: (D, 512)   bf16     b1_ref: (1, 512) f32
    w2_ref: (512, 256) bf16     b2_ref: (1, 256) f32
    w3_ref: (1, 256)   f32      b3_ref: (1, 1)   f32
    o_ref : (1, tb)    f32 sigmoid output (lane-dense row)
    """
    # Layer 1: Linear + LeakyReLU(0.2)  (bf16 MXU, f32 accumulate)
    x = x_ref[...].astype(jnp.bfloat16)          # in-kernel cast, hides under DMA
    h1 = jnp.dot(x, w1_ref[...], preferred_element_type=jnp.float32) + b1_ref[...]
    h1 = jnp.where(h1 > 0, h1, LEAKY_SLOPE * h1)

    # Layer 2: Linear + LeakyReLU(0.2)
    h2 = jnp.dot(h1.astype(jnp.bfloat16), w2_ref[...],
                 preferred_element_type=jnp.float32) + b2_ref[...]
    h2 = jnp.where(h2 > 0, h2, LEAKY_SLOPE * h2)

    # Layer 3 (256 -> 1) produced directly in lane-dense (1, tb) orientation:
    #   z[0, j] = sum_c w3[0, c] * h2[j, c]
    z = jax.lax.dot_general(w3_ref[...], h2, (((1,), (1,)), ((), ())),
                            preferred_element_type=jnp.float32) + b3_ref[...]
    o_ref[...] = (1.0 / (1.0 + jnp.exp(-z))).astype(o_ref.dtype)   # exact sigmoid


def _disc_kernel_ktiled(x_ref, w1_ref, b1_ref, w2_ref, b2_ref, w3_ref, b3_ref,
                        o_ref, h1_acc):
    """K-tiled variant for large input_dim: layer-1 accumulated over grid axis 1.

    x_ref : (tb, tk) f32, w1_ref: (tk, 512) bf16, h1_acc: (tb, 512) f32 scratch.
    Layers 2/3 + sigmoid run only on the last K step.
    """
    k = pl.program_id(1)

    @pl.when(k == 0)
    def _():
        h1_acc[...] = jnp.zeros_like(h1_acc)

    x = x_ref[...].astype(jnp.bfloat16)
    h1_acc[...] += jnp.dot(x, w1_ref[...], preferred_element_type=jnp.float32)

    @pl.when(k == pl.num_programs(1) - 1)
    def _():
        h1 = h1_acc[...] + b1_ref[...]
        h1 = jnp.where(h1 > 0, h1, LEAKY_SLOPE * h1)
        h2 = jnp.dot(h1.astype(jnp.bfloat16), w2_ref[...],
                     preferred_element_type=jnp.float32) + b2_ref[...]
        h2 = jnp.where(h2 > 0, h2, LEAKY_SLOPE * h2)
        z = jax.lax.dot_general(w3_ref[...], h2, (((1,), (1,)), ((), ())),
                                preferred_element_type=jnp.float32) + b3_ref[...]
        o_ref[...] = (1.0 / (1.0 + jnp.exp(-z))).astype(o_ref.dtype)


# --------------------------------- wrapper -----------------------------------

def prepare_params(params):
    """One-time parameter prep: bf16 weights for the MXU, f32 biases / last layer.

    Call this ONCE (outside the training/eval step) so each forward streams the
    bf16 weights directly with no per-call convert pass over HBM.
    """
    return {
        "w1": params["w1"].astype(jnp.bfloat16),            # (D, 512)
        "b1": params["b1"].astype(jnp.float32).reshape(1, H1),
        "w2": params["w2"].astype(jnp.bfloat16),            # (512, 256)
        "b2": params["b2"].astype(jnp.float32).reshape(1, H2),
        "w3": params["w3"].astype(jnp.float32).reshape(1, H2),
        "b3": params["b3"].astype(jnp.float32).reshape(1, 1),
    }


def discriminator_forward(x, params, *, tb=None, tk=None):
    """x: (B, D) float32.  params: output of prepare_params (raw f32 also accepted)."""
    B, D = x.shape

    # Weights: expect pre-cast bf16 (prepare_params); cast only if caller didn't.
    w1 = params["w1"]
    w1 = w1 if w1.dtype == jnp.bfloat16 else w1.astype(jnp.bfloat16)
    w2 = params["w2"]
    w2 = w2 if w2.dtype == jnp.bfloat16 else w2.astype(jnp.bfloat16)
    b1 = jnp.asarray(params["b1"], jnp.float32).reshape(1, H1)
    b2 = jnp.asarray(params["b2"], jnp.float32).reshape(1, H2)
    w3 = jnp.asarray(params["w3"], jnp.float32).reshape(1, H2)
    b3 = jnp.asarray(params["b3"], jnp.float32).reshape(1, 1)

    # Batch tile: large to amortize per-step overhead / grow DMA sizes.
    if tb is None:
        for cand in (512, 256, 128):
            if B % cand == 0:
                tb = cand
                break
        else:
            tb = B
    assert B % tb == 0, f"batch {B} must be divisible by tile {tb}"
    assert tb == B or tb % 16 == 0, "tb must be a multiple of 16 (bf16 sublane packing)"

    vmem_cap = _vmem_capacity_bytes()
    hard_cap = max(vmem_cap - (16 << 20), 32 << 20)
    batch_sem = _batch_axis_semantics()

    # Decide whether layer-1 needs K-tiling (resident bf16 w1 too big for VMEM).
    if tk is None and (D * H1 * 2) > vmem_cap // 3 and D % 128 == 0:
        for cand in (4096, 2048, 1024, 512, 256, 128):
            if D % cand == 0:
                tk = cand
                break
    if tk is not None and tk >= D:
        tk = None
    # TODO(synk): if D is both huge and not a multiple of 128, pad D on the host
    # before calling; the resident path below would otherwise exceed VMEM.

    resident = dict(pipeline_mode=pl.Buffered(1))  # constant index_map -> 1 buffer

    if tk is None:
        # ----- resident-w1 path -----
        est = (2 * tb * D * 4                # x tiles (f32, double-buffered)
               + D * H1 * 2 + H1 * 4         # w1 (bf16) + b1
               + H1 * H2 * 2 + H2 * 4        # w2 + b2
               + H2 * 4 + 128                # w3 row + b3
               + 2 * tb * 4                  # out row tiles (double-buffered)
               + tb * (H1 + H2) * 4)         # h1 / h2 live intermediates
        vmem_limit = int(min(max(2 * est, 16 << 20), hard_cap))

        out = pl.pallas_call(
            _disc_kernel,
            out_shape=jax.ShapeDtypeStruct((1, B), jnp.float32),
            grid_spec=pltpu.PrefetchScalarGridSpec(
                num_scalar_prefetch=0,
                grid=(B // tb,),
                in_specs=[
                    pl.BlockSpec((tb, D), lambda i: (i, 0)),                 # x tile
                    pl.BlockSpec((D, H1), lambda i: (0, 0), **resident),     # w1
                    pl.BlockSpec((1, H1), lambda i: (0, 0), **resident),     # b1
                    pl.BlockSpec((H1, H2), lambda i: (0, 0), **resident),    # w2
                    pl.BlockSpec((1, H2), lambda i: (0, 0), **resident),     # b2
                    pl.BlockSpec((1, H2), lambda i: (0, 0), **resident),     # w3 row
                    pl.BlockSpec((1, 1), lambda i: (0, 0), **resident),      # b3
                ],
                out_specs=pl.BlockSpec((1, tb), lambda i: (0, i)),           # lane-dense
            ),
            compiler_params=pltpu.CompilerParams(
                dimension_semantics=(batch_sem,),
                vmem_limit_bytes=vmem_limit,
            ),
        )(x, w1, b1, w2, b2, w3, b3)
    else:
        # ----- K-tiled layer-1 path (large input_dim / v7x 64 MiB VMEM) -----
        assert D % tk == 0 and tk % 128 == 0, "tk must divide D and be a multiple of 128"
        est = (2 * tb * tk * 4               # x tiles (f32, double-buffered)
               + 2 * tk * H1 * 2             # w1 K-tiles (bf16, double-buffered)
               + H1 * 4 + H1 * H2 * 2 + H2 * 4 + H2 * 4 + 128
               + tb * H1 * 4                 # h1 accumulator scratch
               + 2 * tb * 4                  # out row tiles
               + tb * H2 * 4)                # h2 intermediate
        vmem_limit = int(min(max(2 * est, 16 << 20), hard_cap))

        out = pl.pallas_call(
            _disc_kernel_ktiled,
            out_shape=jax.ShapeDtypeStruct((1, B), jnp.float32),
            grid_spec=pltpu.PrefetchScalarGridSpec(
                num_scalar_prefetch=0,
                grid=(B // tb, D // tk),
                in_specs=[
                    pl.BlockSpec((tb, tk), lambda i, k: (i, k)),               # x tile
                    pl.BlockSpec((tk, H1), lambda i, k: (k, 0)),               # w1 K-tile
                    pl.BlockSpec((1, H1), lambda i, k: (0, 0), **resident),    # b1
                    pl.BlockSpec((H1, H2), lambda i, k: (0, 0), **resident),   # w2
                    pl.BlockSpec((1, H2), lambda i, k: (0, 0), **resident),    # b2
                    pl.BlockSpec((1, H2), lambda i, k: (0, 0), **resident),    # w3 row
                    pl.BlockSpec((1, 1), lambda i, k: (0, 0), **resident),     # b3
                ],
                out_specs=pl.BlockSpec((1, tb), lambda i, k: (0, i)),
                scratch_shapes=[pltpu.VMEM((tb, H1), jnp.float32)],
            ),
            compiler_params=pltpu.CompilerParams(
                dimension_semantics=(batch_sem, pltpu.ARBITRARY),
                vmem_limit_bytes=vmem_limit,
            ),
        )(x, w1, b1, w2, b2, w3, b3)

    return out.reshape(B, H3)


# --------------------------- init & pure-JAX refs ----------------------------

def init_params(key, input_dim):
    """Deterministic parameter init (uniform, PyTorch-Linear-style bounds), f32."""
    ks = jax.random.split(key, 6)

    def lin(kw, kb, fan_in, fan_out):
        bound = 1.0 / jnp.sqrt(jnp.float32(fan_in))
        w = jax.random.uniform(kw, (fan_in, fan_out), jnp.float32, -bound, bound)
        b = jax.random.uniform(kb, (1, fan_out), jnp.float32, -bound, bound)
        return w, b

    w1, b1 = lin(ks[0], ks[1], input_dim, H1)
    w2, b2 = lin(ks[2], ks[3], H1, H2)
    w3, b3 = lin(ks[4], ks[5], H2, H3)
    return {"w1": w1, "b1": b1, "w2": w2, "b2": b2, "w3": w3, "b3": b3}


def reference_forward_f32(x, p):
    """Pure-JAX full-precision reference (module semantics)."""
    h1 = x @ p["w1"] + p["b1"]
    h1 = jnp.where(h1 > 0, h1, LEAKY_SLOPE * h1)
    h2 = h1 @ p["w2"] + p["b2"]
    h2 = jnp.where(h2 > 0, h2, LEAKY_SLOPE * h2)
    z = h2 @ p["w3"] + p["b3"]
    return jax.nn.sigmoid(z)


def reference_forward_bf16(x, p):
    """Pure-JAX reference mirroring the kernel's bf16/f32 precision choices."""
    h1 = jnp.dot(x.astype(jnp.bfloat16), p["w1"].astype(jnp.bfloat16),
                 preferred_element_type=jnp.float32) + p["b1"]
    h1 = jnp.where(h1 > 0, h1, LEAKY_SLOPE * h1)
    h2 = jnp.dot(h1.astype(jnp.bfloat16), p["w2"].astype(jnp.bfloat16),
                 preferred_element_type=jnp.float32) + p["b2"]
    h2 = jnp.where(h2 > 0, h2, LEAKY_SLOPE * h2)
    z = h2 @ p["w3"] + p["b3"]           # final layer stays f32 in the kernel
    return 1.0 / (1.0 + jnp.exp(-z))


# ----------------------------------- main ------------------------------------

if __name__ == "__main__":
    key = jax.random.PRNGKey(0)
    k_x1, k_p1, k_x2, k_p2 = jax.random.split(key, 4)

    # 1) Resident-weight path (small input_dim, tb auto -> 512, grid=(1,)).
    B1, D1 = 512, 64
    x1 = jax.random.normal(k_x1, (B1, D1), jnp.float32)
    p1 = init_params(k_p1, D1)
    out1 = jax.block_until_ready(discriminator_forward(x1, prepare_params(p1)))
    assert out1.shape == (B1, 1), out1.shape
    r1_bf = reference_forward_bf16(x1, p1)
    r1_f32 = reference_forward_f32(x1, p1)
    assert jnp.allclose(out1, r1_bf, atol=5e-3, rtol=0), (
        float(jnp.max(jnp.abs(out1 - r1_bf))))
    assert jnp.allclose(out1, r1_f32, atol=2e-2, rtol=0), (
        float(jnp.max(jnp.abs(out1 - r1_f32))))

    # 2) K-tiled layer-1 path (the large-input_dim / v7x scheme), exercised at a
    #    small shape by forcing tb=256, tk=128 -> grid=(2, 2).
    B2, D2 = 512, 256
    x2 = jax.random.normal(k_x2, (B2, D2), jnp.float32)
    p2 = init_params(k_p2, D2)
    out2 = jax.block_until_ready(
        discriminator_forward(x2, prepare_params(p2), tb=256, tk=128))
    assert out2.shape == (B2, 1), out2.shape
    r2_bf = reference_forward_bf16(x2, p2)
    r2_f32 = reference_forward_f32(x2, p2)
    assert jnp.allclose(out2, r2_bf, atol=5e-3, rtol=0), (
        float(jnp.max(jnp.abs(out2 - r2_bf))))
    assert jnp.allclose(out2, r2_f32, atol=2e-2, rtol=0), (
        float(jnp.max(jnp.abs(out2 - r2_f32))))

    print("KERNEL_OK")
</pallas_src>

<mosaic_0001>
module attributes {stable_mosaic.version = 11 : i64} {
  func.func @_disc_kernel(%arg0: i32, %arg1: memref<512x64xf32, #tpu.memory_space<vmem>>, %arg2: memref<64x512xbf16, #tpu.memory_space<vmem>>, %arg3: memref<1x512xf32, #tpu.memory_space<vmem>>, %arg4: memref<512x256xbf16, #tpu.memory_space<vmem>>, %arg5: memref<1x256xf32, #tpu.memory_space<vmem>>, %arg6: memref<1x256xf32, #tpu.memory_space<vmem>>, %arg7: memref<1x1xf32, #tpu.memory_space<vmem>>, %arg8: memref<1x512xf32, #tpu.memory_space<vmem>>) attributes {dimension_semantics = [#tpu.dimension_semantics<parallel>], iteration_bounds = array<i64: 1>, scalar_prefetch = 0 : i64, scratch_operands = 0 : i64, tpu.core_type = #tpu.core_type<tc>, window_params = [{transform_indices = @transform_0, window_bounds = array<i64: 512, 64>}, {pipeline_mode = #tpu.pipeline_mode<synchronous>, transform_indices = @transform_1, window_bounds = array<i64: 64, 512>}, {pipeline_mode = #tpu.pipeline_mode<synchronous>, transform_indices = @transform_2, window_bounds = array<i64: 1, 512>}, {pipeline_mode = #tpu.pipeline_mode<synchronous>, transform_indices = @transform_3, window_bounds = array<i64: 512, 256>}, {pipeline_mode = #tpu.pipeline_mode<synchronous>, transform_indices = @transform_4, window_bounds = array<i64: 1, 256>}, {pipeline_mode = #tpu.pipeline_mode<synchronous>, transform_indices = @transform_5, window_bounds = array<i64: 1, 256>}, {pipeline_mode = #tpu.pipeline_mode<synchronous>, transform_indices = @transform_6, window_bounds = array<i64: 1, 1>}, {transform_indices = @transform_7, window_bounds = array<i64: 1, 512>}]} {
    %c0 = arith.constant 0 : index
    %c0_0 = arith.constant 0 : index
    %0 = vector.load %arg1[%c0, %c0_0] : memref<512x64xf32, #tpu.memory_space<vmem>>, vector<512x64xf32>
    %1 = arith.truncf %0 : vector<512x64xf32> to vector<512x64xbf16>
    %c0_1 = arith.constant 0 : index
    %c0_2 = arith.constant 0 : index
    %2 = vector.load %arg2[%c0_1, %c0_2] : memref<64x512xbf16, #tpu.memory_space<vmem>>, vector<64x512xbf16>
    %cst = arith.constant dense<0.000000e+00> : vector<512x512xf32>
    %3 = tpu.matmul %1, %2, %cst {dimension_numbers = #tpu.dot_dimension_numbers<[1], [0], [0], [1], [0, 0, 1, 1], [], []>} : vector<512x64xbf16>, vector<64x512xbf16>, vector<512x512xf32> -> vector<512x512xf32>
    %c0_3 = arith.constant 0 : index
    %c0_4 = arith.constant 0 : index
    %4 = vector.load %arg3[%c0_3, %c0_4] : memref<1x512xf32, #tpu.memory_space<vmem>>, vector<1x512xf32>
    %5 = vector.broadcast %4 : vector<1x512xf32> to vector<512x512xf32>
    %6 = arith.addf %3, %5 : vector<512x512xf32>
    %cst_5 = arith.constant 0.000000e+00 : f32
    %7 = vector.broadcast %cst_5 : f32 to vector<512x512xf32>
    %8 = arith.cmpf ogt, %6, %7 : vector<512x512xf32>
    %cst_6 = arith.constant 2.000000e-01 : f32
    %9 = vector.broadcast %cst_6 : f32 to vector<512x512xf32>
    %10 = arith.mulf %9, %6 : vector<512x512xf32>
    %11 = arith.select %8, %6, %10 : vector<512x512xi1>, vector<512x512xf32>
    %12 = arith.truncf %11 : vector<512x512xf32> to vector<512x512xbf16>
    %c0_7 = arith.constant 0 : index
    %c0_8 = arith.constant 0 : index
    %13 = vector.load %arg4[%c0_7, %c0_8] : memref<512x256xbf16, #tpu.memory_space<vmem>>, vector<512x256xbf16>
    %cst_9 = arith.constant dense<0.000000e+00> : vector<512x256xf32>
    %14 = tpu.matmul %12, %13, %cst_9 {dimension_numbers = #tpu.dot_dimension_numbers<[1], [0], [0], [1], [0, 0, 1, 1], [], []>} : vector<512x512xbf16>, vector<512x256xbf16>, vector<512x256xf32> -> vector<512x256xf32>
    %c0_10 = arith.constant 0 : index
    %c0_11 = arith.constant 0 : index
    %15 = vector.load %arg5[%c0_10, %c0_11] : memref<1x256xf32, #tpu.memory_space<vmem>>, vector<1x256xf32>
    %16 = vector.broadcast %15 : vector<1x256xf32> to vector<512x256xf32>
    %17 = arith.addf %14, %16 : vector<512x256xf32>
    %cst_12 = arith.constant 0.000000e+00 : f32
    %18 = vector.broadcast %cst_12 : f32 to vector<512x256xf32>
    %19 = arith.cmpf ogt, %17, %18 : vector<512x256xf32>
    %cst_13 = arith.constant 2.000000e-01 : f32
    %20 = vector.broadcast %cst_13 : f32 to vector<512x256xf32>
    %21 = arith.mulf %20, %17 : vector<512x256xf32>
    %22 = arith.select %19, %17, %21 : vector<512x256xi1>, vector<512x256xf32>
    %c0_14 = arith.constant 0 : index
    %c0_15 = arith.constant 0 : index
    %23 = vector.load %arg6[%c0_14, %c0_15] : memref<1x256xf32, #tpu.memory_space<vmem>>, vector<1x256xf32>
    %cst_16 = arith.constant dense<0.000000e+00> : vector<1x512xf32>
    %24 = tpu.matmul %23, %22, %cst_16 {dimension_numbers = #tpu.dot_dimension_numbers<[1], [1], [0], [0], [0, 0, 1, 0], [], []>} : vector<1x256xf32>, vector<512x256xf32>, vector<1x512xf32> -> vector<1x512xf32>
    %c0_17 = arith.constant 0 : index
    %c0_18 = arith.constant 0 : index
    %25 = vector.load %arg7[%c0_17, %c0_18] : memref<1x1xf32, #tpu.memory_space<vmem>>, vector<1x1xf32>
    %26 = vector.broadcast %25 : vector<1x1xf32> to vector<1x512xf32>
    %27 = arith.addf %24, %26 : vector<1x512xf32>
    %cst_19 = arith.constant 0.000000e+00 : f32
    %28 = vector.broadcast %cst_19 : f32 to vector<1x512xf32>
    %29 = arith.subf %28, %27 : vector<1x512xf32>
    %30 = math.exp %29 : vector<1x512xf32>
    %cst_20 = arith.constant 1.000000e+00 : f32
    %31 = vector.broadcast %cst_20 : f32 to vector<1x512xf32>
    %32 = arith.addf %31, %30 : vector<1x512xf32>
    %cst_21 = arith.constant 1.000000e+00 : f32
    %33 = vector.broadcast %cst_21 : f32 to vector<1x512xf32>
    %34 = arith.divf %33, %32 : vector<1x512xf32>
    %c0_22 = arith.constant 0 : index
    %c0_23 = arith.constant 0 : index
    %35 = vector.load %arg8[%c0_22, %c0_23] : memref<1x512xf32, #tpu.memory_space<vmem>>, vector<1x512xf32>
    tpu.vector_store %arg8[%c0_22, %c0_23], %34 {strides = array<i32>} : memref<1x512xf32, #tpu.memory_space<vmem>>, vector<1x512xf32>,
    return
  }
  func.func @transform_0(%arg0: i32) -> (i32, i32) {
    %c0_i32 = arith.constant 0 : i32
    %c0_i32_0 = arith.constant 0 : i32
    return %arg0, %c0_i32 : i32, i32
  }
  func.func @transform_1(%arg0: i32) -> (i32, i32) {
    %c0_i32 = arith.constant 0 : i32
    %c0_i32_0 = arith.constant 0 : i32
    %c0_i32_1 = arith.constant 0 : i32
    return %c0_i32, %c0_i32_0 : i32, i32
  }
  func.func @transform_2(%arg0: i32) -> (i32, i32) {
    %c0_i32 = arith.constant 0 : i32
    %c0_i32_0 = arith.constant 0 : i32
    %c0_i32_1 = arith.constant 0 : i32
    return %c0_i32, %c0_i32_0 : i32, i32
  }
  func.func @transform_3(%arg0: i32) -> (i32, i32) {
    %c0_i32 = arith.constant 0 : i32
    %c0_i32_0 = arith.constant 0 : i32
    %c0_i32_1 = arith.constant 0 : i32
    return %c0_i32, %c0_i32_0 : i32, i32
  }
  func.func @transform_4(%arg0: i32) -> (i32, i32) {
    %c0_i32 = arith.constant 0 : i32
    %c0_i32_0 = arith.constant 0 : i32
    %c0_i32_1 = arith.constant 0 : i32
    return %c0_i32, %c0_i32_0 : i32, i32
  }
  func.func @transform_5(%arg0: i32) -> (i32, i32) {
    %c0_i32 = arith.constant 0 : i32
    %c0_i32_0 = arith.constant 0 : i32
    %c0_i32_1 = arith.constant 0 : i32
    return %c0_i32, %c0_i32_0 : i32, i32
  }
  func.func @transform_6(%arg0: i32) -> (i32, i32) {
    %c0_i32 = arith.constant 0 : i32
    %c0_i32_0 = arith.constant 0 : i32
    %c0_i32_1 = arith.constant 0 : i32
    return %c0_i32, %c0_i32_0 : i32, i32
  }
  func.func @transform_7(%arg0: i32) -> (i32, i32) {
    %c0_i32 = arith.constant 0 : i32
    %c0_i32_0 = arith.constant 0 : i32
    return %c0_i32, %arg0 : i32, i32
  }
}

</mosaic_0001>

<llo_original>
// kernel: tpu_custom_call.1
$region0: #{tpu_custom_call.1}
  #allocation0 [shape = 'u32[]', space=smem, size = 0x4, offset = 0x4, fixed_abs, tag = 'smem constant byte address 0x4 - core index']
  #allocation1 [shape = 'u32[144,128]{1,0:T(1,128)}', space=vmem, size = 0x12000, scoped, tag = 'internal scratch']
  #allocation2 [shape = 'f32[1,1]{1,0:T(1,128)S(1)}', space=vmem, size = 0x200, scoped, tag = 'scoped memory for tpu_custom_call.1']
  %s0 = inlined_call_operand.vmem [shape: f32[512,64], index: 0, kind: input, shape index: {}]
  %s1 = inlined_call_operand.vmem [shape: bf16[64,512], index: 1, kind: input, shape index: {}]
  %s2 = inlined_call_operand.vmem [shape: f32[1,512], index: 2, kind: input, shape index: {}]
  %s3 = inlined_call_operand.vmem [shape: bf16[512,256], index: 3, kind: input, shape index: {}]
  %s4 = inlined_call_operand.vmem [shape: f32[1,256], index: 4, kind: input, shape index: {}]
  %s5 = inlined_call_operand.vmem [shape: f32[1,256], index: 5, kind: input, shape index: {}]
  %s6 = inlined_call_operand.<no memory space> [shape: f32[1,1], index: 6, kind: input, shape index: {}]
  %s7 = inlined_call_operand.hbm [shape: f32[1,512], index: 7, kind: output, shape index: {}]
  %s8 = sld [smem:[#allocation0]]
  $region38: #{tpu_custom_call.1} parent=0
    _
  %s10 = ssub.s32 1, %s8
  %s11 = scalar_select 0, %s10, %s8
  %v12 = vstv %s6
  %13 = vst [vmem:[#allocation2] sm:$0x1] %v12
  $region1: #{tpu_custom_call.1} parent=0
    #allocation3 [shape = 'u8[2048]{0}', space=vmem, size = 0x800, scoped, tag = 'output window, operand 0, single buffered']
    #allocation4 [shape = 's32[1]{0}', space=sflag, size = 0x4, scoped, tag = 'scoped memory for tpu_custom_call.1']
    %14 = vsyncpa [#allocation4], 0
    // Predicated region
    $region2: #{tpu_custom_call.1} parent=1 // pred_check
      _
    $region3: #{tpu_custom_call.1} parent=1 // pred_check_branch
      %16 = sbr.rel (0) target = $region5
    $region4: #{tpu_custom_call.1} parent=1 // pred_region
      _
    $region5: #{tpu_custom_call.1} parent=1 // pred_fallthru
      _
    // Predicated region
    $region6: #{tpu_custom_call.1} parent=1 // pred_check
      _
    $region7: #{tpu_custom_call.1} parent=1 // pred_check_branch
      %18 = sbr.rel (0) target = $region9
    $region8: #{tpu_custom_call.1} parent=1 // pred_region
      _
    $region9: #{tpu_custom_call.1} parent=1 // pred_fallthru
      _
    // Predicated region
    $region10: #{tpu_custom_call.1} parent=1 // pred_check
      _
    $region11: #{tpu_custom_call.1} parent=1 // pred_check_branch
      %20 = sbr.rel (0) target = $region13
    $region12: #{tpu_custom_call.1} parent=1 // pred_region
      _
    $region13: #{tpu_custom_call.1} parent=1 // pred_fallthru
      _
    // Predicated region
    $region14: #{tpu_custom_call.1} parent=1 // pred_check
      _
    $region15: #{tpu_custom_call.1} parent=1 // pred_check_branch
      %22 = sbr.rel (0) target = $region17
    $region16: #{tpu_custom_call.1} parent=1 // pred_region
      _
    $region17: #{tpu_custom_call.1} parent=1 // pred_fallthru
      _
    // Predicated region
    $region18: #{tpu_custom_call.1} parent=1 // pred_check
      _
    $region19: #{tpu_custom_call.1} parent=1 // pred_check_branch
      %24 = sbr.rel (0) target = $region21
    $region20: #{tpu_custom_call.1} parent=1 // pred_region
      _
    $region21: #{tpu_custom_call.1} parent=1 // pred_fallthru
      _
    // Predicated region
    $region22: #{tpu_custom_call.1} parent=1 // pred_check
      _
    $region23: #{tpu_custom_call.1} parent=1 // pred_check_branch
      %26 = sbr.rel (0) target = $region25
    $region24: #{tpu_custom_call.1} parent=1 // pred_region
      _
    $region25: #{tpu_custom_call.1} parent=1 // pred_fallthru
      _
    // Predicated region
    $region26: #{tpu_custom_call.1} parent=1 // pred_check
      _
    $region27: #{tpu_custom_call.1} parent=1 // pred_check_branch
      %28 = sbr.rel (0) target = $region29
    $region28: #{tpu_custom_call.1} parent=1 // pred_region
      _
    $region29: #{tpu_custom_call.1} parent=1 // pred_fallthru
      _
    %v30 = vld [vmem:[%s0] sm:$0xff]
    %v31 = vld [vmem:[%s0 + $0x8] sm:$0xff]
    %v32 = vld [vmem:[%s0 + $0x10] sm:$0xff]
    %v33 = vld [vmem:[%s0 + $0x18] sm:$0xff]
    %v34 = vld [vmem:[%s0 + $0x20] sm:$0xff]
    %v35 = vld [vmem:[%s0 + $0x28] sm:$0xff]
    %v36 = vld [vmem:[%s0 + $0x30] sm:$0xff]
    %v37 = vld [vmem:[%s0 + $0x38] sm:$0xff]
    %v38 = vld [vmem:[%s0 + $0x40] sm:$0xff]
    %v39 = vld [vmem:[%s0 + $0x48] sm:$0xff]
    %v40 = vld [vmem:[%s0 + $0x50] sm:$0xff]
    %v41 = vld [vmem:[%s0 + $0x58] sm:$0xff]
    %v42 = vld [vmem:[%s0 + $0x60] sm:$0xff]
    %v43 = vld [vmem:[%s0 + $0x68] sm:$0xff]
    %v44 = vld [vmem:[%s0 + $0x70] sm:$0xff]
    %v45 = vld [vmem:[%s0 + $0x78] sm:$0xff]
    %v46 = vld [vmem:[%s0 + $0x80] sm:$0xff]
    %v47 = vld [vmem:[%s0 + $0x88] sm:$0xff]
    %v48 = vld [vmem:[%s0 + $0x90] sm:$0xff]
    %v49 = vld [vmem:[%s0 + $0x98] sm:$0xff]
    %v50 = vld [vmem:[%s0 + $0xa0] sm:$0xff]
    %v51 = vld [vmem:[%s0 + $0xa8] sm:$0xff]
    %v52 = vld [vmem:[%s0 + $0xb0] sm:$0xff]
    %v53 = vld [vmem:[%s0 + $0xb8] sm:$0xff]
    %v54 = vld [vmem:[%s0 + $0xc0] sm:$0xff]
    %v55 = vld [vmem:[%s0 + $0xc8] sm:$0xff]
    %v56 = vld [vmem:[%s0 + $0xd0] sm:$0xff]
    %v57 = vld [vmem:[%s0 + $0xd8] sm:$0xff]
    %v58 = vld [vmem:[%s0 + $0xe0] sm:$0xff]
    %v59 = vld [vmem:[%s0 + $0xe8] sm:$0xff]
    %v60 = vld [vmem:[%s0 + $0xf0] sm:$0xff]
    %v61 = vld [vmem:[%s0 + $0xf8] sm:$0xff]
    %v62 = vld [vmem:[%s0 + $0x100] sm:$0xff]
    %v63 = vld [vmem:[%s0 + $0x108] sm:$0xff]
    %v64 = vld [vmem:[%s0 + $0x110] sm:$0xff]
    %v65 = vld [vmem:[%s0 + $0x118] sm:$0xff]
    %v66 = vld [vmem:[%s0 + $0x120] sm:$0xff]
    %v67 = vld [vmem:[%s0 + $0x128] sm:$0xff]
    %v68 = vld [vmem:[%s0 + $0x130] sm:$0xff]
    %v69 = vld [vmem:[%s0 + $0x138] sm:$0xff]
    %v70 = vld [vmem:[%s0 + $0x140] sm:$0xff]
    %v71 = vld [vmem:[%s0 + $0x148] sm:$0xff]
    %v72 = vld [vmem:[%s0 + $0x150] sm:$0xff]
    %v73 = vld [vmem:[%s0 + $0x158] sm:$0xff]
    %v74 = vld [vmem:[%s0 + $0x160] sm:$0xff]
    %v75 = vld [vmem:[%s0 + $0x168] sm:$0xff]
    %v76 = vld [vmem:[%s0 + $0x170] sm:$0xff]
    %v77 = vld [vmem:[%s0 + $0x178] sm:$0xff]
    %v78 = vld [vmem:[%s0 + $0x180] sm:$0xff]
    %v79 = vld [vmem:[%s0 + $0x188] sm:$0xff]
    %v80 = vld [vmem:[%s0 + $0x190] sm:$0xff]
    %v81 = vld [vmem:[%s0 + $0x198] sm:$0xff]
    %v82 = vld [vmem:[%s0 + $0x1a0] sm:$0xff]
    %v83 = vld [vmem:[%s0 + $0x1a8] sm:$0xff]
    %v84 = vld [vmem:[%s0 + $0x1b0] sm:$0xff]
    %v85 = vld [vmem:[%s0 + $0x1b8] sm:$0xff]
    %v86 = vld [vmem:[%s0 + $0x1c0] sm:$0xff]
    %v87 = vld [vmem:[%s0 + $0x1c8] sm:$0xff]
    %v88 = vld [vmem:[%s0 + $0x1d0] sm:$0xff]
    %v89 = vld [vmem:[%s0 + $0x1d8] sm:$0xff]
    %v90 = vld [vmem:[%s0 + $0x1e0] sm:$0xff]
    %v91 = vld [vmem:[%s0 + $0x1e8] sm:$0xff]
    %v92 = vld [vmem:[%s0 + $0x1f0] sm:$0xff]
    %v93 = vld [vmem:[%s0 + $0x1f8] sm:$0xff]
    %v94 = vpack.c.bf16 %v31, %v30
    %v95 = vpack.c.bf16 %v33, %v32
    %v96 = vpack.c.bf16 %v35, %v34
    %v97 = vpack.c.bf16 %v37, %v36
    %v98 = vpack.c.bf16 %v39, %v38
    %v99 = vpack.c.bf16 %v41, %v40
    %v100 = vpack.c.bf16 %v43, %v42
    %v101 = vpack.c.bf16 %v45, %v44
    %v102 = vpack.c.bf16 %v47, %v46
    %v103 = vpack.c.bf16 %v49, %v48
    %v104 = vpack.c.bf16 %v51, %v50
    %v105 = vpack.c.bf16 %v53, %v52
    %v106 = vpack.c.bf16 %v55, %v54
    %v107 = vpack.c.bf16 %v57, %v56
    %v108 = vpack.c.bf16 %v59, %v58
    %v109 = vpack.c.bf16 %v61, %v60
    %v110 = vpack.c.bf16 %v63, %v62
    %v111 = vpack.c.bf16 %v65, %v64
    %v112 = vpack.c.bf16 %v67, %v66
    %v113 = vpack.c.bf16 %v69, %v68
    %v114 = vpack.c.bf16 %v71, %v70
    %v115 = vpack.c.bf16 %v73, %v72
    %v116 = vpack.c.bf16 %v75, %v74
    %v117 = vpack.c.bf16 %v77, %v76
    %v118 = vpack.c.bf16 %v79, %v78
    %v119 = vpack.c.bf16 %v81, %v80
    %v120 = vpack.c.bf16 %v83, %v82
    %v121 = vpack.c.bf16 %v85, %v84
    %v122 = vpack.c.bf16 %v87, %v86
    %v123 = vpack.c.bf16 %v89, %v88
    %v124 = vpack.c.bf16 %v91, %v90
    %v125 = vpack.c.bf16 %v93, %v92
    %v126 = vld [vmem:[%s1] sm:$0xff]
    %v127 = vld [vmem:[%s1 + $0x8] sm:$0xff]
    %v128 = vld [vmem:[%s1 + $0x10] sm:$0xff]
    %v129 = vld [vmem:[%s1 + $0x18] sm:$0xff]
    %v130 = vld [vmem:[%s1 + $0x20] sm:$0xff]
    %v131 = vld [vmem:[%s1 + $0x28] sm:$0xff]
    %v132 = vld [vmem:[%s1 + $0x30] sm:$0xff]
    %v133 = vld [vmem:[%s1 + $0x38] sm:$0xff]
    %v134 = vld [vmem:[%s1 + $0x40] sm:$0xff]
    %v135 = vld [vmem:[%s1 + $0x48] sm:$0xff]
    %v136 = vld [vmem:[%s1 + $0x50] sm:$0xff]
    %v137 = vld [vmem:[%s1 + $0x58] sm:$0xff]
    %v138 = vld [vmem:[%s1 + $0x60] sm:$0xff]
    %v139 = vld [vmem:[%s1 + $0x68] sm:$0xff]
    %v140 = vld [vmem:[%s1 + $0x70] sm:$0xff]
    %v141 = vld [vmem:[%s1 + $0x78] sm:$0xff]
    %v142 = vld [vmem:[%s2] sm:$0xf]
    %v144 = vlaneseq
    %v145 = vshrl.u32 %v144, 7
    %v146 = vsub.s32 0, %v145
    %v147 = vrot.slane %v142, %v146
    %v148 = vlaneseq
    %v149 = vshrl.u32 %v148, 7
    %v150 = vsub.s32 1, %v149
    %v151 = vrot.slane %v142, %v150
    %v152 = vlaneseq
    %v153 = vshrl.u32 %v152, 7
    %v154 = vsub.s32 2, %v153
    %v155 = vrot.slane %v142, %v154
    %v156 = vlaneseq
    %v157 = vshrl.u32 %v156, 7
    %v158 = vsub.s32 3, %v157
    %v159 = vrot.slane %v142, %v158
    %v180 = vunpack.c.l.b16 %v126
    %v181 = vunpack.c.h.b16 %v126
    %v182 = vunpack.c.l.b16 %v127
    %v183 = vunpack.c.h.b16 %v127
    %v184 = vunpack.c.l.b16 %v128
    %v185 = vunpack.c.h.b16 %v128
    %v186 = vunpack.c.l.b16 %v129
    %v187 = vunpack.c.h.b16 %v129
    %v188 = vunpack.c.l.b16 %v130
    %v189 = vunpack.c.h.b16 %v130
    %v190 = vunpack.c.l.b16 %v131
    %v191 = vunpack.c.h.b16 %v131
    %v192 = vunpack.c.l.b16 %v132
    %v193 = vunpack.c.h.b16 %v132
    %v194 = vunpack.c.l.b16 %v133
    %v195 = vunpack.c.h.b16 %v133
    %v196 = vunpack.c.l.b16 %v134
    %v197 = vunpack.c.h.b16 %v134
    %v198 = vunpack.c.l.b16 %v135
    %v199 = vunpack.c.h.b16 %v135
    %v200 = vunpack.c.l.b16 %v136
    %v201 = vunpack.c.h.b16 %v136
    %v202 = vunpack.c.l.b16 %v137
    %v203 = vunpack.c.h.b16 %v137
    %v204 = vunpack.c.l.b16 %v138
    %v205 = vunpack.c.h.b16 %v138
    %v206 = vunpack.c.l.b16 %v139
    %v207 = vunpack.c.h.b16 %v139
    %v208 = vunpack.c.l.b16 %v140
    %v209 = vunpack.c.h.b16 %v140
    %v210 = vunpack.c.l.b16 %v141
    %v211 = vunpack.c.h.b16 %v141
    %v212 = vpack.c.b16 %v184, %v180
    %v213 = vpack.c.b16 %v185, %v181
    %v214 = vpack.c.b16 %v186, %v182
    %v215 = vpack.c.b16 %v187, %v183
    %v216 = vpack.c.b16 %v192, %v188
    %v217 = vpack.c.b16 %v193, %v189
    %v218 = vpack.c.b16 %v194, %v190
    %v219 = vpack.c.b16 %v195, %v191
    %v220 = vpack.c.b16 %v200, %v196
    %v221 = vpack.c.b16 %v201, %v197
    %v222 = vpack.c.b16 %v202, %v198
    %v223 = vpack.c.b16 %v203, %v199
    %v224 = vpack.c.b16 %v208, %v204
    %v225 = vpack.c.b16 %v209, %v205
    %v226 = vpack.c.b16 %v210, %v206
    %v227 = vpack.c.b16 %v211, %v207
    %vm244 = vcmask 523264
    %v246 = vsel %vm244, %v94, 0
    %v249 = vsel %vm244, %v95, 0
    %v252 = vsel %vm244, %v96, 0
    %v255 = vsel %vm244, %v97, 0
    %v258 = vsel %vm244, %v98, 0
    %v261 = vsel %vm244, %v99, 0
    %v264 = vsel %vm244, %v100, 0
    %v267 = vsel %vm244, %v101, 0
    %v270 = vsel %vm244, %v102, 0
    %v273 = vsel %vm244, %v103, 0
    %v276 = vsel %vm244, %v104, 0
    %v279 = vsel %vm244, %v105, 0
    %v282 = vsel %vm244, %v106, 0
    %v285 = vsel %vm244, %v107, 0
    %v288 = vsel %vm244, %v108, 0
    %v291 = vsel %vm244, %v109, 0
    %v294 = vsel %vm244, %v110, 0
    %v297 = vsel %vm244, %v111, 0
    %v300 = vsel %vm244, %v112, 0
    %v303 = vsel %vm244, %v113, 0
    %v306 = vsel %vm244, %v114, 0
    %v309 = vsel %vm244, %v115, 0
    %v312 = vsel %vm244, %v116, 0
    %v315 = vsel %vm244, %v117, 0
    %v318 = vsel %vm244, %v118, 0
    %v321 = vsel %vm244, %v119, 0
    %v324 = vsel %vm244, %v120, 0
    %v327 = vsel %vm244, %v121, 0
    %v330 = vsel %vm244, %v122, 0
    %v333 = vsel %vm244, %v123, 0
    %v336 = vsel %vm244, %v124, 0
    %v339 = vsel %vm244, %v125, 0
    %341 = vmatprep.subr.bf16.mxu0 0
    %342 = vmatpush1.bf16.msra.mxu0 0
    %343 = vmatprep.subr.bf16.mxu0 0
    %344 = vmatpush1.bf16.msra.mxu0 0
    %345 = vmatprep.subr.bf16.mxu0 0
    %346 = vmatpush1.bf16.msra.mxu0 0
    %347 = vmatprep.subr.bf16.mxu0 0
    %348 = vmatpush1.bf16.msra.mxu0 0
    %349 = vmatprep.subr.bf16.mxu0 %v225
    %350 = vmatpush1.bf16.msra.mxu0 %v224
    %351 = vmatprep.subr.bf16.mxu0 %v221
    %352 = vmatpush1.bf16.msra.mxu0 %v220
    %353 = vmatprep.subr.bf16.mxu0 %v217
    %354 = vmatpush1.bf16.msra.mxu0 %v216
    %355 = vmatprep.subr.bf16.mxu0 %v213
    %356 = vmatpush1.bf16.msra.mxu0 %v212
    %357 = vmatprep.subr.bf16.mxu0 0
    %358 = vmatpush2.bf16.msra.mxu0 0
    %359 = vmatprep.subr.bf16.mxu0 0
    %360 = vmatpush2.bf16.msra.mxu0 0
    %361 = vmatprep.subr.bf16.mxu0 0
    %362 = vmatpush2.bf16.msra.mxu0 0
    %363 = vmatprep.subr.bf16.mxu0 0
    %364 = vmatpush2.bf16.msra.mxu0 0
    %365 = vmatprep.subr.bf16.mxu0 0
    %366 = vmatpush2.bf16.msra.mxu0 0
    %367 = vmatprep.subr.bf16.mxu0 0
    %368 = vmatpush2.bf16.msra.mxu0 0
    %369 = vmatprep.subr.bf16.mxu0 0
    %370 = vmatpush2.bf16.msra.mxu0 0
    %371 = vmatprep.subr.bf16.mxu0 0
    %372 = vmatpush2.bf16.msra.mxu0 0
    %373 = vmatprep.mubr.bf16.mxu0 0
    %374 = vmatmul.mubr.bf16.gmra.mxu0 %v246
    %v375 = vpop.f32.mrf.mxu0
    %v376 = vadd.f32 %v147, %v375
    %v377 = vpop.f32.mrf.mxu0
    %v378 = vadd.f32 %v151, %v377
    %v379 = vpop.f32.mrf.mxu0
    %v380 = vadd.f32 %v147, %v379
    %v381 = vpop.f32.mrf.mxu0
    %v382 = vadd.f32 %v151, %v381
    %383 = vmatprep.mubr.bf16.mxu0 0
    %384 = vmatmul.mubr.bf16.gmra.mxu0 %v249
    %v385 = vpop.f32.mrf.mxu0
    %v386 = vadd.f32 %v147, %v385
    %v387 = vpop.f32.mrf.mxu0
    %v388 = vadd.f32 %v151, %v387
    %v389 = vpop.f32.mrf.mxu0
    %v390 = vadd.f32 %v147, %v389
    %v391 = vpop.f32.mrf.mxu0
    %v392 = vadd.f32 %v151, %v391
    %393 = vmatprep.mubr.bf16.mxu0 0
    %394 = vmatmul.mubr.bf16.gmra.mxu0 %v252
    %v395 = vpop.f32.mrf.mxu0
    %v396 = vadd.f32 %v147, %v395
    %v397 = vpop.f32.mrf.mxu0
    %v398 = vadd.f32 %v151, %v397
    %v399 = vpop.f32.mrf.mxu0
    %v400 = vadd.f32 %v147, %v399
    %v401 = vpop.f32.mrf.mxu0
    %v402 = vadd.f32 %v151, %v401
    %403 = vmatprep.mubr.bf16.mxu0 0
    %404 = vmatmul.mubr.bf16.gmra.mxu0 %v255
    %v405 = vpop.f32.mrf.mxu0
    %v406 = vadd.f32 %v147, %v405
    %v407 = vpop.f32.mrf.mxu0
    %v408 = vadd.f32 %v151, %v407
    %v409 = vpop.f32.mrf.mxu0
    %v410 = vadd.f32 %v147, %v409
    %v411 = vpop.f32.mrf.mxu0
    %v412 = vadd.f32 %v151, %v411
    %413 = vmatprep.mubr.bf16.mxu0 0
    %414 = vmatmul.mubr.bf16.gmra.mxu0 %v258
    %v415 = vpop.f32.mrf.mxu0
    %v416 = vadd.f32 %v147, %v415
    %v417 = vpop.f32.mrf.mxu0
    %v418 = vadd.f32 %v151, %v417
    %v419 = vpop.f32.mrf.mxu0
    %v420 = vadd.f32 %v147, %v419
    %v421 = vpop.f32.mrf.mxu0
    %v422 = vadd.f32 %v151, %v421
    %423 = vmatprep.mubr.bf16.mxu0 0
    %424 = vmatmul.mubr.bf16.gmra.mxu0 %v261
    %v425 = vpop.f32.mrf.mxu0
    %v426 = vadd.f32 %v147, %v425
    %v427 = vpop.f32.mrf.mxu0
    %v428 = vadd.f32 %v151, %v427
    %v429 = vpop.f32.mrf.mxu0
    %v430 = vadd.f32 %v147, %v429
    %v431 = vpop.f32.mrf.mxu0
    %v432 = vadd.f32 %v151, %v431
    %433 = vmatprep.mubr.bf16.mxu0 0
    %434 = vmatmul.mubr.bf16.gmra.mxu0 %v264
    %v435 = vpop.f32.mrf.mxu0
    %v436 = vadd.f32 %v147, %v435
    %v437 = vpop.f32.mrf.mxu0
    %v438 = vadd.f32 %v151, %v437
    %v439 = vpop.f32.mrf.mxu0
    %v440 = vadd.f32 %v147, %v439
    %v441 = vpop.f32.mrf.mxu0
    %v442 = vadd.f32 %v151, %v441
    %443 = vmatprep.mubr.bf16.mxu0 0
    %444 = vmatmul.mubr.bf16.gmra.mxu0 %v267
    %v445 = vpop.f32.mrf.mxu0
    %v446 = vadd.f32 %v147, %v445
    %v447 = vpop.f32.mrf.mxu0
    %v448 = vadd.f32 %v151, %v447
    %v449 = vpop.f32.mrf.mxu0
    %v450 = vadd.f32 %v147, %v449
    %v451 = vpop.f32.mrf.mxu0
    %v452 = vadd.f32 %v151, %v451
    %453 = vmatprep.mubr.bf16.mxu0 0
    %454 = vmatmul.mubr.bf16.gmra.mxu0 %v270
    %v455 = vpop.f32.mrf.mxu0
    %v456 = vadd.f32 %v147, %v455
    %v457 = vpop.f32.mrf.mxu0
    %v458 = vadd.f32 %v151, %v457
    %v459 = vpop.f32.mrf.mxu0
    %v460 = vadd.f32 %v147, %v459
    %v461 = vpop.f32.mrf.mxu0
    %v462 = vadd.f32 %v151, %v461
    %463 = vmatprep.mubr.bf16.mxu0 0
    %464 = vmatmul.mubr.bf16.gmra.mxu0 %v273
    %v465 = vpop.f32.mrf.mxu0
    %v466 = vadd.f32 %v147, %v465
    %v467 = vpop.f32.mrf.mxu0
    %v468 = vadd.f32 %v151, %v467
    %v469 = vpop.f32.mrf.mxu0
    %v470 = vadd.f32 %v147, %v469
    %v471 = vpop.f32.mrf.mxu0
    %v472 = vadd.f32 %v151, %v471
    %473 = vmatprep.mubr.bf16.mxu0 0
    %474 = vmatmul.mubr.bf16.gmra.mxu0 %v276
    %v475 = vpop.f32.mrf.mxu0
    %v476 = vadd.f32 %v147, %v475
    %v477 = vpop.f32.mrf.mxu0
    %v478 = vadd.f32 %v151, %v477
    %v479 = vpop.f32.mrf.mxu0
    %v480 = vadd.f32 %v147, %v479
    %v481 = vpop.f32.mrf.mxu0
    %v482 = vadd.f32 %v151, %v481
    %483 = vmatprep.mubr.bf16.mxu0 0
    %484 = vmatmul.mubr.bf16.gmra.mxu0 %v279
    %v485 = vpop.f32.mrf.mxu0
    %v486 = vadd.f32 %v147, %v485
    %v487 = vpop.f32.mrf.mxu0
    %v488 = vadd.f32 %v151, %v487
    %v489 = vpop.f32.mrf.mxu0
    %v490 = vadd.f32 %v147, %v489
    %v491 = vpop.f32.mrf.mxu0
    %v492 = vadd.f32 %v151, %v491
    %493 = vmatprep.mubr.bf16.mxu0 0
    %494 = vmatmul.mubr.bf16.gmra.mxu0 %v282
    %v495 = vpop.f32.mrf.mxu0
    %v496 = vadd.f32 %v147, %v495
    %v497 = vpop.f32.mrf.mxu0
    %v498 = vadd.f32 %v151, %v497
    %v499 = vpop.f32.mrf.mxu0
    %v500 = vadd.f32 %v147, %v499
    %v501 = vpop.f32.mrf.mxu0
    %v502 = vadd.f32 %v151, %v501
    %503 = vmatprep.mubr.bf16.mxu0 0
    %504 = vmatmul.mubr.bf16.gmra.mxu0 %v285
    %v505 = vpop.f32.mrf.mxu0
    %v506 = vadd.f32 %v147, %v505
    %v507 = vpop.f32.mrf.mxu0
    %v508 = vadd.f32 %v151, %v507
    %v509 = vpop.f32.mrf.mxu0
    %v510 = vadd.f32 %v147, %v509
    %v511 = vpop.f32.mrf.mxu0
    %v512 = vadd.f32 %v151, %v511
    %513 = vmatprep.mubr.bf16.mxu0 0
    %514 = vmatmul.mubr.bf16.gmra.mxu0 %v288
    %v515 = vpop.f32.mrf.mxu0
    %v516 = vadd.f32 %v147, %v515
    %v517 = vpop.f32.mrf.mxu0
    %v518 = vadd.f32 %v151, %v517
    %v519 = vpop.f32.mrf.mxu0
    %v520 = vadd.f32 %v147, %v519
    %v521 = vpop.f32.mrf.mxu0
    %v522 = vadd.f32 %v151, %v521
    %523 = vmatprep.mubr.bf16.mxu0 0
    %524 = vmatmul.mubr.bf16.gmra.mxu0 %v291
    %v525 = vpop.f32.mrf.mxu0
    %v526 = vadd.f32 %v147, %v525
    %v527 = vpop.f32.mrf.mxu0
    %v528 = vadd.f32 %v151, %v527
    %v529 = vpop.f32.mrf.mxu0
    %v530 = vadd.f32 %v147, %v529
    %v531 = vpop.f32.mrf.mxu0
    %v532 = vadd.f32 %v151, %v531
    %533 = vmatprep.mubr.bf16.mxu0 0
    %534 = vmatmul.mubr.bf16.gmra.mxu0 %v294
    %v535 = vpop.f32.mrf.mxu0
    %v536 = vadd.f32 %v147, %v535
    %v537 = vpop.f32.mrf.mxu0
    %v538 = vadd.f32 %v151, %v537
    %v539 = vpop.f32.mrf.mxu0
    %v540 = vadd.f32 %v147, %v539
    %v541 = vpop.f32.mrf.mxu0
    %v542 = vadd.f32 %v151, %v541
    %543 = vmatprep.mubr.bf16.mxu0 0
    %544 = vmatmul.mubr.bf16.gmra.mxu0 %v297
    %v545 = vpop.f32.mrf.mxu0
    %v546 = vadd.f32 %v147, %v545
    %v547 = vpop.f32.mrf.mxu0
    %v548 = vadd.f32 %v151, %v547
    %v549 = vpop.f32.mrf.mxu0
    %v550 = vadd.f32 %v147, %v549
    %v551 = vpop.f32.mrf.mxu0
    %v552 = vadd.f32 %v151, %v551
    %553 = vmatprep.mubr.bf16.mxu0 0
    %554 = vmatmul.mubr.bf16.gmra.mxu0 %v300
    %v555 = vpop.f32.mrf.mxu0
    %v556 = vadd.f32 %v147, %v555
    %v557 = vpop.f32.mrf.mxu0
    %v558 = vadd.f32 %v151, %v557
    %v559 = vpop.f32.mrf.mxu0
    %v560 = vadd.f32 %v147, %v559
    %v561 = vpop.f32.mrf.mxu0
    %v562 = vadd.f32 %v151, %v561
    %563 = vmatprep.mubr.bf16.mxu0 0
    %564 = vmatmul.mubr.bf16.gmra.mxu0 %v303
    %v565 = vpop.f32.mrf.mxu0
    %v566 = vadd.f32 %v147, %v565
    %v567 = vpop.f32.mrf.mxu0
    %v568 = vadd.f32 %v151, %v567
    %v569 = vpop.f32.mrf.mxu0
    %v570 = vadd.f32 %v147, %v569
    %v571 = vpop.f32.mrf.mxu0
    %v572 = vadd.f32 %v151, %v571
    %573 = vmatprep.mubr.bf16.mxu0 0
    %574 = vmatmul.mubr.bf16.gmra.mxu0 %v306
    %v575 = vpop.f32.mrf.mxu0
    %v576 = vadd.f32 %v147, %v575
    %v577 = vpop.f32.mrf.mxu0
    %v578 = vadd.f32 %v151, %v577
    %v579 = vpop.f32.mrf.mxu0
    %v580 = vadd.f32 %v147, %v579
    %v581 = vpop.f32.mrf.mxu0
    %v582 = vadd.f32 %v151, %v581
    %583 = vmatprep.mubr.bf16.mxu0 0
    %584 = vmatmul.mubr.bf16.gmra.mxu0 %v309
    %v585 = vpop.f32.mrf.mxu0
    %v586 = vadd.f32 %v147, %v585
    %v587 = vpop.f32.mrf.mxu0
    %v588 = vadd.f32 %v151, %v587
    %v589 = vpop.f32.mrf.mxu0
    %v590 = vadd.f32 %v147, %v589
    %v591 = vpop.f32.mrf.mxu0
    %v592 = vadd.f32 %v151, %v591
    %593 = vmatprep.mubr.bf16.mxu0 0
    %594 = vmatmul.mubr.bf16.gmra.mxu0 %v312
    %v595 = vpop.f32.mrf.mxu0
    %v596 = vadd.f32 %v147, %v595
    %v597 = vpop.f32.mrf.mxu0
    %v598 = vadd.f32 %v151, %v597
    %v599 = vpop.f32.mrf.mxu0
    %v600 = vadd.f32 %v147, %v599
    %v601 = vpop.f32.mrf.mxu0
    %v602 = vadd.f32 %v151, %v601
    %603 = vmatprep.mubr.bf16.mxu0 0
    %604 = vmatmul.mubr.bf16.gmra.mxu0 %v315
    %v605 = vpop.f32.mrf.mxu0
    %v606 = vadd.f32 %v147, %v605
    %v607 = vpop.f32.mrf.mxu0
    %v608 = vadd.f32 %v151, %v607
    %v609 = vpop.f32.mrf.mxu0
    %v610 = vadd.f32 %v147, %v609
    %v611 = vpop.f32.mrf.mxu0
    %v612 = vadd.f32 %v151, %v611
    %613 = vmatprep.mubr.bf16.mxu0 0
    %614 = vmatmul.mubr.bf16.gmra.mxu0 %v318
    %v615 = vpop.f32.mrf.mxu0
    %v616 = vadd.f32 %v147, %v615
    %v617 = vpop.f32.mrf.mxu0
    %v618 = vadd.f32 %v151, %v617
    %v619 = vpop.f32.mrf.mxu0
    %v620 = vadd.f32 %v147, %v619
    %v621 = vpop.f32.mrf.mxu0
    %v622 = vadd.f32 %v151, %v621
    %623 = vmatprep.mubr.bf16.mxu0 0
    %624 = vmatmul.mubr.bf16.gmra.mxu0 %v321
    %v625 = vpop.f32.mrf.mxu0
    %v626 = vadd.f32 %v147, %v625
    %v627 = vpop.f32.mrf.mxu0
    %v628 = vadd.f32 %v151, %v627
    %v629 = vpop.f32.mrf.mxu0
    %v630 = vadd.f32 %v147, %v629
    %v631 = vpop.f32.mrf.mxu0
    %v632 = vadd.f32 %v151, %v631
    %633 = vmatprep.mubr.bf16.mxu0 0
    %634 = vmatmul.mubr.bf16.gmra.mxu0 %v324
    %v635 = vpop.f32.mrf.mxu0
    %v636 = vadd.f32 %v147, %v635
    %v637 = vpop.f32.mrf.mxu0
    %v638 = vadd.f32 %v151, %v637
    %v639 = vpop.f32.mrf.mxu0
    %v640 = vadd.f32 %v147, %v639
    %v641 = vpop.f32.mrf.mxu0
    %v642 = vadd.f32 %v151, %v641
    %643 = vmatprep.mubr.bf16.mxu0 0
    %644 = vmatmul.mubr.bf16.gmra.mxu0 %v327
    %v645 = vpop.f32.mrf.mxu0
    %v646 = vadd.f32 %v147, %v645
    %v647 = vpop.f32.mrf.mxu0
    %v648 = vadd.f32 %v151, %v647
    %v649 = vpop.f32.mrf.mxu0
    %v650 = vadd.f32 %v147, %v649
    %v651 = vpop.f32.mrf.mxu0
    %v652 = vadd.f32 %v151, %v651
    %653 = vmatprep.mubr.bf16.mxu0 0
    %654 = vmatmul.mubr.bf16.gmra.mxu0 %v330
    %v655 = vpop.f32.mrf.mxu0
    %v656 = vadd.f32 %v147, %v655
    %v657 = vpop.f32.mrf.mxu0
    %v658 = vadd.f32 %v151, %v657
    %v659 = vpop.f32.mrf.mxu0
    %v660 = vadd.f32 %v147, %v659
    %v661 = vpop.f32.mrf.mxu0
    %v662 = vadd.f32 %v151, %v661
    %663 = vmatprep.mubr.bf16.mxu0 0
    %664 = vmatmul.mubr.bf16.gmra.mxu0 %v333
    %v665 = vpop.f32.mrf.mxu0
    %v666 = vadd.f32 %v147, %v665
    %v667 = vpop.f32.mrf.mxu0
    %v668 = vadd.f32 %v151, %v667
    %v669 = vpop.f32.mrf.mxu0
    %v670 = vadd.f32 %v147, %v669
    %v671 = vpop.f32.mrf.mxu0
    %v672 = vadd.f32 %v151, %v671
    %673 = vmatprep.mubr.bf16.mxu0 0
    %674 = vmatmul.mubr.bf16.gmra.mxu0 %v336
    %v675 = vpop.f32.mrf.mxu0
    %v676 = vadd.f32 %v147, %v675
    %v677 = vpop.f32.mrf.mxu0
    %v678 = vadd.f32 %v151, %v677
    %v679 = vpop.f32.mrf.mxu0
    %v680 = vadd.f32 %v147, %v679
    %v681 = vpop.f32.mrf.mxu0
    %v682 = vadd.f32 %v151, %v681
    %683 = vmatprep.mubr.bf16.mxu0 0
    %684 = vmatmul.mubr.bf16.gmra.mxu0 %v339
    %v685 = vpop.f32.mrf.mxu0
    %v686 = vadd.f32 %v147, %v685
    %v687 = vpop.f32.mrf.mxu0
    %v688 = vadd.f32 %v151, %v687
    %v689 = vpop.f32.mrf.mxu0
    %v690 = vadd.f32 %v147, %v689
    %v691 = vpop.f32.mrf.mxu0
    %v692 = vadd.f32 %v151, %v691
    %693 = vdwg.mxu0
    %694 = vmatprep.subr.bf16.mxu0 0
    %695 = vmatpush1.bf16.msra.mxu0 0
    %696 = vmatprep.subr.bf16.mxu0 0
    %697 = vmatpush1.bf16.msra.mxu0 0
    %698 = vmatprep.subr.bf16.mxu0 0
    %699 = vmatpush1.bf16.msra.mxu0 0
    %700 = vmatprep.subr.bf16.mxu0 0
    %701 = vmatpush1.bf16.msra.mxu0 0
    %702 = vmatprep.subr.bf16.mxu0 %v227
    %703 = vmatpush1.bf16.msra.mxu0 %v226
    %704 = vmatprep.subr.bf16.mxu0 %v223
    %705 = vmatpush1.bf16.msra.mxu0 %v222
    %706 = vmatprep.subr.bf16.mxu0 %v219
    %707 = vmatpush1.bf16.msra.mxu0 %v218
    %708 = vmatprep.subr.bf16.mxu0 %v215
    %709 = vmatpush1.bf16.msra.mxu0 %v214
    %710 = vmatprep.subr.bf16.mxu0 0
    %711 = vmatpush2.bf16.msra.mxu0 0
    %712 = vmatprep.subr.bf16.mxu0 0
    %713 = vmatpush2.bf16.msra.mxu0 0
    %714 = vmatprep.subr.bf16.mxu0 0
    %715 = vmatpush2.bf16.msra.mxu0 0
    %716 = vmatprep.subr.bf16.mxu0 0
    %717 = vmatpush2.bf16.msra.mxu0 0
    %718 = vmatprep.subr.bf16.mxu0 0
    %719 = vmatpush2.bf16.msra.mxu0 0
    %720 = vmatprep.subr.bf16.mxu0 0
    %721 = vmatpush2.bf16.msra.mxu0 0
    %722 = vmatprep.subr.bf16.mxu0 0
    %723 = vmatpush2.bf16.msra.mxu0 0
    %724 = vmatprep.subr.bf16.mxu0 0
    %725 = vmatpush2.bf16.msra.mxu0 0
    %726 = vmatprep.mubr.bf16.mxu0 0
    %727 = vmatmul.mubr.bf16.gmra.mxu0 %v246
    %v728 = vpop.f32.mrf.mxu0
    %v729 = vadd.f32 %v155, %v728
    %v730 = vpop.f32.mrf.mxu0
    %v731 = vadd.f32 %v159, %v730
    %v732 = vpop.f32.mrf.mxu0
    %v733 = vadd.f32 %v155, %v732
    %v734 = vpop.f32.mrf.mxu0
    %v735 = vadd.f32 %v159, %v734
    %736 = vmatprep.mubr.bf16.mxu0 0
    %737 = vmatmul.mubr.bf16.gmra.mxu0 %v249
    %v738 = vpop.f32.mrf.mxu0
    %v739 = vadd.f32 %v155, %v738
    %v740 = vpop.f32.mrf.mxu0
    %v741 = vadd.f32 %v159, %v740
    %v742 = vpop.f32.mrf.mxu0
    %v743 = vadd.f32 %v155, %v742
    %v744 = vpop.f32.mrf.mxu0
    %v745 = vadd.f32 %v159, %v744
    %746 = vmatprep.mubr.bf16.mxu0 0
    %747 = vmatmul.mubr.bf16.gmra.mxu0 %v252
    %v748 = vpop.f32.mrf.mxu0
    %v749 = vadd.f32 %v155, %v748
    %v750 = vpop.f32.mrf.mxu0
    %v751 = vadd.f32 %v159, %v750
    %v752 = vpop.f32.mrf.mxu0
    %v753 = vadd.f32 %v155, %v752
    %v754 = vpop.f32.mrf.mxu0
    %v755 = vadd.f32 %v159, %v754
    %756 = vmatprep.mubr.bf16.mxu0 0
    %757 = vmatmul.mubr.bf16.gmra.mxu0 %v255
    %v758 = vpop.f32.mrf.mxu0
    %v759 = vadd.f32 %v155, %v758
    %v760 = vpop.f32.mrf.mxu0
    %v761 = vadd.f32 %v159, %v760
    %v762 = vpop.f32.mrf.mxu0
    %v763 = vadd.f32 %v155, %v762
    %v764 = vpop.f32.mrf.mxu0
    %v765 = vadd.f32 %v159, %v764
    %766 = vmatprep.mubr.bf16.mxu0 0
    %767 = vmatmul.mubr.bf16.gmra.mxu0 %v258
    %v768 = vpop.f32.mrf.mxu0
    %v769 = vadd.f32 %v155, %v768
    %v770 = vpop.f32.mrf.mxu0
    %v771 = vadd.f32 %v159, %v770
    %v772 = vpop.f32.mrf.mxu0
    %v773 = vadd.f32 %v155, %v772
    %v774 = vpop.f32.mrf.mxu0
    %v775 = vadd.f32 %v159, %v774
    %776 = vmatprep.mubr.bf16.mxu0 0
    %777 = vmatmul.mubr.bf16.gmra.mxu0 %v261
    %v778 = vpop.f32.mrf.mxu0
    %v779 = vadd.f32 %v155, %v778
    %v780 = vpop.f32.mrf.mxu0
    %v781 = vadd.f32 %v159, %v780
    %v782 = vpop.f32.mrf.mxu0
    %v783 = vadd.f32 %v155, %v782
    %v784 = vpop.f32.mrf.mxu0
    %v785 = vadd.f32 %v159, %v784
    %786 = vmatprep.mubr.bf16.mxu0 0
    %787 = vmatmul.mubr.bf16.gmra.mxu0 %v264
    %v788 = vpop.f32.mrf.mxu0
    %v789 = vadd.f32 %v155, %v788
    %v790 = vpop.f32.mrf.mxu0
    %v791 = vadd.f32 %v159, %v790
    %v792 = vpop.f32.mrf.mxu0
    %v793 = vadd.f32 %v155, %v792
    %v794 = vpop.f32.mrf.mxu0
    %v795 = vadd.f32 %v159, %v794
    %796 = vmatprep.mubr.bf16.mxu0 0
    %797 = vmatmul.mubr.bf16.gmra.mxu0 %v267
    %v798 = vpop.f32.mrf.mxu0
    %v799 = vadd.f32 %v155, %v798
    %v800 = vpop.f32.mrf.mxu0
    %v801 = vadd.f32 %v159, %v800
    %v802 = vpop.f32.mrf.mxu0
    %v803 = vadd.f32 %v155, %v802
    %v804 = vpop.f32.mrf.mxu0
    %v805 = vadd.f32 %v159, %v804
    %806 = vmatprep.mubr.bf16.mxu0 0
    %807 = vmatmul.mubr.bf16.gmra.mxu0 %v270
    %v808 = vpop.f32.mrf.mxu0
    %v809 = vadd.f32 %v155, %v808
    %v810 = vpop.f32.mrf.mxu0
    %v811 = vadd.f32 %v159, %v810
    %v812 = vpop.f32.mrf.mxu0
    %v813 = vadd.f32 %v155, %v812
    %v814 = vpop.f32.mrf.mxu0
    %v815 = vadd.f32 %v159, %v814
    %816 = vmatprep.mubr.bf16.mxu0 0
    %817 = vmatmul.mubr.bf16.gmra.mxu0 %v273
    %v818 = vpop.f32.mrf.mxu0
    %v819 = vadd.f32 %v155, %v818
    %v820 = vpop.f32.mrf.mxu0
    %v821 = vadd.f32 %v159, %v820
    %v822 = vpop.f32.mrf.mxu0
    %v823 = vadd.f32 %v155, %v822
    %v824 = vpop.f32.mrf.mxu0
    %v825 = vadd.f32 %v159, %v824
    %826 = vmatprep.mubr.bf16.mxu0 0
    %827 = vmatmul.mubr.bf16.gmra.mxu0 %v276
    %v828 = vpop.f32.mrf.mxu0
    %v829 = vadd.f32 %v155, %v828
    %v830 = vpop.f32.mrf.mxu0
    %v831 = vadd.f32 %v159, %v830
    %v832 = vpop.f32.mrf.mxu0
    %v833 = vadd.f32 %v155, %v832
    %v834 = vpop.f32.mrf.mxu0
    %v835 = vadd.f32 %v159, %v834
    %836 = vmatprep.mubr.bf16.mxu0 0
    %837 = vmatmul.mubr.bf16.gmra.mxu0 %v279
    %v838 = vpop.f32.mrf.mxu0
    %v839 = vadd.f32 %v155, %v838
    %v840 = vpop.f32.mrf.mxu0
    %v841 = vadd.f32 %v159, %v840
    %v842 = vpop.f32.mrf.mxu0
    %v843 = vadd.f32 %v155, %v842
    %v844 = vpop.f32.mrf.mxu0
    %v845 = vadd.f32 %v159, %v844
    %846 = vmatprep.mubr.bf16.mxu0 0
    %847 = vmatmul.mubr.bf16.gmra.mxu0 %v282
    %v848 = vpop.f32.mrf.mxu0
    %v849 = vadd.f32 %v155, %v848
    %v850 = vpop.f32.mrf.mxu0
    %v851 = vadd.f32 %v159, %v850
    %v852 = vpop.f32.mrf.mxu0
    %v853 = vadd.f32 %v155, %v852
    %v854 = vpop.f32.mrf.mxu0
    %v855 = vadd.f32 %v159, %v854
    %856 = vmatprep.mubr.bf16.mxu0 0
    %857 = vmatmul.mubr.bf16.gmra.mxu0 %v285
    %v858 = vpop.f32.mrf.mxu0
    %v859 = vadd.f32 %v155, %v858
    %v860 = vpop.f32.mrf.mxu0
    %v861 = vadd.f32 %v159, %v860
    %v862 = vpop.f32.mrf.mxu0
    %v863 = vadd.f32 %v155, %v862
    %v864 = vpop.f32.mrf.mxu0
    %v865 = vadd.f32 %v159, %v864
    %866 = vmatprep.mubr.bf16.mxu0 0
    %867 = vmatmul.mubr.bf16.gmra.mxu0 %v288
    %v868 = vpop.f32.mrf.mxu0
    %v869 = vadd.f32 %v155, %v868
    %v870 = vpop.f32.mrf.mxu0
    %v871 = vadd.f32 %v159, %v870
    %v872 = vpop.f32.mrf.mxu0
    %v873 = vadd.f32 %v155, %v872
    %v874 = vpop.f32.mrf.mxu0
    %v875 = vadd.f32 %v159, %v874
    %876 = vmatprep.mubr.bf16.mxu0 0
    %877 = vmatmul.mubr.bf16.gmra.mxu0 %v291
    %v878 = vpop.f32.mrf.mxu0
    %v879 = vadd.f32 %v155, %v878
    %v880 = vpop.f32.mrf.mxu0
    %v881 = vadd.f32 %v159, %v880
    %v882 = vpop.f32.mrf.mxu0
    %v883 = vadd.f32 %v155, %v882
    %v884 = vpop.f32.mrf.mxu0
    %v885 = vadd.f32 %v159, %v884
    %886 = vmatprep.mubr.bf16.mxu0 0
    %887 = vmatmul.mubr.bf16.gmra.mxu0 %v294
    %v888 = vpop.f32.mrf.mxu0
    %v889 = vadd.f32 %v155, %v888
    %v890 = vpop.f32.mrf.mxu0
    %v891 = vadd.f32 %v159, %v890
    %v892 = vpop.f32.mrf.mxu0
    %v893 = vadd.f32 %v155, %v892
    %v894 = vpop.f32.mrf.mxu0
    %v895 = vadd.f32 %v159, %v894
    %896 = vmatprep.mubr.bf16.mxu0 0
    %897 = vmatmul.mubr.bf16.gmra.mxu0 %v297
    %v898 = vpop.f32.mrf.mxu0
    %v899 = vadd.f32 %v155, %v898
    %v900 = vpop.f32.mrf.mxu0
    %v901 = vadd.f32 %v159, %v900
    %v902 = vpop.f32.mrf.mxu0
    %v903 = vadd.f32 %v155, %v902
    %v904 = vpop.f32.mrf.mxu0
    %v905 = vadd.f32 %v159, %v904
    %906 = vmatprep.mubr.bf16.mxu0 0
    %907 = vmatmul.mubr.bf16.gmra.mxu0 %v300
    %v908 = vpop.f32.mrf.mxu0
    %v909 = vadd.f32 %v155, %v908
    %v910 = vpop.f32.mrf.mxu0
    %v911 = vadd.f32 %v159, %v910
    %v912 = vpop.f32.mrf.mxu0
    %v913 = vadd.f32 %v155, %v912
    %v914 = vpop.f32.mrf.mxu0
    %v915 = vadd.f32 %v159, %v914
    %916 = vmatprep.mubr.bf16.mxu0 0
    %917 = vmatmul.mubr.bf16.gmra.mxu0 %v303
    %v918 = vpop.f32.mrf.mxu0
    %v919 = vadd.f32 %v155, %v918
    %v920 = vpop.f32.mrf.mxu0
    %v921 = vadd.f32 %v159, %v920
    %v922 = vpop.f32.mrf.mxu0
    %v923 = vadd.f32 %v155, %v922
    %v924 = vpop.f32.mrf.mxu0
    %v925 = vadd.f32 %v159, %v924
    %926 = vmatprep.mubr.bf16.mxu0 0
    %927 = vmatmul.mubr.bf16.gmra.mxu0 %v306
    %v928 = vpop.f32.mrf.mxu0
    %v929 = vadd.f32 %v155, %v928
    %v930 = vpop.f32.mrf.mxu0
    %v931 = vadd.f32 %v159, %v930
    %v932 = vpop.f32.mrf.mxu0
    %v933 = vadd.f32 %v155, %v932
    %v934 = vpop.f32.mrf.mxu0
    %v935 = vadd.f32 %v159, %v934
    %936 = vmatprep.mubr.bf16.mxu0 0
    %937 = vmatmul.mubr.bf16.gmra.mxu0 %v309
    %v938 = vpop.f32.mrf.mxu0
    %v939 = vadd.f32 %v155, %v938
    %v940 = vpop.f32.mrf.mxu0
    %v941 = vadd.f32 %v159, %v940
    %v942 = vpop.f32.mrf.mxu0
    %v943 = vadd.f32 %v155, %v942
    %v944 = vpop.f32.mrf.mxu0
    %v945 = vadd.f32 %v159, %v944
    %946 = vmatprep.mubr.bf16.mxu0 0
    %947 = vmatmul.mubr.bf16.gmra.mxu0 %v312
    %v948 = vpop.f32.mrf.mxu0
    %v949 = vadd.f32 %v155, %v948
    %v950 = vpop.f32.mrf.mxu0
    %v951 = vadd.f32 %v159, %v950
    %v952 = vpop.f32.mrf.mxu0
    %v953 = vadd.f32 %v155, %v952
    %v954 = vpop.f32.mrf.mxu0
    %v955 = vadd.f32 %v159, %v954
    %956 = vmatprep.mubr.bf16.mxu0 0
    %957 = vmatmul.mubr.bf16.gmra.mxu0 %v315
    %v958 = vpop.f32.mrf.mxu0
    %v959 = vadd.f32 %v155, %v958
    %v960 = vpop.f32.mrf.mxu0
    %v961 = vadd.f32 %v159, %v960
    %v962 = vpop.f32.mrf.mxu0
    %v963 = vadd.f32 %v155, %v962
    %v964 = vpop.f32.mrf.mxu0
    %v965 = vadd.f32 %v159, %v964
    %966 = vmatprep.mubr.bf16.mxu0 0
    %967 = vmatmul.mubr.bf16.gmra.mxu0 %v318
    %v968 = vpop.f32.mrf.mxu0
    %v969 = vadd.f32 %v155, %v968
    %v970 = vpop.f32.mrf.mxu0
    %v971 = vadd.f32 %v159, %v970
    %v972 = vpop.f32.mrf.mxu0
    %v973 = vadd.f32 %v155, %v972
    %v974 = vpop.f32.mrf.mxu0
    %v975 = vadd.f32 %v159, %v974
    %976 = vmatprep.mubr.bf16.mxu0 0
    %977 = vmatmul.mubr.bf16.gmra.mxu0 %v321
    %v978 = vpop.f32.mrf.mxu0
    %v979 = vadd.f32 %v155, %v978
    %v980 = vpop.f32.mrf.mxu0
    %v981 = vadd.f32 %v159, %v980
    %v982 = vpop.f32.mrf.mxu0
    %v983 = vadd.f32 %v155, %v982
    %v984 = vpop.f32.mrf.mxu0
    %v985 = vadd.f32 %v159, %v984
    %986 = vmatprep.mubr.bf16.mxu0 0
    %987 = vmatmul.mubr.bf16.gmra.mxu0 %v324
    %v988 = vpop.f32.mrf.mxu0
    %v989 = vadd.f32 %v155, %v988
    %v990 = vpop.f32.mrf.mxu0
    %v991 = vadd.f32 %v159, %v990
    %v992 = vpop.f32.mrf.mxu0
    %v993 = vadd.f32 %v155, %v992
    %v994 = vpop.f32.mrf.mxu0
    %v995 = vadd.f32 %v159, %v994
    %996 = vmatprep.mubr.bf16.mxu0 0
    %997 = vmatmul.mubr.bf16.gmra.mxu0 %v327
    %v998 = vpop.f32.mrf.mxu0
    %v999 = vadd.f32 %v155, %v998
    %v1000 = vpop.f32.mrf.mxu0
    %v1001 = vadd.f32 %v159, %v1000
    %v1002 = vpop.f32.mrf.mxu0
    %v1003 = vadd.f32 %v155, %v1002
    %v1004 = vpop.f32.mrf.mxu0
    %v1005 = vadd.f32 %v159, %v1004
    %1006 = vmatprep.mubr.bf16.mxu0 0
    %1007 = vmatmul.mubr.bf16.gmra.mxu0 %v330
    %v1008 = vpop.f32.mrf.mxu0
    %v1009 = vadd.f32 %v155, %v1008
    %v1010 = vpop.f32.mrf.mxu0
    %v1011 = vadd.f32 %v159, %v1010
    %v1012 = vpop.f32.mrf.mxu0
    %v1013 = vadd.f32 %v155, %v1012
    %v1014 = vpop.f32.mrf.mxu0
    %v1015 = vadd.f32 %v159, %v1014
    %1016 = vmatprep.mubr.bf16.mxu0 0
    %1017 = vmatmul.mubr.bf16.gmra.mxu0 %v333
    %v1018 = vpop.f32.mrf.mxu0
    %v1019 = vadd.f32 %v155, %v1018
    %v1020 = vpop.f32.mrf.mxu0
    %v1021 = vadd.f32 %v159, %v1020
    %v1022 = vpop.f32.mrf.mxu0
    %v1023 = vadd.f32 %v155, %v1022
    %v1024 = vpop.f32.mrf.mxu0
    %v1025 = vadd.f32 %v159, %v1024
    %1026 = vmatprep.mubr.bf16.mxu0 0
    %1027 = vmatmul.mubr.bf16.gmra.mxu0 %v336
    %v1028 = vpop.f32.mrf.mxu0
    %v1029 = vadd.f32 %v155, %v1028
    %v1030 = vpop.f32.mrf.mxu0
    %v1031 = vadd.f32 %v159, %v1030
    %v1032 = vpop.f32.mrf.mxu0
    %v1033 = vadd.f32 %v155, %v1032
    %v1034 = vpop.f32.mrf.mxu0
    %v1035 = vadd.f32 %v159, %v1034
    %1036 = vmatprep.mubr.bf16.mxu0 0
    %1037 = vmatmul.mubr.bf16.gmra.mxu0 %v339
    %v1038 = vpop.f32.mrf.mxu0
    %v1039 = vadd.f32 %v155, %v1038
    %v1040 = vpop.f32.mrf.mxu0
    %v1041 = vadd.f32 %v159, %v1040
    %v1042 = vpop.f32.mrf.mxu0
    %v1043 = vadd.f32 %v155, %v1042
    %v1044 = vpop.f32.mrf.mxu0
    %v1045 = vadd.f32 %v159, %v1044
    %1046 = vdwg.mxu0
    %vm1047 = vcmp.gt.f32.partialorder %v376, 0.0
    %vm1048 = vcmp.gt.f32.partialorder %v378, 0.0
    %vm1049 = vcmp.gt.f32.partialorder %v729, 0.0
    %vm1050 = vcmp.gt.f32.partialorder %v731, 0.0
    %vm1051 = vcmp.gt.f32.partialorder %v380, 0.0
    %vm1052 = vcmp.gt.f32.partialorder %v382, 0.0
    %vm1053 = vcmp.gt.f32.partialorder %v733, 0.0
    %vm1054 = vcmp.gt.f32.partialorder %v735, 0.0
    %vm1055 = vcmp.gt.f32.partialorder %v386, 0.0
    %vm1056 = vcmp.gt.f32.partialorder %v388, 0.0
    %vm1057 = vcmp.gt.f32.partialorder %v739, 0.0
    %vm1058 = vcmp.gt.f32.partialorder %v741, 0.0
    %vm1059 = vcmp.gt.f32.partialorder %v390, 0.0
    %vm1060 = vcmp.gt.f32.partialorder %v392, 0.0
    %vm1061 = vcmp.gt.f32.partialorder %v743, 0.0
    %vm1062 = vcmp.gt.f32.partialorder %v745, 0.0
    %vm1063 = vcmp.gt.f32.partialorder %v396, 0.0
    %vm1064 = vcmp.gt.f32.partialorder %v398, 0.0
    %vm1065 = vcmp.gt.f32.partialorder %v749, 0.0
    %vm1066 = vcmp.gt.f32.partialorder %v751, 0.0
    %vm1067 = vcmp.gt.f32.partialorder %v400, 0.0
    %vm1068 = vcmp.gt.f32.partialorder %v402, 0.0
    %vm1069 = vcmp.gt.f32.partialorder %v753, 0.0
    %vm1070 = vcmp.gt.f32.partialorder %v755, 0.0
    %vm1071 = vcmp.gt.f32.partialorder %v406, 0.0
    %vm1072 = vcmp.gt.f32.partialorder %v408, 0.0
    %vm1073 = vcmp.gt.f32.partialorder %v759, 0.0
    %vm1074 = vcmp.gt.f32.partialorder %v761, 0.0
    %vm1075 = vcmp.gt.f32.partialorder %v410, 0.0
    %vm1076 = vcmp.gt.f32.partialorder %v412, 0.0
    %vm1077 = vcmp.gt.f32.partialorder %v763, 0.0
    %vm1078 = vcmp.gt.f32.partialorder %v765, 0.0
    %vm1079 = vcmp.gt.f32.partialorder %v416, 0.0
    %vm1080 = vcmp.gt.f32.partialorder %v418, 0.0
    %vm1081 = vcmp.gt.f32.partialorder %v769, 0.0
    %vm1082 = vcmp.gt.f32.partialorder %v771, 0.0
    %vm1083 = vcmp.gt.f32.partialorder %v420, 0.0
    %vm1084 = vcmp.gt.f32.partialorder %v422, 0.0
    %vm1085 = vcmp.gt.f32.partialorder %v773, 0.0
    %vm1086 = vcmp.gt.f32.partialorder %v775, 0.0
    %vm1087 = vcmp.gt.f32.partialorder %v426, 0.0
    %vm1088 = vcmp.gt.f32.partialorder %v428, 0.0
    %vm1089 = vcmp.gt.f32.partialorder %v779, 0.0
    %vm1090 = vcmp.gt.f32.partialorder %v781, 0.0
    %vm1091 = vcmp.gt.f32.partialorder %v430, 0.0
    %vm1092 = vcmp.gt.f32.partialorder %v432, 0.0
    %vm1093 = vcmp.gt.f32.partialorder %v783, 0.0
    %vm1094 = vcmp.gt.f32.partialorder %v785, 0.0
    %vm1095 = vcmp.gt.f32.partialorder %v436, 0.0
    %vm1096 = vcmp.gt.f32.partialorder %v438, 0.0
    %vm1097 = vcmp.gt.f32.partialorder %v789, 0.0
    %vm1098 = vcmp.gt.f32.partialorder %v791, 0.0
    %vm1099 = vcmp.gt.f32.partialorder %v440, 0.0
    %vm1100 = vcmp.gt.f32.partialorder %v442, 0.0
    %vm1101 = vcmp.gt.f32.partialorder %v793, 0.0
    %vm1102 = vcmp.gt.f32.partialorder %v795, 0.0
    %vm1103 = vcmp.gt.f32.partialorder %v446, 0.0
    %vm1104 = vcmp.gt.f32.partialorder %v448, 0.0
    %vm1105 = vcmp.gt.f32.partialorder %v799, 0.0
    %vm1106 = vcmp.gt.f32.partialorder %v801, 0.0
    %vm1107 = vcmp.gt.f32.partialorder %v450, 0.0
    %vm1108 = vcmp.gt.f32.partialorder %v452, 0.0
    %vm1109 = vcmp.gt.f32.partialorder %v803, 0.0
    %vm1110 = vcmp.gt.f32.partialorder %v805, 0.0
    %vm1111 = vcmp.gt.f32.partialorder %v456, 0.0
    %vm1112 = vcmp.gt.f32.partialorder %v458, 0.0
    %vm1113 = vcmp.gt.f32.partialorder %v809, 0.0
    %vm1114 = vcmp.gt.f32.partialorder %v811, 0.0
    %vm1115 = vcmp.gt.f32.partialorder %v460, 0.0
    %vm1116 = vcmp.gt.f32.partialorder %v462, 0.0
    %vm1117 = vcmp.gt.f32.partialorder %v813, 0.0
    %vm1118 = vcmp.gt.f32.partialorder %v815, 0.0
    %vm1119 = vcmp.gt.f32.partialorder %v466, 0.0
    %vm1120 = vcmp.gt.f32.partialorder %v468, 0.0
    %vm1121 = vcmp.gt.f32.partialorder %v819, 0.0
    %vm1122 = vcmp.gt.f32.partialorder %v821, 0.0
    %vm1123 = vcmp.gt.f32.partialorder %v470, 0.0
    %vm1124 = vcmp.gt.f32.partialorder %v472, 0.0
    %vm1125 = vcmp.gt.f32.partialorder %v823, 0.0
    %vm1126 = vcmp.gt.f32.partialorder %v825, 0.0
    %vm1127 = vcmp.gt.f32.partialorder %v476, 0.0
    %vm1128 = vcmp.gt.f32.partialorder %v478, 0.0
    %vm1129 = vcmp.gt.f32.partialorder %v829, 0.0
    %vm1130 = vcmp.gt.f32.partialorder %v831, 0.0
    %vm1131 = vcmp.gt.f32.partialorder %v480, 0.0
    %vm1132 = vcmp.gt.f32.partialorder %v482, 0.0
    %vm1133 = vcmp.gt.f32.partialorder %v833, 0.0
    %vm1134 = vcmp.gt.f32.partialorder %v835, 0.0
    %vm1135 = vcmp.gt.f32.partialorder %v486, 0.0
    %vm1136 = vcmp.gt.f32.partialorder %v488, 0.0
    %vm1137 = vcmp.gt.f32.partialorder %v839, 0.0
    %vm1138 = vcmp.gt.f32.partialorder %v841, 0.0
    %vm1139 = vcmp.gt.f32.partialorder %v490, 0.0
    %vm1140 = vcmp.gt.f32.partialorder %v492, 0.0
    %vm1141 = vcmp.gt.f32.partialorder %v843, 0.0
    %vm1142 = vcmp.gt.f32.partialorder %v845, 0.0
    %vm1143 = vcmp.gt.f32.partialorder %v496, 0.0
    %vm1144 = vcmp.gt.f32.partialorder %v498, 0.0
    %vm1145 = vcmp.gt.f32.partialorder %v849, 0.0
    %vm1146 = vcmp.gt.f32.partialorder %v851, 0.0
    %vm1147 = vcmp.gt.f32.partialorder %v500, 0.0
    %vm1148 = vcmp.gt.f32.partialorder %v502, 0.0
    %vm1149 = vcmp.gt.f32.partialorder %v853, 0.0
    %vm1150 = vcmp.gt.f32.partialorder %v855, 0.0
    %vm1151 = vcmp.gt.f32.partialorder %v506, 0.0
    %vm1152 = vcmp.gt.f32.partialorder %v508, 0.0
    %vm1153 = vcmp.gt.f32.partialorder %v859, 0.0
    %vm1154 = vcmp.gt.f32.partialorder %v861, 0.0
    %vm1155 = vcmp.gt.f32.partialorder %v510, 0.0
    %vm1156 = vcmp.gt.f32.partialorder %v512, 0.0
    %vm1157 = vcmp.gt.f32.partialorder %v863, 0.0
    %vm1158 = vcmp.gt.f32.partialorder %v865, 0.0
    %vm1159 = vcmp.gt.f32.partialorder %v516, 0.0
    %vm1160 = vcmp.gt.f32.partialorder %v518, 0.0
    %vm1161 = vcmp.gt.f32.partialorder %v869, 0.0
    %vm1162 = vcmp.gt.f32.partialorder %v871, 0.0
    %vm1163 = vcmp.gt.f32.partialorder %v520, 0.0
    %vm1164 = vcmp.gt.f32.partialorder %v522, 0.0
    %vm1165 = vcmp.gt.f32.partialorder %v873, 0.0
    %vm1166 = vcmp.gt.f32.partialorder %v875, 0.0
    %vm1167 = vcmp.gt.f32.partialorder %v526, 0.0
    %vm1168 = vcmp.gt.f32.partialorder %v528, 0.0
    %vm1169 = vcmp.gt.f32.partialorder %v879, 0.0
    %vm1170 = vcmp.gt.f32.partialorder %v881, 0.0
    %vm1171 = vcmp.gt.f32.partialorder %v530, 0.0
    %vm1172 = vcmp.gt.f32.partialorder %v532, 0.0
    %vm1173 = vcmp.gt.f32.partialorder %v883, 0.0
    %vm1174 = vcmp.gt.f32.partialorder %v885, 0.0
    %vm1175 = vcmp.gt.f32.partialorder %v536, 0.0
    %vm1176 = vcmp.gt.f32.partialorder %v538, 0.0
    %vm1177 = vcmp.gt.f32.partialorder %v889, 0.0
    %vm1178 = vcmp.gt.f32.partialorder %v891, 0.0
    %vm1179 = vcmp.gt.f32.partialorder %v540, 0.0
    %vm1180 = vcmp.gt.f32.partialorder %v542, 0.0
    %vm1181 = vcmp.gt.f32.partialorder %v893, 0.0
    %vm1182 = vcmp.gt.f32.partialorder %v895, 0.0
    %vm1183 = vcmp.gt.f32.partialorder %v546, 0.0
    %vm1184 = vcmp.gt.f32.partialorder %v548, 0.0
    %vm1185 = vcmp.gt.f32.partialorder %v899, 0.0
    %vm1186 = vcmp.gt.f32.partialorder %v901, 0.0
    %vm1187 = vcmp.gt.f32.partialorder %v550, 0.0
    %vm1188 = vcmp.gt.f32.partialorder %v552, 0.0
    %vm1189 = vcmp.gt.f32.partialorder %v903, 0.0
    %vm1190 = vcmp.gt.f32.partialorder %v905, 0.0
    %vm1191 = vcmp.gt.f32.partialorder %v556, 0.0
    %vm1192 = vcmp.gt.f32.partialorder %v558, 0.0
    %vm1193 = vcmp.gt.f32.partialorder %v909, 0.0
    %vm1194 = vcmp.gt.f32.partialorder %v911, 0.0
    %vm1195 = vcmp.gt.f32.partialorder %v560, 0.0
    %vm1196 = vcmp.gt.f32.partialorder %v562, 0.0
    %vm1197 = vcmp.gt.f32.partialorder %v913, 0.0
    %vm1198 = vcmp.gt.f32.partialorder %v915, 0.0
    %vm1199 = vcmp.gt.f32.partialorder %v566, 0.0
    %vm1200 = vcmp.gt.f32.partialorder %v568, 0.0
    %vm1201 = vcmp.gt.f32.partialorder %v919, 0.0
    %vm1202 = vcmp.gt.f32.partialorder %v921, 0.0
    %vm1203 = vcmp.gt.f32.partialorder %v570, 0.0
    %vm1204 = vcmp.gt.f32.partialorder %v572, 0.0
    %vm1205 = vcmp.gt.f32.partialorder %v923, 0.0
    %vm1206 = vcmp.gt.f32.partialorder %v925, 0.0
    %vm1207 = vcmp.gt.f32.partialorder %v576, 0.0
    %vm1208 = vcmp.gt.f32.partialorder %v578, 0.0
    %vm1209 = vcmp.gt.f32.partialorder %v929, 0.0
    %vm1210 = vcmp.gt.f32.partialorder %v931, 0.0
    %vm1211 = vcmp.gt.f32.partialorder %v580, 0.0
    %vm1212 = vcmp.gt.f32.partialorder %v582, 0.0
    %vm1213 = vcmp.gt.f32.partialorder %v933, 0.0
    %vm1214 = vcmp.gt.f32.partialorder %v935, 0.0
    %vm1215 = vcmp.gt.f32.partialorder %v586, 0.0
    %vm1216 = vcmp.gt.f32.partialorder %v588, 0.0
    %vm1217 = vcmp.gt.f32.partialorder %v939, 0.0
    %vm1218 = vcmp.gt.f32.partialorder %v941, 0.0
    %vm1219 = vcmp.gt.f32.partialorder %v590, 0.0
    %vm1220 = vcmp.gt.f32.partialorder %v592, 0.0
    %vm1221 = vcmp.gt.f32.partialorder %v943, 0.0
    %vm1222 = vcmp.gt.f32.partialorder %v945, 0.0
    %vm1223 = vcmp.gt.f32.partialorder %v596, 0.0
    %vm1224 = vcmp.gt.f32.partialorder %v598, 0.0
    %vm1225 = vcmp.gt.f32.partialorder %v949, 0.0
    %vm1226 = vcmp.gt.f32.partialorder %v951, 0.0
    %vm1227 = vcmp.gt.f32.partialorder %v600, 0.0
    %vm1228 = vcmp.gt.f32.partialorder %v602, 0.0
    %vm1229 = vcmp.gt.f32.partialorder %v953, 0.0
    %vm1230 = vcmp.gt.f32.partialorder %v955, 0.0
    %vm1231 = vcmp.gt.f32.partialorder %v606, 0.0
    %vm1232 = vcmp.gt.f32.partialorder %v608, 0.0
    %vm1233 = vcmp.gt.f32.partialorder %v959, 0.0
    %vm1234 = vcmp.gt.f32.partialorder %v961, 0.0
    %vm1235 = vcmp.gt.f32.partialorder %v610, 0.0
    %vm1236 = vcmp.gt.f32.partialorder %v612, 0.0
    %vm1237 = vcmp.gt.f32.partialorder %v963, 0.0
    %vm1238 = vcmp.gt.f32.partialorder %v965, 0.0
    %vm1239 = vcmp.gt.f32.partialorder %v616, 0.0
    %vm1240 = vcmp.gt.f32.partialorder %v618, 0.0
    %vm1241 = vcmp.gt.f32.partialorder %v969, 0.0
    %vm1242 = vcmp.gt.f32.partialorder %v971, 0.0
    %vm1243 = vcmp.gt.f32.partialorder %v620, 0.0
    %vm1244 = vcmp.gt.f32.partialorder %v622, 0.0
    %vm1245 = vcmp.gt.f32.partialorder %v973, 0.0
    %vm1246 = vcmp.gt.f32.partialorder %v975, 0.0
    %vm1247 = vcmp.gt.f32.partialorder %v626, 0.0
    %vm1248 = vcmp.gt.f32.partialorder %v628, 0.0
    %vm1249 = vcmp.gt.f32.partialorder %v979, 0.0
    %vm1250 = vcmp.gt.f32.partialorder %v981, 0.0
    %vm1251 = vcmp.gt.f32.partialorder %v630, 0.0
    %vm1252 = vcmp.gt.f32.partialorder %v632, 0.0
    %vm1253 = vcmp.gt.f32.partialorder %v983, 0.0
    %vm1254 = vcmp.gt.f32.partialorder %v985, 0.0
    %vm1255 = vcmp.gt.f32.partialorder %v636, 0.0
    %vm1256 = vcmp.gt.f32.partialorder %v638, 0.0
    %vm1257 = vcmp.gt.f32.partialorder %v989, 0.0
    %vm1258 = vcmp.gt.f32.partialorder %v991, 0.0
    %vm1259 = vcmp.gt.f32.partialorder %v640, 0.0
    %vm1260 = vcmp.gt.f32.partialorder %v642, 0.0
    %vm1261 = vcmp.gt.f32.partialorder %v993, 0.0
    %vm1262 = vcmp.gt.f32.partialorder %v995, 0.0
    %vm1263 = vcmp.gt.f32.partialorder %v646, 0.0
    %vm1264 = vcmp.gt.f32.partialorder %v648, 0.0
    %vm1265 = vcmp.gt.f32.partialorder %v999, 0.0
    %vm1266 = vcmp.gt.f32.partialorder %v1001, 0.0
    %vm1267 = vcmp.gt.f32.partialorder %v650, 0.0
    %vm1268 = vcmp.gt.f32.partialorder %v652, 0.0
    %vm1269 = vcmp.gt.f32.partialorder %v1003, 0.0
    %vm1270 = vcmp.gt.f32.partialorder %v1005, 0.0
    %vm1271 = vcmp.gt.f32.partialorder %v656, 0.0
    %vm1272 = vcmp.gt.f32.partialorder %v658, 0.0
    %vm1273 = vcmp.gt.f32.partialorder %v1009, 0.0
    %vm1274 = vcmp.gt.f32.partialorder %v1011, 0.0
    %vm1275 = vcmp.gt.f32.partialorder %v660, 0.0
    %vm1276 = vcmp.gt.f32.partialorder %v662, 0.0
    %vm1277 = vcmp.gt.f32.partialorder %v1013, 0.0
    %vm1278 = vcmp.gt.f32.partialorder %v1015, 0.0
    %vm1279 = vcmp.gt.f32.partialorder %v666, 0.0
    %vm1280 = vcmp.gt.f32.partialorder %v668, 0.0
    %vm1281 = vcmp.gt.f32.partialorder %v1019, 0.0
    %vm1282 = vcmp.gt.f32.partialorder %v1021, 0.0
    %vm1283 = vcmp.gt.f32.partialorder %v670, 0.0
    %vm1284 = vcmp.gt.f32.partialorder %v672, 0.0
    %vm1285 = vcmp.gt.f32.partialorder %v1023, 0.0
    %vm1286 = vcmp.gt.f32.partialorder %v1025, 0.0
    %vm1287 = vcmp.gt.f32.partialorder %v676, 0.0
    %vm1288 = vcmp.gt.f32.partialorder %v678, 0.0
    %vm1289 = vcmp.gt.f32.partialorder %v1029, 0.0
    %vm1290 = vcmp.gt.f32.partialorder %v1031, 0.0
    %vm1291 = vcmp.gt.f32.partialorder %v680, 0.0
    %vm1292 = vcmp.gt.f32.partialorder %v682, 0.0
    %vm1293 = vcmp.gt.f32.partialorder %v1033, 0.0
    %vm1294 = vcmp.gt.f32.partialorder %v1035, 0.0
    %vm1295 = vcmp.gt.f32.partialorder %v686, 0.0
    %vm1296 = vcmp.gt.f32.partialorder %v688, 0.0
    %vm1297 = vcmp.gt.f32.partialorder %v1039, 0.0
    %vm1298 = vcmp.gt.f32.partialorder %v1041, 0.0
    %vm1299 = vcmp.gt.f32.partialorder %v690, 0.0
    %vm1300 = vcmp.gt.f32.partialorder %v692, 0.0
    %vm1301 = vcmp.gt.f32.partialorder %v1043, 0.0
    %vm1302 = vcmp.gt.f32.partialorder %v1045, 0.0
    %v1303 = vmul.f32 %v376, 0.2
    %v1304 = vmul.f32 %v378, 0.2
    %v1305 = vmul.f32 %v729, 0.2
    %v1306 = vmul.f32 %v731, 0.2
    %v1307 = vmul.f32 %v380, 0.2
    %v1308 = vmul.f32 %v382, 0.2
    %v1309 = vmul.f32 %v733, 0.2
    %v1310 = vmul.f32 %v735, 0.2
    %v1311 = vmul.f32 %v386, 0.2
    %v1312 = vmul.f32 %v388, 0.2
    %v1313 = vmul.f32 %v739, 0.2
    %v1314 = vmul.f32 %v741, 0.2
    %v1315 = vmul.f32 %v390, 0.2
    %v1316 = vmul.f32 %v392, 0.2
    %v1317 = vmul.f32 %v743, 0.2
    %v1318 = vmul.f32 %v745, 0.2
    %v1319 = vmul.f32 %v396, 0.2
    %v1320 = vmul.f32 %v398, 0.2
    %v1321 = vmul.f32 %v749, 0.2
    %v1322 = vmul.f32 %v751, 0.2
    %v1323 = vmul.f32 %v400, 0.2
    %v1324 = vmul.f32 %v402, 0.2
    %v1325 = vmul.f32 %v753, 0.2
    %v1326 = vmul.f32 %v755, 0.2
    %v1327 = vmul.f32 %v406, 0.2
    %v1328 = vmul.f32 %v408, 0.2
    %v1329 = vmul.f32 %v759, 0.2
    %v1330 = vmul.f32 %v761, 0.2
    %v1331 = vmul.f32 %v410, 0.2
    %v1332 = vmul.f32 %v412, 0.2
    %v1333 = vmul.f32 %v763, 0.2
    %v1334 = vmul.f32 %v765, 0.2
    %v1335 = vmul.f32 %v416, 0.2
    %v1336 = vmul.f32 %v418, 0.2
    %v1337 = vmul.f32 %v769, 0.2
    %v1338 = vmul.f32 %v771, 0.2
    %v1339 = vmul.f32 %v420, 0.2
    %v1340 = vmul.f32 %v422, 0.2
    %v1341 = vmul.f32 %v773, 0.2
    %v1342 = vmul.f32 %v775, 0.2
    %v1343 = vmul.f32 %v426, 0.2
    %v1344 = vmul.f32 %v428, 0.2
    %v1345 = vmul.f32 %v779, 0.2
    %v1346 = vmul.f32 %v781, 0.2
    %v1347 = vmul.f32 %v430, 0.2
    %v1348 = vmul.f32 %v432, 0.2
    %v1349 = vmul.f32 %v783, 0.2
    %v1350 = vmul.f32 %v785, 0.2
    %v1351 = vmul.f32 %v436, 0.2
    %v1352 = vmul.f32 %v438, 0.2
    %v1353 = vmul.f32 %v789, 0.2
    %v1354 = vmul.f32 %v791, 0.2
    %v1355 = vmul.f32 %v440, 0.2
    %v1356 = vmul.f32 %v442, 0.2
    %v1357 = vmul.f32 %v793, 0.2
    %v1358 = vmul.f32 %v795, 0.2
    %v1359 = vmul.f32 %v446, 0.2
    %v1360 = vmul.f32 %v448, 0.2
    %v1361 = vmul.f32 %v799, 0.2
    %v1362 = vmul.f32 %v801, 0.2
    %v1363 = vmul.f32 %v450, 0.2
    %v1364 = vmul.f32 %v452, 0.2
    %v1365 = vmul.f32 %v803, 0.2
    %v1366 = vmul.f32 %v805, 0.2
    %v1367 = vmul.f32 %v456, 0.2
    %v1368 = vmul.f32 %v458, 0.2
    %v1369 = vmul.f32 %v809, 0.2
    %v1370 = vmul.f32 %v811, 0.2
    %v1371 = vmul.f32 %v460, 0.2
    %v1372 = vmul.f32 %v462, 0.2
    %v1373 = vmul.f32 %v813, 0.2
    %v1374 = vmul.f32 %v815, 0.2
    %v1375 = vmul.f32 %v466, 0.2
    %v1376 = vmul.f32 %v468, 0.2
    %v1377 = vmul.f32 %v819, 0.2
    %v1378 = vmul.f32 %v821, 0.2
    %v1379 = vmul.f32 %v470, 0.2
    %v1380 = vmul.f32 %v472, 0.2
    %v1381 = vmul.f32 %v823, 0.2
    %v1382 = vmul.f32 %v825, 0.2
    %v1383 = vmul.f32 %v476, 0.2
    %v1384 = vmul.f32 %v478, 0.2
    %v1385 = vmul.f32 %v829, 0.2
    %v1386 = vmul.f32 %v831, 0.2
    %v1387 = vmul.f32 %v480, 0.2
    %v1388 = vmul.f32 %v482, 0.2
    %v1389 = vmul.f32 %v833, 0.2
    %v1390 = vmul.f32 %v835, 0.2
    %v1391 = vmul.f32 %v486, 0.2
    %v1392 = vmul.f32 %v488, 0.2
    %v1393 = vmul.f32 %v839, 0.2
    %v1394 = vmul.f32 %v841, 0.2
    %v1395 = vmul.f32 %v490, 0.2
    %v1396 = vmul.f32 %v492, 0.2
    %v1397 = vmul.f32 %v843, 0.2
    %v1398 = vmul.f32 %v845, 0.2
    %v1399 = vmul.f32 %v496, 0.2
    %v1400 = vmul.f32 %v498, 0.2
    %v1401 = vmul.f32 %v849, 0.2
    %v1402 = vmul.f32 %v851, 0.2
    %v1403 = vmul.f32 %v500, 0.2
    %v1404 = vmul.f32 %v502, 0.2
    %v1405 = vmul.f32 %v853, 0.2
    %v1406 = vmul.f32 %v855, 0.2
    %v1407 = vmul.f32 %v506, 0.2
    %v1408 = vmul.f32 %v508, 0.2
    %v1409 = vmul.f32 %v859, 0.2
    %v1410 = vmul.f32 %v861, 0.2
    %v1411 = vmul.f32 %v510, 0.2
    %v1412 = vmul.f32 %v512, 0.2
    %v1413 = vmul.f32 %v863, 0.2
    %v1414 = vmul.f32 %v865, 0.2
    %v1415 = vmul.f32 %v516, 0.2
    %v1416 = vmul.f32 %v518, 0.2
    %v1417 = vmul.f32 %v869, 0.2
    %v1418 = vmul.f32 %v871, 0.2
    %v1419 = vmul.f32 %v520, 0.2
    %v1420 = vmul.f32 %v522, 0.2
    %v1421 = vmul.f32 %v873, 0.2
    %v1422 = vmul.f32 %v875, 0.2
    %v1423 = vmul.f32 %v526, 0.2
    %v1424 = vmul.f32 %v528, 0.2
    %v1425 = vmul.f32 %v879, 0.2
    %v1426 = vmul.f32 %v881, 0.2
    %v1427 = vmul.f32 %v530, 0.2
    %v1428 = vmul.f32 %v532, 0.2
    %v1429 = vmul.f32 %v883, 0.2
    %v1430 = vmul.f32 %v885, 0.2
    %v1431 = vmul.f32 %v536, 0.2
    %v1432 = vmul.f32 %v538, 0.2
    %v1433 = vmul.f32 %v889, 0.2
    %v1434 = vmul.f32 %v891, 0.2
    %v1435 = vmul.f32 %v540, 0.2
    %v1436 = vmul.f32 %v542, 0.2
    %v1437 = vmul.f32 %v893, 0.2
    %v1438 = vmul.f32 %v895, 0.2
    %v1439 = vmul.f32 %v546, 0.2
    %v1440 = vmul.f32 %v548, 0.2
    %v1441 = vmul.f32 %v899, 0.2
    %v1442 = vmul.f32 %v901, 0.2
    %v1443 = vmul.f32 %v550, 0.2
    %v1444 = vmul.f32 %v552, 0.2
    %v1445 = vmul.f32 %v903, 0.2
    %v1446 = vmul.f32 %v905, 0.2
    %v1447 = vmul.f32 %v556, 0.2
    %v1448 = vmul.f32 %v558, 0.2
    %v1449 = vmul.f32 %v909, 0.2
    %v1450 = vmul.f32 %v911, 0.2
    %v1451 = vmul.f32 %v560, 0.2
    %v1452 = vmul.f32 %v562, 0.2
    %v1453 = vmul.f32 %v913, 0.2
    %v1454 = vmul.f32 %v915, 0.2
    %v1455 = vmul.f32 %v566, 0.2
    %v1456 = vmul.f32 %v568, 0.2
    %v1457 = vmul.f32 %v919, 0.2
    %v1458 = vmul.f32 %v921, 0.2
    %v1459 = vmul.f32 %v570, 0.2
    %v1460 = vmul.f32 %v572, 0.2
    %v1461 = vmul.f32 %v923, 0.2
    %v1462 = vmul.f32 %v925, 0.2
    %v1463 = vmul.f32 %v576, 0.2
    %v1464 = vmul.f32 %v578, 0.2
    %v1465 = vmul.f32 %v929, 0.2
    %v1466 = vmul.f32 %v931, 0.2
    %v1467 = vmul.f32 %v580, 0.2
    %v1468 = vmul.f32 %v582, 0.2
    %v1469 = vmul.f32 %v933, 0.2
    %v1470 = vmul.f32 %v935, 0.2
    %v1471 = vmul.f32 %v586, 0.2
    %v1472 = vmul.f32 %v588, 0.2
    %v1473 = vmul.f32 %v939, 0.2
    %v1474 = vmul.f32 %v941, 0.2
    %v1475 = vmul.f32 %v590, 0.2
    %v1476 = vmul.f32 %v592, 0.2
    %v1477 = vmul.f32 %v943, 0.2
    %v1478 = vmul.f32 %v945, 0.2
    %v1479 = vmul.f32 %v596, 0.2
    %v1480 = vmul.f32 %v598, 0.2
    %v1481 = vmul.f32 %v949, 0.2
    %v1482 = vmul.f32 %v951, 0.2
    %v1483 = vmul.f32 %v600, 0.2
    %v1484 = vmul.f32 %v602, 0.2
    %v1485 = vmul.f32 %v953, 0.2
    %v1486 = vmul.f32 %v955, 0.2
    %v1487 = vmul.f32 %v606, 0.2
    %v1488 = vmul.f32 %v608, 0.2
    %v1489 = vmul.f32 %v959, 0.2
    %v1490 = vmul.f32 %v961, 0.2
    %v1491 = vmul.f32 %v610, 0.2
    %v1492 = vmul.f32 %v612, 0.2
    %v1493 = vmul.f32 %v963, 0.2
    %v1494 = vmul.f32 %v965, 0.2
    %v1495 = vmul.f32 %v616, 0.2
    %v1496 = vmul.f32 %v618, 0.2
    %v1497 = vmul.f32 %v969, 0.2
    %v1498 = vmul.f32 %v971, 0.2
    %v1499 = vmul.f32 %v620, 0.2
    %v1500 = vmul.f32 %v622, 0.2
    %v1501 = vmul.f32 %v973, 0.2
    %v1502 = vmul.f32 %v975, 0.2
    %v1503 = vmul.f32 %v626, 0.2
    %v1504 = vmul.f32 %v628, 0.2
    %v1505 = vmul.f32 %v979, 0.2
    %v1506 = vmul.f32 %v981, 0.2
    %v1507 = vmul.f32 %v630, 0.2
    %v1508 = vmul.f32 %v632, 0.2
    %v1509 = vmul.f32 %v983, 0.2
    %v1510 = vmul.f32 %v985, 0.2
    %v1511 = vmul.f32 %v636, 0.2
    %v1512 = vmul.f32 %v638, 0.2
    %v1513 = vmul.f32 %v989, 0.2
    %v1514 = vmul.f32 %v991, 0.2
    %v1515 = vmul.f32 %v640, 0.2
    %v1516 = vmul.f32 %v642, 0.2
    %v1517 = vmul.f32 %v993, 0.2
    %v1518 = vmul.f32 %v995, 0.2
    %v1519 = vmul.f32 %v646, 0.2
    %v1520 = vmul.f32 %v648, 0.2
    %v1521 = vmul.f32 %v999, 0.2
    %v1522 = vmul.f32 %v1001, 0.2
    %v1523 = vmul.f32 %v650, 0.2
    %v1524 = vmul.f32 %v652, 0.2
    %v1525 = vmul.f32 %v1003, 0.2
    %v1526 = vmul.f32 %v1005, 0.2
    %v1527 = vmul.f32 %v656, 0.2
    %v1528 = vmul.f32 %v658, 0.2
    %v1529 = vmul.f32 %v1009, 0.2
    %v1530 = vmul.f32 %v1011, 0.2
    %v1531 = vmul.f32 %v660, 0.2
    %v1532 = vmul.f32 %v662, 0.2
    %v1533 = vmul.f32 %v1013, 0.2
    %v1534 = vmul.f32 %v1015, 0.2
    %v1535 = vmul.f32 %v666, 0.2
    %v1536 = vmul.f32 %v668, 0.2
    %v1537 = vmul.f32 %v1019, 0.2
    %v1538 = vmul.f32 %v1021, 0.2
    %v1539 = vmul.f32 %v670, 0.2
    %v1540 = vmul.f32 %v672, 0.2
    %v1541 = vmul.f32 %v1023, 0.2
    %v1542 = vmul.f32 %v1025, 0.2
    %v1543 = vmul.f32 %v676, 0.2
    %v1544 = vmul.f32 %v678, 0.2
    %v1545 = vmul.f32 %v1029, 0.2
    %v1546 = vmul.f32 %v1031, 0.2
    %v1547 = vmul.f32 %v680, 0.2
    %v1548 = vmul.f32 %v682, 0.2
    %v1549 = vmul.f32 %v1033, 0.2
    %v1550 = vmul.f32 %v1035, 0.2
    %v1551 = vmul.f32 %v686, 0.2
    %v1552 = vmul.f32 %v688, 0.2
    %v1553 = vmul.f32 %v1039, 0.2
    %v1554 = vmul.f32 %v1041, 0.2
    %v1555 = vmul.f32 %v690, 0.2
    %v1556 = vmul.f32 %v692, 0.2
    %v1557 = vmul.f32 %v1043, 0.2
    %v1558 = vmul.f32 %v1045, 0.2
    %v1559 = vsel %vm1047, %v376, %v1303
    %v1560 = vsel %vm1048, %v378, %v1304
    %v1561 = vsel %vm1049, %v729, %v1305
    %v1562 = vsel %vm1050, %v731, %v1306
    %v1563 = vsel %vm1051, %v380, %v1307
    %v1564 = vsel %vm1052, %v382, %v1308
    %v1565 = vsel %vm1053, %v733, %v1309
    %v1566 = vsel %vm1054, %v735, %v1310
    %v1567 = vsel %vm1055, %v386, %v1311
    %v1568 = vsel %vm1056, %v388, %v1312
    %v1569 = vsel %vm1057, %v739, %v1313
    %v1570 = vsel %vm1058, %v741, %v1314
    %v1571 = vsel %vm1059, %v390, %v1315
    %v1572 = vsel %vm1060, %v392, %v1316
    %v1573 = vsel %vm1061, %v743, %v1317
    %v1574 = vsel %vm1062, %v745, %v1318
    %v1575 = vsel %vm1063, %v396, %v1319
    %v1576 = vsel %vm1064, %v398, %v1320
    %v1577 = vsel %vm1065, %v749, %v1321
    %v1578 = vsel %vm1066, %v751, %v1322
    %v1579 = vsel %vm1067, %v400, %v1323
    %v1580 = vsel %vm1068, %v402, %v1324
    %v1581 = vsel %vm1069, %v753, %v1325
    %v1582 = vsel %vm1070, %v755, %v1326
    %v1583 = vsel %vm1071, %v406, %v1327
    %v1584 = vsel %vm1072, %v408, %v1328
    %v1585 = vsel %vm1073, %v759, %v1329
    %v1586 = vsel %vm1074, %v761, %v1330
    %v1587 = vsel %vm1075, %v410, %v1331
    %v1588 = vsel %vm1076, %v412, %v1332
    %v1589 = vsel %vm1077, %v763, %v1333
    %v1590 = vsel %vm1078, %v765, %v1334
    %v1591 = vsel %vm1079, %v416, %v1335
    %v1592 = vsel %vm1080, %v418, %v1336
    %v1593 = vsel %vm1081, %v769, %v1337
    %v1594 = vsel %vm1082, %v771, %v1338
    %v1595 = vsel %vm1083, %v420, %v1339
    %v1596 = vsel %vm1084, %v422, %v1340
    %v1597 = vsel %vm1085, %v773, %v1341
    %v1598 = vsel %vm1086, %v775, %v1342
    %v1599 = vsel %vm1087, %v426, %v1343
    %v1600 = vsel %vm1088, %v428, %v1344
    %v1601 = vsel %vm1089, %v779, %v1345
    %v1602 = vsel %vm1090, %v781, %v1346
    %v1603 = vsel %vm1091, %v430, %v1347
    %v1604 = vsel %vm1092, %v432, %v1348
    %v1605 = vsel %vm1093, %v783, %v1349
    %v1606 = vsel %vm1094, %v785, %v1350
    %v1607 = vsel %vm1095, %v436, %v1351
    %v1608 = vsel %vm1096, %v438, %v1352
    %v1609 = vsel %vm1097, %v789, %v1353
    %v1610 = vsel %vm1098, %v791, %v1354
    %v1611 = vsel %vm1099, %v440, %v1355
    %v1612 = vsel %vm1100, %v442, %v1356
    %v1613 = vsel %vm1101, %v793, %v1357
    %v1614 = vsel %vm1102, %v795, %v1358
    %v1615 = vsel %vm1103, %v446, %v1359
    %v1616 = vsel %vm1104, %v448, %v1360
    %v1617 = vsel %vm1105, %v799, %v1361
    %v1618 = vsel %vm1106, %v801, %v1362
    %v1619 = vsel %vm1107, %v450, %v1363
    %v1620 = vsel %vm1108, %v452, %v1364
    %v1621 = vsel %vm1109, %v803, %v1365
    %v1622 = vsel %vm1110, %v805, %v1366
    %v1623 = vsel %vm1111, %v456, %v1367
    %v1624 = vsel %vm1112, %v458, %v1368
    %v1625 = vsel %vm1113, %v809, %v1369
    %v1626 = vsel %vm1114, %v811, %v1370
    %v1627 = vsel %vm1115, %v460, %v1371
    %v1628 = vsel %vm1116, %v462, %v1372
    %v1629 = vsel %vm1117, %v813, %v1373
    %v1630 = vsel %vm1118, %v815, %v1374
    %v1631 = vsel %vm1119, %v466, %v1375
    %v1632 = vsel %vm1120, %v468, %v1376
    %v1633 = vsel %vm1121, %v819, %v1377
    %v1634 = vsel %vm1122, %v821, %v1378
    %v1635 = vsel %vm1123, %v470, %v1379
    %v1636 = vsel %vm1124, %v472, %v1380
    %v1637 = vsel %vm1125, %v823, %v1381
    %v1638 = vsel %vm1126, %v825, %v1382
    %v1639 = vsel %vm1127, %v476, %v1383
    %v1640 = vsel %vm1128, %v478, %v1384
    %v1641 = vsel %vm1129, %v829, %v1385
    %v1642 = vsel %vm1130, %v831, %v1386
    %v1643 = vsel %vm1131, %v480, %v1387
    %v1644 = vsel %vm1132, %v482, %v1388
    %v1645 = vsel %vm1133, %v833, %v1389
    %v1646 = vsel %vm1134, %v835, %v1390
    %v1647 = vsel %vm1135, %v486, %v1391
    %v1648 = vsel %vm1136, %v488, %v1392
    %v1649 = vsel %vm1137, %v839, %v1393
    %v1650 = vsel %vm1138, %v841, %v1394
    %v1651 = vsel %vm1139, %v490, %v1395
    %v1652 = vsel %vm1140, %v492, %v1396
    %v1653 = vsel %vm1141, %v843, %v1397
    %v1654 = vsel %vm1142, %v845, %v1398
    %v1655 = vsel %vm1143, %v496, %v1399
    %v1656 = vsel %vm1144, %v498, %v1400
    %v1657 = vsel %vm1145, %v849, %v1401
    %v1658 = vsel %vm1146, %v851, %v1402
    %v1659 = vsel %vm1147, %v500, %v1403
    %v1660 = vsel %vm1148, %v502, %v1404
    %v1661 = vsel %vm1149, %v853, %v1405
    %v1662 = vsel %vm1150, %v855, %v1406
    %v1663 = vsel %vm1151, %v506, %v1407
    %v1664 = vsel %vm1152, %v508, %v1408
    %v1665 = vsel %vm1153, %v859, %v1409
    %v1666 = vsel %vm1154, %v861, %v1410
    %v1667 = vsel %vm1155, %v510, %v1411
    %v1668 = vsel %vm1156, %v512, %v1412
    %v1669 = vsel %vm1157, %v863, %v1413
    %v1670 = vsel %vm1158, %v865, %v1414
    %v1671 = vsel %vm1159, %v516, %v1415
    %v1672 = vsel %vm1160, %v518, %v1416
    %v1673 = vsel %vm1161, %v869, %v1417
    %v1674 = vsel %vm1162, %v871, %v1418
    %v1675 = vsel %vm1163, %v520, %v1419
    %v1676 = vsel %vm1164, %v522, %v1420
    %v1677 = vsel %vm1165, %v873, %v1421
    %v1678 = vsel %vm1166, %v875, %v1422
    %v1679 = vsel %vm1167, %v526, %v1423
    %v1680 = vsel %vm1168, %v528, %v1424
    %v1681 = vsel %vm1169, %v879, %v1425
    %v1682 = vsel %vm1170, %v881, %v1426
    %v1683 = vsel %vm1171, %v530, %v1427
    %v1684 = vsel %vm1172, %v532, %v1428
    %v1685 = vsel %vm1173, %v883, %v1429
    %v1686 = vsel %vm1174, %v885, %v1430
    %v1687 = vsel %vm1175, %v536, %v1431
    %v1688 = vsel %vm1176, %v538, %v1432
    %v1689 = vsel %vm1177, %v889, %v1433
    %v1690 = vsel %vm1178, %v891, %v1434
    %v1691 = vsel %vm1179, %v540, %v1435
    %v1692 = vsel %vm1180, %v542, %v1436
    %v1693 = vsel %vm1181, %v893, %v1437
    %v1694 = vsel %vm1182, %v895, %v1438
    %v1695 = vsel %vm1183, %v546, %v1439
    %v1696 = vsel %vm1184, %v548, %v1440
    %v1697 = vsel %vm1185, %v899, %v1441
    %v1698 = vsel %vm1186, %v901, %v1442
    %v1699 = vsel %vm1187, %v550, %v1443
    %v1700 = vsel %vm1188, %v552, %v1444
    %v1701 = vsel %vm1189, %v903, %v1445
    %v1702 = vsel %vm1190, %v905, %v1446
    %v1703 = vsel %vm1191, %v556, %v1447
    %v1704 = vsel %vm1192, %v558, %v1448
    %v1705 = vsel %vm1193, %v909, %v1449
    %v1706 = vsel %vm1194, %v911, %v1450
    %v1707 = vsel %vm1195, %v560, %v1451
    %v1708 = vsel %vm1196, %v562, %v1452
    %v1709 = vsel %vm1197, %v913, %v1453
    %v1710 = vsel %vm1198, %v915, %v1454
    %v1711 = vsel %vm1199, %v566, %v1455
    %v1712 = vsel %vm1200, %v568, %v1456
    %v1713 = vsel %vm1201, %v919, %v1457
    %v1714 = vsel %vm1202, %v921, %v1458
    %v1715 = vsel %vm1203, %v570, %v1459
    %v1716 = vsel %vm1204, %v572, %v1460
    %v1717 = vsel %vm1205, %v923, %v1461
    %v1718 = vsel %vm1206, %v925, %v1462
    %v1719 = vsel %vm1207, %v576, %v1463
    %v1720 = vsel %vm1208, %v578, %v1464
    %v1721 = vsel %vm1209, %v929, %v1465
    %v1722 = vsel %vm1210, %v931, %v1466
    %v1723 = vsel %vm1211, %v580, %v1467
    %v1724 = vsel %vm1212, %v582, %v1468
    %v1725 = vsel %vm1213, %v933, %v1469
    %v1726 = vsel %vm1214, %v935, %v1470
    %v1727 = vsel %vm1215, %v586, %v1471
    %v1728 = vsel %vm1216, %v588, %v1472
    %v1729 = vsel %vm1217, %v939, %v1473
    %v1730 = vsel %vm1218, %v941, %v1474
    %v1731 = vsel %vm1219, %v590, %v1475
    %v1732 = vsel %vm1220, %v592, %v1476
    %v1733 = vsel %vm1221, %v943, %v1477
    %v1734 = vsel %vm1222, %v945, %v1478
    %v1735 = vsel %vm1223, %v596, %v1479
    %v1736 = vsel %vm1224, %v598, %v1480
    %v1737 = vsel %vm1225, %v949, %v1481
    %v1738 = vsel %vm1226, %v951, %v1482
    %v1739 = vsel %vm1227, %v600, %v1483
    %v1740 = vsel %vm1228, %v602, %v1484
    %v1741 = vsel %vm1229, %v953, %v1485
    %v1742 = vsel %vm1230, %v955, %v1486
    %v1743 = vsel %vm1231, %v606, %v1487
    %v1744 = vsel %vm1232, %v608, %v1488
    %v1745 = vsel %vm1233, %v959, %v1489
    %v1746 = vsel %vm1234, %v961, %v1490
    %v1747 = vsel %vm1235, %v610, %v1491
    %v1748 = vsel %vm1236, %v612, %v1492
    %v1749 = vsel %vm1237, %v963, %v1493
    %v1750 = vsel %vm1238, %v965, %v1494
    %v1751 = vsel %vm1239, %v616, %v1495
    %v1752 = vsel %vm1240, %v618, %v1496
    %v1753 = vsel %vm1241, %v969, %v1497
    %v1754 = vsel %vm1242, %v971, %v1498
    %v1755 = vsel %vm1243, %v620, %v1499
    %v1756 = vsel %vm1244, %v622, %v1500
    %v1757 = vsel %vm1245, %v973, %v1501
    %v1758 = vsel %vm1246, %v975, %v1502
    %v1759 = vsel %vm1247, %v626, %v1503
    %v1760 = vsel %vm1248, %v628, %v1504
    %v1761 = vsel %vm1249, %v979, %v1505
    %v1762 = vsel %vm1250, %v981, %v1506
    %v1763 = vsel %vm1251, %v630, %v1507
    %v1764 = vsel %vm1252, %v632, %v1508
    %v1765 = vsel %vm1253, %v983, %v1509
    %v1766 = vsel %vm1254, %v985, %v1510
    %v1767 = vsel %vm1255, %v636, %v1511
    %v1768 = vsel %vm1256, %v638, %v1512
    %v1769 = vsel %vm1257, %v989, %v1513
    %v1770 = vsel %vm1258, %v991, %v1514
    %v1771 = vsel %vm1259, %v640, %v1515
    %v1772 = vsel %vm1260, %v642, %v1516
    %v1773 = vsel %vm1261, %v993, %v1517
    %v1774 = vsel %vm1262, %v995, %v1518
    %v1775 = vsel %vm1263, %v646, %v1519
    %v1776 = vsel %vm1264, %v648, %v1520
    %v1777 = vsel %vm1265, %v999, %v1521
    %v1778 = vsel %vm1266, %v1001, %v1522
    %v1779 = vsel %vm1267, %v650, %v1523
    %v1780 = vsel %vm1268, %v652, %v1524
    %v1781 = vsel %vm1269, %v1003, %v1525
    %v1782 = vsel %vm1270, %v1005, %v1526
    %v1783 = vsel %vm1271, %v656, %v1527
    %v1784 = vsel %vm1272, %v658, %v1528
    %v1785 = vsel %vm1273, %v1009, %v1529
    %v1786 = vsel %vm1274, %v1011, %v1530
    %v1787 = vsel %vm1275, %v660, %v1531
    %v1788 = vsel %vm1276, %v662, %v1532
    %v1789 = vsel %vm1277, %v1013, %v1533
    %v1790 = vsel %vm1278, %v1015, %v1534
    %v1791 = vsel %vm1279, %v666, %v1535
    %v1792 = vsel %vm1280, %v668, %v1536
    %v1793 = vsel %vm1281, %v1019, %v1537
    %v1794 = vsel %vm1282, %v1021, %v1538
    %v1795 = vsel %vm1283, %v670, %v1539
    %v1796 = vsel %vm1284, %v672, %v1540
    %v1797 = vsel %vm1285, %v1023, %v1541
    %v1798 = vsel %vm1286, %v1025, %v1542
    %v1799 = vsel %vm1287, %v676, %v1543
    %v1800 = vsel %vm1288, %v678, %v1544
    %v1801 = vsel %vm1289, %v1029, %v1545
    %v1802 = vsel %vm1290, %v1031, %v1546
    %v1803 = vsel %vm1291, %v680, %v1547
    %v1804 = vsel %vm1292, %v682, %v1548
    %v1805 = vsel %vm1293, %v1033, %v1549
    %v1806 = vsel %vm1294, %v1035, %v1550
    %v1807 = vsel %vm1295, %v686, %v1551
    %v1808 = vsel %vm1296, %v688, %v1552
    %v1809 = vsel %vm1297, %v1039, %v1553
    %v1810 = vsel %vm1298, %v1041, %v1554
    %v1811 = vsel %vm1299, %v690, %v1555
    %v1812 = vsel %vm1300, %v692, %v1556
    %v1813 = vsel %vm1301, %v1043, %v1557
    %v1814 = vsel %vm1302, %v1045, %v1558
    %v1815 = vpack.c.bf16 %v1563, %v1559
    %v1816 = vpack.c.bf16 %v1564, %v1560
    %v1817 = vpack.c.bf16 %v1565, %v1561
    %v1818 = vpack.c.bf16 %v1566, %v1562
    %v1819 = vpack.c.bf16 %v1571, %v1567
    %v1820 = vpack.c.bf16 %v1572, %v1568
    %v1821 = vpack.c.bf16 %v1573, %v1569
    %v1822 = vpack.c.bf16 %v1574, %v1570
    %v1823 = vpack.c.bf16 %v1579, %v1575
    %v1824 = vpack.c.bf16 %v1580, %v1576
    %v1825 = vpack.c.bf16 %v1581, %v1577
    %v1826 = vpack.c.bf16 %v1582, %v1578
    %v1827 = vpack.c.bf16 %v1587, %v1583
    %v1828 = vpack.c.bf16 %v1588, %v1584
    %v1829 = vpack.c.bf16 %v1589, %v1585
    %v1830 = vpack.c.bf16 %v1590, %v1586
    %v1831 = vpack.c.bf16 %v1595, %v1591
    %v1832 = vpack.c.bf16 %v1596, %v1592
    %v1833 = vpack.c.bf16 %v1597, %v1593
    %v1834 = vpack.c.bf16 %v1598, %v1594
    %v1835 = vpack.c.bf16 %v1603, %v1599
    %v1836 = vpack.c.bf16 %v1604, %v1600
    %v1837 = vpack.c.bf16 %v1605, %v1601
    %v1838 = vpack.c.bf16 %v1606, %v1602
    %v1839 = vpack.c.bf16 %v1611, %v1607
    %v1840 = vpack.c.bf16 %v1612, %v1608
    %v1841 = vpack.c.bf16 %v1613, %v1609
    %v1842 = vpack.c.bf16 %v1614, %v1610
    %v1843 = vpack.c.bf16 %v1619, %v1615
    %v1844 = vpack.c.bf16 %v1620, %v1616
    %v1845 = vpack.c.bf16 %v1621, %v1617
    %v1846 = vpack.c.bf16 %v1622, %v1618
    %v1847 = vpack.c.bf16 %v1627, %v1623
    %v1848 = vpack.c.bf16 %v1628, %v1624
    %v1849 = vpack.c.bf16 %v1629, %v1625
    %v1850 = vpack.c.bf16 %v1630, %v1626
    %v1851 = vpack.c.bf16 %v1635, %v1631
    %v1852 = vpack.c.bf16 %v1636, %v1632
    %v1853 = vpack.c.bf16 %v1637, %v1633
    %v1854 = vpack.c.bf16 %v1638, %v1634
    %v1855 = vpack.c.bf16 %v1643, %v1639
    %v1856 = vpack.c.bf16 %v1644, %v1640
    %v1857 = vpack.c.bf16 %v1645, %v1641
    %v1858 = vpack.c.bf16 %v1646, %v1642
    %v1859 = vpack.c.bf16 %v1651, %v1647
    %v1860 = vpack.c.bf16 %v1652, %v1648
    %v1861 = vpack.c.bf16 %v1653, %v1649
    %v1862 = vpack.c.bf16 %v1654, %v1650
    %v1863 = vpack.c.bf16 %v1659, %v1655
    %v1864 = vpack.c.bf16 %v1660, %v1656
    %v1865 = vpack.c.bf16 %v1661, %v1657
    %v1866 = vpack.c.bf16 %v1662, %v1658
    %v1867 = vpack.c.bf16 %v1667, %v1663
    %v1868 = vpack.c.bf16 %v1668, %v1664
    %v1869 = vpack.c.bf16 %v1669, %v1665
    %v1870 = vpack.c.bf16 %v1670, %v1666
    %v1871 = vpack.c.bf16 %v1675, %v1671
    %v1872 = vpack.c.bf16 %v1676, %v1672
    %v1873 = vpack.c.bf16 %v1677, %v1673
    %v1874 = vpack.c.bf16 %v1678, %v1674
    %v1875 = vpack.c.bf16 %v1683, %v1679
    %v1876 = vpack.c.bf16 %v1684, %v1680
    %v1877 = vpack.c.bf16 %v1685, %v1681
    %v1878 = vpack.c.bf16 %v1686, %v1682
    %v1879 = vpack.c.bf16 %v1691, %v1687
    %v1880 = vpack.c.bf16 %v1692, %v1688
    %v1881 = vpack.c.bf16 %v1693, %v1689
    %v1882 = vpack.c.bf16 %v1694, %v1690
    %v1883 = vpack.c.bf16 %v1699, %v1695
    %v1884 = vpack.c.bf16 %v1700, %v1696
    %v1885 = vpack.c.bf16 %v1701, %v1697
    %v1886 = vpack.c.bf16 %v1702, %v1698
    %v1887 = vpack.c.bf16 %v1707, %v1703
    %v1888 = vpack.c.bf16 %v1708, %v1704
    %v1889 = vpack.c.bf16 %v1709, %v1705
    %v1890 = vpack.c.bf16 %v1710, %v1706
    %v1891 = vpack.c.bf16 %v1715, %v1711
    %v1892 = vpack.c.bf16 %v1716, %v1712
    %v1893 = vpack.c.bf16 %v1717, %v1713
    %v1894 = vpack.c.bf16 %v1718, %v1714
    %v1895 = vpack.c.bf16 %v1723, %v1719
    %v1896 = vpack.c.bf16 %v1724, %v1720
    %v1897 = vpack.c.bf16 %v1725, %v1721
    %v1898 = vpack.c.bf16 %v1726, %v1722
    %v1899 = vpack.c.bf16 %v1731, %v1727
    %v1900 = vpack.c.bf16 %v1732, %v1728
    %v1901 = vpack.c.bf16 %v1733, %v1729
    %v1902 = vpack.c.bf16 %v1734, %v1730
    %v1903 = vpack.c.bf16 %v1739, %v1735
    %v1904 = vpack.c.bf16 %v1740, %v1736
    %v1905 = vpack.c.bf16 %v1741, %v1737
    %v1906 = vpack.c.bf16 %v1742, %v1738
    %v1907 = vpack.c.bf16 %v1747, %v1743
    %v1908 = vpack.c.bf16 %v1748, %v1744
    %v1909 = vpack.c.bf16 %v1749, %v1745
    %v1910 = vpack.c.bf16 %v1750, %v1746
    %v1911 = vpack.c.bf16 %v1755, %v1751
    %v1912 = vpack.c.bf16 %v1756, %v1752
    %v1913 = vpack.c.bf16 %v1757, %v1753
    %v1914 = vpack.c.bf16 %v1758, %v1754
    %v1915 = vpack.c.bf16 %v1763, %v1759
    %v1916 = vpack.c.bf16 %v1764, %v1760
    %v1917 = vpack.c.bf16 %v1765, %v1761
    %v1918 = vpack.c.bf16 %v1766, %v1762
    %v1919 = vpack.c.bf16 %v1771, %v1767
    %v1920 = vpack.c.bf16 %v1772, %v1768
    %v1921 = vpack.c.bf16 %v1773, %v1769
    %v1922 = vpack.c.bf16 %v1774, %v1770
    %v1923 = vpack.c.bf16 %v1779, %v1775
    %v1924 = vpack.c.bf16 %v1780, %v1776
    %v1925 = vpack.c.bf16 %v1781, %v1777
    %v1926 = vpack.c.bf16 %v1782, %v1778
    %v1927 = vpack.c.bf16 %v1787, %v1783
    %v1928 = vpack.c.bf16 %v1788, %v1784
    %v1929 = vpack.c.bf16 %v1789, %v1785
    %v1930 = vpack.c.bf16 %v1790, %v1786
    %v1931 = vpack.c.bf16 %v1795, %v1791
    %v1932 = vpack.c.bf16 %v1796, %v1792
    %v1933 = vpack.c.bf16 %v1797, %v1793
    %v1934 = vpack.c.bf16 %v1798, %v1794
    %v1935 = vpack.c.bf16 %v1803, %v1799
    %v1936 = vpack.c.bf16 %v1804, %v1800
    %v1937 = vpack.c.bf16 %v1805, %v1801
    %v1938 = vpack.c.bf16 %v1806, %v1802
    %v1939 = vpack.c.bf16 %v1811, %v1807
    %v1940 = vpack.c.bf16 %v1812, %v1808
    %v1941 = vpack.c.bf16 %v1813, %v1809
    %v1942 = vpack.c.bf16 %v1814, %v1810
    %v1943 = vld [vmem:[%s3] sm:$0xff]
    %v1944 = vld [vmem:[%s3 + $0x8] sm:$0xff]
    %v1945 = vld [vmem:[%s3 + $0x10] sm:$0xff]
    %v1946 = vld [vmem:[%s3 + $0x18] sm:$0xff]
    %v1947 = vld [vmem:[%s3 + $0x20] sm:$0xff]
    %v1948 = vld [vmem:[%s3 + $0x28] sm:$0xff]
    %v1949 = vld [vmem:[%s3 + $0x30] sm:$0xff]
    %v1950 = vld [vmem:[%s3 + $0x38] sm:$0xff]
    %v1951 = vld [vmem:[%s3 + $0x40] sm:$0xff]
    %v1952 = vld [vmem:[%s3 + $0x48] sm:$0xff]
    %v1953 = vld [vmem:[%s3 + $0x50] sm:$0xff]
    %v1954 = vld [vmem:[%s3 + $0x58] sm:$0xff]
    %v1955 = vld [vmem:[%s3 + $0x60] sm:$0xff]
    %v1956 = vld [vmem:[%s3 + $0x68] sm:$0xff]
    %v1957 = vld [vmem:[%s3 + $0x70] sm:$0xff]
    %v1958 = vld [vmem:[%s3 + $0x78] sm:$0xff]
    %v1959 = vld [vmem:[%s3 + $0x80] sm:$0xff]
    %v1960 = vld [vmem:[%s3 + $0x88] sm:$0xff]
    %v1961 = vld [vmem:[%s3 + $0x90] sm:$0xff]
    %v1962 = vld [vmem:[%s3 + $0x98] sm:$0xff]
    %v1963 = vld [vmem:[%s3 + $0xa0] sm:$0xff]
    %v1964 = vld [vmem:[%s3 + $0xa8] sm:$0xff]
    %v1965 = vld [vmem:[%s3 + $0xb0] sm:$0xff]
    %v1966 = vld [vmem:[%s3 + $0xb8] sm:$0xff]
    %v1967 = vld [vmem:[%s3 + $0xc0] sm:$0xff]
    %v1968 = vld [vmem:[%s3 + $0xc8] sm:$0xff]
    %v1969 = vld [vmem:[%s3 + $0xd0] sm:$0xff]
    %v1970 = vld [vmem:[%s3 + $0xd8] sm:$0xff]
    %v1971 = vld [vmem:[%s3 + $0xe0] sm:$0xff]
    %v1972 = vld [vmem:[%s3 + $0xe8] sm:$0xff]
    %v1973 = vld [vmem:[%s3 + $0xf0] sm:$0xff]
    %v1974 = vld [vmem:[%s3 + $0xf8] sm:$0xff]
    %v1975 = vld [vmem:[%s3 + $0x100] sm:$0xff]
    %v1976 = vld [vmem:[%s3 + $0x108] sm:$0xff]
    %v1977 = vld [vmem:[%s3 + $0x110] sm:$0xff]
    %v1978 = vld [vmem:[%s3 + $0x118] sm:$0xff]
    %v1979 = vld [vmem:[%s3 + $0x120] sm:$0xff]
    %v1980 = vld [vmem:[%s3 + $0x128] sm:$0xff]
    %v1981 = vld [vmem:[%s3 + $0x130] sm:$0xff]
    %v1982 = vld [vmem:[%s3 + $0x138] sm:$0xff]
    %v1983 = vld [vmem:[%s3 + $0x140] sm:$0xff]
    %v1984 = vld [vmem:[%s3 + $0x148] sm:$0xff]
    %v1985 = vld [vmem:[%s3 + $0x150] sm:$0xff]
    %v1986 = vld [vmem:[%s3 + $0x158] sm:$0xff]
    %v1987 = vld [vmem:[%s3 + $0x160] sm:$0xff]
    %v1988 = vld [vmem:[%s3 + $0x168] sm:$0xff]
    %v1989 = vld [vmem:[%s3 + $0x170] sm:$0xff]
    %v1990 = vld [vmem:[%s3 + $0x178] sm:$0xff]
    %v1991 = vld [vmem:[%s3 + $0x180] sm:$0xff]
    %v1992 = vld [vmem:[%s3 + $0x188] sm:$0xff]
    %v1993 = vld [vmem:[%s3 + $0x190] sm:$0xff]
    %v1994 = vld [vmem:[%s3 + $0x198] sm:$0xff]
    %v1995 = vld [vmem:[%s3 + $0x1a0] sm:$0xff]
    %v1996 = vld [vmem:[%s3 + $0x1a8] sm:$0xff]
    %v1997 = vld [vmem:[%s3 + $0x1b0] sm:$0xff]
    %v1998 = vld [vmem:[%s3 + $0x1b8] sm:$0xff]
    %v1999 = vld [vmem:[%s3 + $0x1c0] sm:$0xff]
    %v2000 = vld [vmem:[%s3 + $0x1c8] sm:$0xff]
    %v2001 = vld [vmem:[%s3 + $0x1d0] sm:$0xff]
    %v2002 = vld [vmem:[%s3 + $0x1d8] sm:$0xff]
    %v2003 = vld [vmem:[%s3 + $0x1e0] sm:$0xff]
    %v2004 = vld [vmem:[%s3 + $0x1e8] sm:$0xff]
    %v2005 = vld [vmem:[%s3 + $0x1f0] sm:$0xff]
    %v2006 = vld [vmem:[%s3 + $0x1f8] sm:$0xff]
    %v2007 = vld [vmem:[%s4] sm:$0x3]
    %v2009 = vlaneseq
    %v2010 = vshrl.u32 %v2009, 7
    %v2011 = vsub.s32 0, %v2010
    %v2012 = vrot.slane %v2007, %v2011
    %v2013 = vlaneseq
    %v2014 = vshrl.u32 %v2013, 7
    %v2015 = vsub.s32 1, %v2014
    %v2016 = vrot.slane %v2007, %v2015
    %v2083 = vunpack.c.l.b16 %v1943
    %v2084 = vunpack.c.h.b16 %v1943
    %v2085 = vunpack.c.l.b16 %v1944
    %v2086 = vunpack.c.h.b16 %v1944
    %v2087 = vunpack.c.l.b16 %v1945
    %v2088 = vunpack.c.h.b16 %v1945
    %v2089 = vunpack.c.l.b16 %v1946
    %v2090 = vunpack.c.h.b16 %v1946
    %v2091 = vunpack.c.l.b16 %v1947
    %v2092 = vunpack.c.h.b16 %v1947
    %v2093 = vunpack.c.l.b16 %v1948
    %v2094 = vunpack.c.h.b16 %v1948
    %v2095 = vunpack.c.l.b16 %v1949
    %v2096 = vunpack.c.h.b16 %v1949
    %v2097 = vunpack.c.l.b16 %v1950
    %v2098 = vunpack.c.h.b16 %v1950
    %v2099 = vunpack.c.l.b16 %v1951
    %v2100 = vunpack.c.h.b16 %v1951
    %v2101 = vunpack.c.l.b16 %v1952
    %v2102 = vunpack.c.h.b16 %v1952
    %v2103 = vunpack.c.l.b16 %v1953
    %v2104 = vunpack.c.h.b16 %v1953
    %v2105 = vunpack.c.l.b16 %v1954
    %v2106 = vunpack.c.h.b16 %v1954
    %v2107 = vunpack.c.l.b16 %v1955
    %v2108 = vunpack.c.h.b16 %v1955
    %v2109 = vunpack.c.l.b16 %v1956
    %v2110 = vunpack.c.h.b16 %v1956
    %v2111 = vunpack.c.l.b16 %v1957
    %v2112 = vunpack.c.h.b16 %v1957
    %v2113 = vunpack.c.l.b16 %v1958
    %v2114 = vunpack.c.h.b16 %v1958
    %v2115 = vunpack.c.l.b16 %v1959
    %v2116 = vunpack.c.h.b16 %v1959
    %v2117 = vunpack.c.l.b16 %v1960
    %v2118 = vunpack.c.h.b16 %v1960
    %v2119 = vunpack.c.l.b16 %v1961
    %v2120 = vunpack.c.h.b16 %v1961
    %v2121 = vunpack.c.l.b16 %v1962
    %v2122 = vunpack.c.h.b16 %v1962
    %v2123 = vunpack.c.l.b16 %v1963
    %v2124 = vunpack.c.h.b16 %v1963
    %v2125 = vunpack.c.l.b16 %v1964
    %v2126 = vunpack.c.h.b16 %v1964
    %v2127 = vunpack.c.l.b16 %v1965
    %v2128 = vunpack.c.h.b16 %v1965
    %v2129 = vunpack.c.l.b16 %v1966
    %v2130 = vunpack.c.h.b16 %v1966
    %v2131 = vunpack.c.l.b16 %v1967
    %v2132 = vunpack.c.h.b16 %v1967
    %v2133 = vunpack.c.l.b16 %v1968
    %v2134 = vunpack.c.h.b16 %v1968
    %v2135 = vunpack.c.l.b16 %v1969
    %v2136 = vunpack.c.h.b16 %v1969
    %v2137 = vunpack.c.l.b16 %v1970
    %v2138 = vunpack.c.h.b16 %v1970
    %v2139 = vunpack.c.l.b16 %v1971
    %v2140 = vunpack.c.h.b16 %v1971
    %v2141 = vunpack.c.l.b16 %v1972
    %v2142 = vunpack.c.h.b16 %v1972
    %v2143 = vunpack.c.l.b16 %v1973
    %v2144 = vunpack.c.h.b16 %v1973
    %v2145 = vunpack.c.l.b16 %v1974
    %v2146 = vunpack.c.h.b16 %v1974
    %v2147 = vunpack.c.l.b16 %v1975
    %v2148 = vunpack.c.h.b16 %v1975
    %v2149 = vunpack.c.l.b16 %v1976
    %v2150 = vunpack.c.h.b16 %v1976
    %v2151 = vunpack.c.l.b16 %v1977
    %v2152 = vunpack.c.h.b16 %v1977
    %v2153 = vunpack.c.l.b16 %v1978
    %v2154 = vunpack.c.h.b16 %v1978
    %v2155 = vunpack.c.l.b16 %v1979
    %v2156 = vunpack.c.h.b16 %v1979
    %v2157 = vunpack.c.l.b16 %v1980
    %v2158 = vunpack.c.h.b16 %v1980
    %v2159 = vunpack.c.l.b16 %v1981
    %v2160 = vunpack.c.h.b16 %v1981
    %v2161 = vunpack.c.l.b16 %v1982
    %v2162 = vunpack.c.h.b16 %v1982
    %v2163 = vunpack.c.l.b16 %v1983
    %v2164 = vunpack.c.h.b16 %v1983
    %v2165 = vunpack.c.l.b16 %v1984
    %v2166 = vunpack.c.h.b16 %v1984
    %v2167 = vunpack.c.l.b16 %v1985
    %v2168 = vunpack.c.h.b16 %v1985
    %v2169 = vunpack.c.l.b16 %v1986
    %v2170 = vunpack.c.h.b16 %v1986
    %v2171 = vunpack.c.l.b16 %v1987
    %v2172 = vunpack.c.h.b16 %v1987
    %v2173 = vunpack.c.l.b16 %v1988
    %v2174 = vunpack.c.h.b16 %v1988
    %v2175 = vunpack.c.l.b16 %v1989
    %v2176 = vunpack.c.h.b16 %v1989
    %v2177 = vunpack.c.l.b16 %v1990
    %v2178 = vunpack.c.h.b16 %v1990
    %v2179 = vunpack.c.l.b16 %v1991
    %v2180 = vunpack.c.h.b16 %v1991
    %v2181 = vunpack.c.l.b16 %v1992
    %v2182 = vunpack.c.h.b16 %v1992
    %v2183 = vunpack.c.l.b16 %v1993
    %v2184 = vunpack.c.h.b16 %v1993
    %v2185 = vunpack.c.l.b16 %v1994
    %v2186 = vunpack.c.h.b16 %v1994
    %v2187 = vunpack.c.l.b16 %v1995
    %v2188 = vunpack.c.h.b16 %v1995
    %v2189 = vunpack.c.l.b16 %v1996
    %v2190 = vunpack.c.h.b16 %v1996
    %v2191 = vunpack.c.l.b16 %v1997
    %v2192 = vunpack.c.h.b16 %v1997
    %v2193 = vunpack.c.l.b16 %v1998
    %v2194 = vunpack.c.h.b16 %v1998
    %v2195 = vunpack.c.l.b16 %v1999
    %v2196 = vunpack.c.h.b16 %v1999
    %v2197 = vunpack.c.l.b16 %v2000
    %v2198 = vunpack.c.h.b16 %v2000
    %v2199 = vunpack.c.l.b16 %v2001
    %v2200 = vunpack.c.h.b16 %v2001
    %v2201 = vunpack.c.l.b16 %v2002
    %v2202 = vunpack.c.h.b16 %v2002
    %v2203 = vunpack.c.l.b16 %v2003
    %v2204 = vunpack.c.h.b16 %v2003
    %v2205 = vunpack.c.l.b16 %v2004
    %v2206 = vunpack.c.h.b16 %v2004
    %v2207 = vunpack.c.l.b16 %v2005
    %v2208 = vunpack.c.h.b16 %v2005
    %v2209 = vunpack.c.l.b16 %v2006
    %v2210 = vunpack.c.h.b16 %v2006
    %v2211 = vpack.c.b16 %v2085, %v2083
    %v2212 = vpack.c.b16 %v2086, %v2084
    %v2213 = vpack.c.b16 %v2089, %v2087
    %v2214 = vpack.c.b16 %v2090, %v2088
    %v2215 = vpack.c.b16 %v2093, %v2091
    %v2216 = vpack.c.b16 %v2094, %v2092
    %v2217 = vpack.c.b16 %v2097, %v2095
    %v2218 = vpack.c.b16 %v2098, %v2096
    %v2219 = vpack.c.b16 %v2101, %v2099
    %v2220 = vpack.c.b16 %v2102, %v2100
    %v2221 = vpack.c.b16 %v2105, %v2103
    %v2222 = vpack.c.b16 %v2106, %v2104
    %v2223 = vpack.c.b16 %v2109, %v2107
    %v2224 = vpack.c.b16 %v2110, %v2108
    %v2225 = vpack.c.b16 %v2113, %v2111
    %v2226 = vpack.c.b16 %v2114, %v2112
    %v2227 = vpack.c.b16 %v2117, %v2115
    %v2228 = vpack.c.b16 %v2118, %v2116
    %v2229 = vpack.c.b16 %v2121, %v2119
    %v2230 = vpack.c.b16 %v2122, %v2120
    %v2231 = vpack.c.b16 %v2125, %v2123
    %v2232 = vpack.c.b16 %v2126, %v2124
    %v2233 = vpack.c.b16 %v2129, %v2127
    %v2234 = vpack.c.b16 %v2130, %v2128
    %v2235 = vpack.c.b16 %v2133, %v2131
    %v2236 = vpack.c.b16 %v2134, %v2132
    %v2237 = vpack.c.b16 %v2137, %v2135
    %v2238 = vpack.c.b16 %v2138, %v2136
    %v2239 = vpack.c.b16 %v2141, %v2139
    %v2240 = vpack.c.b16 %v2142, %v2140
    %v2241 = vpack.c.b16 %v2145, %v2143
    %v2242 = vpack.c.b16 %v2146, %v2144
    %v2243 = vpack.c.b16 %v2149, %v2147
    %v2244 = vpack.c.b16 %v2150, %v2148
    %v2245 = vpack.c.b16 %v2153, %v2151
    %v2246 = vpack.c.b16 %v2154, %v2152
    %v2247 = vpack.c.b16 %v2157, %v2155
    %v2248 = vpack.c.b16 %v2158, %v2156
    %v2249 = vpack.c.b16 %v2161, %v2159
    %v2250 = vpack.c.b16 %v2162, %v2160
    %v2251 = vpack.c.b16 %v2165, %v2163
    %v2252 = vpack.c.b16 %v2166, %v2164
    %v2253 = vpack.c.b16 %v2169, %v2167
    %v2254 = vpack.c.b16 %v2170, %v2168
    %v2255 = vpack.c.b16 %v2173, %v2171
    %v2256 = vpack.c.b16 %v2174, %v2172
    %v2257 = vpack.c.b16 %v2177, %v2175
    %v2258 = vpack.c.b16 %v2178, %v2176
    %v2259 = vpack.c.b16 %v2181, %v2179
    %v2260 = vpack.c.b16 %v2182, %v2180
    %v2261 = vpack.c.b16 %v2185, %v2183
    %v2262 = vpack.c.b16 %v2186, %v2184
    %v2263 = vpack.c.b16 %v2189, %v2187
    %v2264 = vpack.c.b16 %v2190, %v2188
    %v2265 = vpack.c.b16 %v2193, %v2191
    %v2266 = vpack.c.b16 %v2194, %v2192
    %v2267 = vpack.c.b16 %v2197, %v2195
    %v2268 = vpack.c.b16 %v2198, %v2196
    %v2269 = vpack.c.b16 %v2201, %v2199
    %v2270 = vpack.c.b16 %v2202, %v2200
    %v2271 = vpack.c.b16 %v2205, %v2203
    %v2272 = vpack.c.b16 %v2206, %v2204
    %v2273 = vpack.c.b16 %v2209, %v2207
    %v2274 = vpack.c.b16 %v2210, %v2208
    %2339 = vmatprep.subr.bf16.mxu0 %v2226
    %2340 = vmatpush1.bf16.msra.mxu0 %v2225
    %2341 = vmatprep.subr.bf16.mxu0 %v2224
    %2342 = vmatpush1.bf16.msra.mxu0 %v2223
    %2343 = vmatprep.subr.bf16.mxu0 %v2222
    %2344 = vmatpush1.bf16.msra.mxu0 %v2221
    %2345 = vmatprep.subr.bf16.mxu0 %v2220
    %2346 = vmatpush1.bf16.msra.mxu0 %v2219
    %2347 = vmatprep.subr.bf16.mxu0 %v2218
    %2348 = vmatpush1.bf16.msra.mxu0 %v2217
    %2349 = vmatprep.subr.bf16.mxu0 %v2216
    %2350 = vmatpush1.bf16.msra.mxu0 %v2215
    %2351 = vmatprep.subr.bf16.mxu0 %v2214
    %2352 = vmatpush1.bf16.msra.mxu0 %v2213
    %2353 = vmatprep.subr.bf16.mxu0 %v2212
    %2354 = vmatpush1.bf16.msra.mxu0 %v2211
    %2355 = vmatprep.subr.bf16.mxu0 %v2242
    %2356 = vmatpush2.bf16.msra.mxu0 %v2241
    %2357 = vmatprep.subr.bf16.mxu0 %v2240
    %2358 = vmatpush2.bf16.msra.mxu0 %v2239
    %2359 = vmatprep.subr.bf16.mxu0 %v2238
    %2360 = vmatpush2.bf16.msra.mxu0 %v2237
    %2361 = vmatprep.subr.bf16.mxu0 %v2236
    %2362 = vmatpush2.bf16.msra.mxu0 %v2235
    %2363 = vmatprep.subr.bf16.mxu0 %v2234
    %2364 = vmatpush2.bf16.msra.mxu0 %v2233
    %2365 = vmatprep.subr.bf16.mxu0 %v2232
    %2366 = vmatpush2.bf16.msra.mxu0 %v2231
    %2367 = vmatprep.subr.bf16.mxu0 %v2230
    %2368 = vmatpush2.bf16.msra.mxu0 %v2229
    %2369 = vmatprep.subr.bf16.mxu0 %v2228
    %2370 = vmatpush2.bf16.msra.mxu0 %v2227
    %2371 = vmatprep.mubr.bf16.mxu0 %v1816
    %2372 = vmatmul.mubr.bf16.gmra.mxu0 %v1815
    %v2373 = vpop.f32.mrf.mxu0
    %v2374 = vadd.f32 %v2012, %v2373
    %v2375 = vpop.f32.mrf.mxu0
    %v2376 = vadd.f32 %v2016, %v2375
    %v2377 = vpop.f32.mrf.mxu0
    %v2378 = vadd.f32 %v2012, %v2377
    %v2379 = vpop.f32.mrf.mxu0
    %v2380 = vadd.f32 %v2016, %v2379
    %2381 = vmatprep.mubr.bf16.mxu0 %v1820
    %2382 = vmatmul.mubr.bf16.gmra.mxu0 %v1819
    %v2383 = vpop.f32.mrf.mxu0
    %v2384 = vadd.f32 %v2012, %v2383
    %v2385 = vpop.f32.mrf.mxu0
    %v2386 = vadd.f32 %v2016, %v2385
    %v2387 = vpop.f32.mrf.mxu0
    %v2388 = vadd.f32 %v2012, %v2387
    %v2389 = vpop.f32.mrf.mxu0
    %v2390 = vadd.f32 %v2016, %v2389
    %2391 = vmatprep.mubr.bf16.mxu0 %v1824
    %2392 = vmatmul.mubr.bf16.gmra.mxu0 %v1823
    %v2393 = vpop.f32.mrf.mxu0
    %v2394 = vadd.f32 %v2012, %v2393
    %v2395 = vpop.f32.mrf.mxu0
    %v2396 = vadd.f32 %v2016, %v2395
    %v2397 = vpop.f32.mrf.mxu0
    %v2398 = vadd.f32 %v2012, %v2397
    %v2399 = vpop.f32.mrf.mxu0
    %v2400 = vadd.f32 %v2016, %v2399
    %2401 = vmatprep.mubr.bf16.mxu0 %v1828
    %2402 = vmatmul.mubr.bf16.gmra.mxu0 %v1827
    %v2403 = vpop.f32.mrf.mxu0
    %v2404 = vadd.f32 %v2012, %v2403
    %v2405 = vpop.f32.mrf.mxu0
    %v2406 = vadd.f32 %v2016, %v2405
    %v2407 = vpop.f32.mrf.mxu0
    %v2408 = vadd.f32 %v2012, %v2407
    %v2409 = vpop.f32.mrf.mxu0
    %v2410 = vadd.f32 %v2016, %v2409
    %2411 = vmatprep.mubr.bf16.mxu0 %v1832
    %2412 = vmatmul.mubr.bf16.gmra.mxu0 %v1831
    %v2413 = vpop.f32.mrf.mxu0
    %v2414 = vadd.f32 %v2012, %v2413
    %v2415 = vpop.f32.mrf.mxu0
    %v2416 = vadd.f32 %v2016, %v2415
    %v2417 = vpop.f32.mrf.mxu0
    %v2418 = vadd.f32 %v2012, %v2417
    %v2419 = vpop.f32.mrf.mxu0
    %v2420 = vadd.f32 %v2016, %v2419
    %2421 = vmatprep.mubr.bf16.mxu0 %v1836
    %2422 = vmatmul.mubr.bf16.gmra.mxu0 %v1835
    %v2423 = vpop.f32.mrf.mxu0
    %v2424 = vadd.f32 %v2012, %v2423
    %v2425 = vpop.f32.mrf.mxu0
    %v2426 = vadd.f32 %v2016, %v2425
    %v2427 = vpop.f32.mrf.mxu0
    %v2428 = vadd.f32 %v2012, %v2427
    %v2429 = vpop.f32.mrf.mxu0
    %v2430 = vadd.f32 %v2016, %v2429
    %2431 = vmatprep.mubr.bf16.mxu0 %v1840
    %2432 = vmatmul.mubr.bf16.gmra.mxu0 %v1839
    %v2433 = vpop.f32.mrf.mxu0
    %v2434 = vadd.f32 %v2012, %v2433
    %v2435 = vpop.f32.mrf.mxu0
    %v2436 = vadd.f32 %v2016, %v2435
    %v2437 = vpop.f32.mrf.mxu0
    %v2438 = vadd.f32 %v2012, %v2437
    %v2439 = vpop.f32.mrf.mxu0
    %v2440 = vadd.f32 %v2016, %v2439
    %2441 = vmatprep.mubr.bf16.mxu0 %v1844
    %2442 = vmatmul.mubr.bf16.gmra.mxu0 %v1843
    %v2443 = vpop.f32.mrf.mxu0
    %v2444 = vadd.f32 %v2012, %v2443
    %v2445 = vpop.f32.mrf.mxu0
    %v2446 = vadd.f32 %v2016, %v2445
    %v2447 = vpop.f32.mrf.mxu0
    %v2448 = vadd.f32 %v2012, %v2447
    %v2449 = vpop.f32.mrf.mxu0
    %v2450 = vadd.f32 %v2016, %v2449
    %2451 = vmatprep.mubr.bf16.mxu0 %v1848
    %2452 = vmatmul.mubr.bf16.gmra.mxu0 %v1847
    %v2453 = vpop.f32.mrf.mxu0
    %v2454 = vadd.f32 %v2012, %v2453
    %v2455 = vpop.f32.mrf.mxu0
    %v2456 = vadd.f32 %v2016, %v2455
    %v2457 = vpop.f32.mrf.mxu0
    %v2458 = vadd.f32 %v2012, %v2457
    %v2459 = vpop.f32.mrf.mxu0
    %v2460 = vadd.f32 %v2016, %v2459
    %2461 = vmatprep.mubr.bf16.mxu0 %v1852
    %2462 = vmatmul.mubr.bf16.gmra.mxu0 %v1851
    %v2463 = vpop.f32.mrf.mxu0
    %v2464 = vadd.f32 %v2012, %v2463
    %v2465 = vpop.f32.mrf.mxu0
    %v2466 = vadd.f32 %v2016, %v2465
    %v2467 = vpop.f32.mrf.mxu0
    %v2468 = vadd.f32 %v2012, %v2467
    %v2469 = vpop.f32.mrf.mxu0
    %v2470 = vadd.f32 %v2016, %v2469
    %2471 = vmatprep.mubr.bf16.mxu0 %v1856
    %2472 = vmatmul.mubr.bf16.gmra.mxu0 %v1855
    %v2473 = vpop.f32.mrf.mxu0
    %v2474 = vadd.f32 %v2012, %v2473
    %v2475 = vpop.f32.mrf.mxu0
    %v2476 = vadd.f32 %v2016, %v2475
    %v2477 = vpop.f32.mrf.mxu0
    %v2478 = vadd.f32 %v2012, %v2477
    %v2479 = vpop.f32.mrf.mxu0
    %v2480 = vadd.f32 %v2016, %v2479
    %2481 = vmatprep.mubr.bf16.mxu0 %v1860
    %2482 = vmatmul.mubr.bf16.gmra.mxu0 %v1859
    %v2483 = vpop.f32.mrf.mxu0
    %v2484 = vadd.f32 %v2012, %v2483
    %v2485 = vpop.f32.mrf.mxu0
    %v2486 = vadd.f32 %v2016, %v2485
    %v2487 = vpop.f32.mrf.mxu0
    %v2488 = vadd.f32 %v2012, %v2487
    %v2489 = vpop.f32.mrf.mxu0
    %v2490 = vadd.f32 %v2016, %v2489
    %2491 = vmatprep.mubr.bf16.mxu0 %v1864
    %2492 = vmatmul.mubr.bf16.gmra.mxu0 %v1863
    %v2493 = vpop.f32.mrf.mxu0
    %v2494 = vadd.f32 %v2012, %v2493
    %v2495 = vpop.f32.mrf.mxu0
    %v2496 = vadd.f32 %v2016, %v2495
    %v2497 = vpop.f32.mrf.mxu0
    %v2498 = vadd.f32 %v2012, %v2497
    %v2499 = vpop.f32.mrf.mxu0
    %v2500 = vadd.f32 %v2016, %v2499
    %2501 = vmatprep.mubr.bf16.mxu0 %v1868
    %2502 = vmatmul.mubr.bf16.gmra.mxu0 %v1867
    %v2503 = vpop.f32.mrf.mxu0
    %v2504 = vadd.f32 %v2012, %v2503
    %v2505 = vpop.f32.mrf.mxu0
    %v2506 = vadd.f32 %v2016, %v2505
    %v2507 = vpop.f32.mrf.mxu0
    %v2508 = vadd.f32 %v2012, %v2507
    %v2509 = vpop.f32.mrf.mxu0
    %v2510 = vadd.f32 %v2016, %v2509
    %2511 = vmatprep.mubr.bf16.mxu0 %v1872
    %2512 = vmatmul.mubr.bf16.gmra.mxu0 %v1871
    %v2513 = vpop.f32.mrf.mxu0
    %v2514 = vadd.f32 %v2012, %v2513
    %v2515 = vpop.f32.mrf.mxu0
    %v2516 = vadd.f32 %v2016, %v2515
    %v2517 = vpop.f32.mrf.mxu0
    %v2518 = vadd.f32 %v2012, %v2517
    %v2519 = vpop.f32.mrf.mxu0
    %v2520 = vadd.f32 %v2016, %v2519
    %2521 = vmatprep.mubr.bf16.mxu0 %v1876
    %2522 = vmatmul.mubr.bf16.gmra.mxu0 %v1875
    %v2523 = vpop.f32.mrf.mxu0
    %v2524 = vadd.f32 %v2012, %v2523
    %v2525 = vpop.f32.mrf.mxu0
    %v2526 = vadd.f32 %v2016, %v2525
    %v2527 = vpop.f32.mrf.mxu0
    %v2528 = vadd.f32 %v2012, %v2527
    %v2529 = vpop.f32.mrf.mxu0
    %v2530 = vadd.f32 %v2016, %v2529
    %2531 = vmatprep.mubr.bf16.mxu0 %v1880
    %2532 = vmatmul.mubr.bf16.gmra.mxu0 %v1879
    %v2533 = vpop.f32.mrf.mxu0
    %v2534 = vadd.f32 %v2012, %v2533
    %v2535 = vpop.f32.mrf.mxu0
    %v2536 = vadd.f32 %v2016, %v2535
    %v2537 = vpop.f32.mrf.mxu0
    %v2538 = vadd.f32 %v2012, %v2537
    %v2539 = vpop.f32.mrf.mxu0
    %v2540 = vadd.f32 %v2016, %v2539
    %2541 = vmatprep.mubr.bf16.mxu0 %v1884
    %2542 = vmatmul.mubr.bf16.gmra.mxu0 %v1883
    %v2543 = vpop.f32.mrf.mxu0
    %v2544 = vadd.f32 %v2012, %v2543
    %v2545 = vpop.f32.mrf.mxu0
    %v2546 = vadd.f32 %v2016, %v2545
    %v2547 = vpop.f32.mrf.mxu0
    %v2548 = vadd.f32 %v2012, %v2547
    %v2549 = vpop.f32.mrf.mxu0
    %v2550 = vadd.f32 %v2016, %v2549
    %2551 = vmatprep.mubr.bf16.mxu0 %v1888
    %2552 = vmatmul.mubr.bf16.gmra.mxu0 %v1887
    %v2553 = vpop.f32.mrf.mxu0
    %v2554 = vadd.f32 %v2012, %v2553
    %v2555 = vpop.f32.mrf.mxu0
    %v2556 = vadd.f32 %v2016, %v2555
    %v2557 = vpop.f32.mrf.mxu0
    %v2558 = vadd.f32 %v2012, %v2557
    %v2559 = vpop.f32.mrf.mxu0
    %v2560 = vadd.f32 %v2016, %v2559
    %2561 = vmatprep.mubr.bf16.mxu0 %v1892
    %2562 = vmatmul.mubr.bf16.gmra.mxu0 %v1891
    %v2563 = vpop.f32.mrf.mxu0
    %v2564 = vadd.f32 %v2012, %v2563
    %v2565 = vpop.f32.mrf.mxu0
    %v2566 = vadd.f32 %v2016, %v2565
    %v2567 = vpop.f32.mrf.mxu0
    %v2568 = vadd.f32 %v2012, %v2567
    %v2569 = vpop.f32.mrf.mxu0
    %v2570 = vadd.f32 %v2016, %v2569
    %2571 = vmatprep.mubr.bf16.mxu0 %v1896
    %2572 = vmatmul.mubr.bf16.gmra.mxu0 %v1895
    %v2573 = vpop.f32.mrf.mxu0
    %v2574 = vadd.f32 %v2012, %v2573
    %v2575 = vpop.f32.mrf.mxu0
    %v2576 = vadd.f32 %v2016, %v2575
    %v2577 = vpop.f32.mrf.mxu0
    %v2578 = vadd.f32 %v2012, %v2577
    %v2579 = vpop.f32.mrf.mxu0
    %v2580 = vadd.f32 %v2016, %v2579
    %2581 = vmatprep.mubr.bf16.mxu0 %v1900
    %2582 = vmatmul.mubr.bf16.gmra.mxu0 %v1899
    %v2583 = vpop.f32.mrf.mxu0
    %v2584 = vadd.f32 %v2012, %v2583
    %v2585 = vpop.f32.mrf.mxu0
    %v2586 = vadd.f32 %v2016, %v2585
    %v2587 = vpop.f32.mrf.mxu0
    %v2588 = vadd.f32 %v2012, %v2587
    %v2589 = vpop.f32.mrf.mxu0
    %v2590 = vadd.f32 %v2016, %v2589
    %2591 = vmatprep.mubr.bf16.mxu0 %v1904
    %2592 = vmatmul.mubr.bf16.gmra.mxu0 %v1903
    %v2593 = vpop.f32.mrf.mxu0
    %v2594 = vadd.f32 %v2012, %v2593
    %v2595 = vpop.f32.mrf.mxu0
    %v2596 = vadd.f32 %v2016, %v2595
    %v2597 = vpop.f32.mrf.mxu0
    %v2598 = vadd.f32 %v2012, %v2597
    %v2599 = vpop.f32.mrf.mxu0
    %v2600 = vadd.f32 %v2016, %v2599
    %2601 = vmatprep.mubr.bf16.mxu0 %v1908
    %2602 = vmatmul.mubr.bf16.gmra.mxu0 %v1907
    %v2603 = vpop.f32.mrf.mxu0
    %v2604 = vadd.f32 %v2012, %v2603
    %v2605 = vpop.f32.mrf.mxu0
    %v2606 = vadd.f32 %v2016, %v2605
    %v2607 = vpop.f32.mrf.mxu0
    %v2608 = vadd.f32 %v2012, %v2607
    %v2609 = vpop.f32.mrf.mxu0
    %v2610 = vadd.f32 %v2016, %v2609
    %2611 = vmatprep.mubr.bf16.mxu0 %v1912
    %2612 = vmatmul.mubr.bf16.gmra.mxu0 %v1911
    %v2613 = vpop.f32.mrf.mxu0
    %v2614 = vadd.f32 %v2012, %v2613
    %v2615 = vpop.f32.mrf.mxu0
    %v2616 = vadd.f32 %v2016, %v2615
    %v2617 = vpop.f32.mrf.mxu0
    %v2618 = vadd.f32 %v2012, %v2617
    %v2619 = vpop.f32.mrf.mxu0
    %v2620 = vadd.f32 %v2016, %v2619
    %2621 = vmatprep.mubr.bf16.mxu0 %v1916
    %2622 = vmatmul.mubr.bf16.gmra.mxu0 %v1915
    %v2623 = vpop.f32.mrf.mxu0
    %v2624 = vadd.f32 %v2012, %v2623
    %v2625 = vpop.f32.mrf.mxu0
    %v2626 = vadd.f32 %v2016, %v2625
    %v2627 = vpop.f32.mrf.mxu0
    %v2628 = vadd.f32 %v2012, %v2627
    %v2629 = vpop.f32.mrf.mxu0
    %v2630 = vadd.f32 %v2016, %v2629
    %2631 = vmatprep.mubr.bf16.mxu0 %v1920
    %2632 = vmatmul.mubr.bf16.gmra.mxu0 %v1919
    %v2633 = vpop.f32.mrf.mxu0
    %v2634 = vadd.f32 %v2012, %v2633
    %v2635 = vpop.f32.mrf.mxu0
    %v2636 = vadd.f32 %v2016, %v2635
    %v2637 = vpop.f32.mrf.mxu0
    %v2638 = vadd.f32 %v2012, %v2637
    %v2639 = vpop.f32.mrf.mxu0
    %v2640 = vadd.f32 %v2016, %v2639
    %2641 = vmatprep.mubr.bf16.mxu0 %v1924
    %2642 = vmatmul.mubr.bf16.gmra.mxu0 %v1923
    %v2643 = vpop.f32.mrf.mxu0
    %v2644 = vadd.f32 %v2012, %v2643
    %v2645 = vpop.f32.mrf.mxu0
    %v2646 = vadd.f32 %v2016, %v2645
    %v2647 = vpop.f32.mrf.mxu0
    %v2648 = vadd.f32 %v2012, %v2647
    %v2649 = vpop.f32.mrf.mxu0
    %v2650 = vadd.f32 %v2016, %v2649
    %2651 = vmatprep.mubr.bf16.mxu0 %v1928
    %2652 = vmatmul.mubr.bf16.gmra.mxu0 %v1927
    %v2653 = vpop.f32.mrf.mxu0
    %v2654 = vadd.f32 %v2012, %v2653
    %v2655 = vpop.f32.mrf.mxu0
    %v2656 = vadd.f32 %v2016, %v2655
    %v2657 = vpop.f32.mrf.mxu0
    %v2658 = vadd.f32 %v2012, %v2657
    %v2659 = vpop.f32.mrf.mxu0
    %v2660 = vadd.f32 %v2016, %v2659
    %2661 = vmatprep.mubr.bf16.mxu0 %v1932
    %2662 = vmatmul.mubr.bf16.gmra.mxu0 %v1931
    %v2663 = vpop.f32.mrf.mxu0
    %v2664 = vadd.f32 %v2012, %v2663
    %v2665 = vpop.f32.mrf.mxu0
    %v2666 = vadd.f32 %v2016, %v2665
    %v2667 = vpop.f32.mrf.mxu0
    %v2668 = vadd.f32 %v2012, %v2667
    %v2669 = vpop.f32.mrf.mxu0
    %v2670 = vadd.f32 %v2016, %v2669
    %2671 = vmatprep.mubr.bf16.mxu0 %v1936
    %2672 = vmatmul.mubr.bf16.gmra.mxu0 %v1935
    %v2673 = vpop.f32.mrf.mxu0
    %v2674 = vadd.f32 %v2012, %v2673
    %v2675 = vpop.f32.mrf.mxu0
    %v2676 = vadd.f32 %v2016, %v2675
    %v2677 = vpop.f32.mrf.mxu0
    %v2678 = vadd.f32 %v2012, %v2677
    %v2679 = vpop.f32.mrf.mxu0
    %v2680 = vadd.f32 %v2016, %v2679
    %2681 = vmatprep.mubr.bf16.mxu0 %v1940
    %2682 = vmatmul.mubr.bf16.gmra.mxu0 %v1939
    %v2683 = vpop.f32.mrf.mxu0
    %v2684 = vadd.f32 %v2012, %v2683
    %v2685 = vpop.f32.mrf.mxu0
    %v2686 = vadd.f32 %v2016, %v2685
    %v2687 = vpop.f32.mrf.mxu0
    %v2688 = vadd.f32 %v2012, %v2687
    %v2689 = vpop.f32.mrf.mxu0
    %v2690 = vadd.f32 %v2016, %v2689
    %2691 = vdwg.mxu0
    %2692 = vmatprep.subr.bf16.mxu0 %v2258
    %2693 = vmatpush1.bf16.msra.mxu0 %v2257
    %2694 = vmatprep.subr.bf16.mxu0 %v2256
    %2695 = vmatpush1.bf16.msra.mxu0 %v2255
    %2696 = vmatprep.subr.bf16.mxu0 %v2254
    %2697 = vmatpush1.bf16.msra.mxu0 %v2253
    %2698 = vmatprep.subr.bf16.mxu0 %v2252
    %2699 = vmatpush1.bf16.msra.mxu0 %v2251
    %2700 = vmatprep.subr.bf16.mxu0 %v2250
    %2701 = vmatpush1.bf16.msra.mxu0 %v2249
    %2702 = vmatprep.subr.bf16.mxu0 %v2248
    %2703 = vmatpush1.bf16.msra.mxu0 %v2247
    %2704 = vmatprep.subr.bf16.mxu0 %v2246
    %2705 = vmatpush1.bf16.msra.mxu0 %v2245
    %2706 = vmatprep.subr.bf16.mxu0 %v2244
    %2707 = vmatpush1.bf16.msra.mxu0 %v2243
    %2708 = vmatprep.subr.bf16.mxu0 %v2274
    %2709 = vmatpush2.bf16.msra.mxu0 %v2273
    %2710 = vmatprep.subr.bf16.mxu0 %v2272
    %2711 = vmatpush2.bf16.msra.mxu0 %v2271
    %2712 = vmatprep.subr.bf16.mxu0 %v2270
    %2713 = vmatpush2.bf16.msra.mxu0 %v2269
    %2714 = vmatprep.subr.bf16.mxu0 %v2268
    %2715 = vmatpush2.bf16.msra.mxu0 %v2267
    %2716 = vmatprep.subr.bf16.mxu0 %v2266
    %2717 = vmatpush2.bf16.msra.mxu0 %v2265
    %2718 = vmatprep.subr.bf16.mxu0 %v2264
    %2719 = vmatpush2.bf16.msra.mxu0 %v2263
    %2720 = vmatprep.subr.bf16.mxu0 %v2262
    %2721 = vmatpush2.bf16.msra.mxu0 %v2261
    %2722 = vmatprep.subr.bf16.mxu0 %v2260
    %2723 = vmatpush2.bf16.msra.mxu0 %v2259
    %2724 = vmatprep.mubr.bf16.mxu0 %v1818
    %2725 = vmatmul.mubr.bf16.gmra.mxu0 %v1817
    %v2726 = vpop.f32.mrf.mxu0
    %v2727 = vadd.f32 %v2374, %v2726
    %v2728 = vpop.f32.mrf.mxu0
    %v2729 = vadd.f32 %v2376, %v2728
    %v2730 = vpop.f32.mrf.mxu0
    %v2731 = vadd.f32 %v2378, %v2730
    %v2732 = vpop.f32.mrf.mxu0
    %v2733 = vadd.f32 %v2380, %v2732
    %2734 = vmatprep.mubr.bf16.mxu0 %v1822
    %2735 = vmatmul.mubr.bf16.gmra.mxu0 %v1821
    %v2736 = vpop.f32.mrf.mxu0
    %v2737 = vadd.f32 %v2384, %v2736
    %v2738 = vpop.f32.mrf.mxu0
    %v2739 = vadd.f32 %v2386, %v2738
    %v2740 = vpop.f32.mrf.mxu0
    %v2741 = vadd.f32 %v2388, %v2740
    %v2742 = vpop.f32.mrf.mxu0
    %v2743 = vadd.f32 %v2390, %v2742
    %2744 = vmatprep.mubr.bf16.mxu0 %v1826
    %2745 = vmatmul.mubr.bf16.gmra.mxu0 %v1825
    %v2746 = vpop.f32.mrf.mxu0
    %v2747 = vadd.f32 %v2394, %v2746
    %v2748 = vpop.f32.mrf.mxu0
    %v2749 = vadd.f32 %v2396, %v2748
    %v2750 = vpop.f32.mrf.mxu0
    %v2751 = vadd.f32 %v2398, %v2750
    %v2752 = vpop.f32.mrf.mxu0
    %v2753 = vadd.f32 %v2400, %v2752
    %2754 = vmatprep.mubr.bf16.mxu0 %v1830
    %2755 = vmatmul.mubr.bf16.gmra.mxu0 %v1829
    %v2756 = vpop.f32.mrf.mxu0
    %v2757 = vadd.f32 %v2404, %v2756
    %v2758 = vpop.f32.mrf.mxu0
    %v2759 = vadd.f32 %v2406, %v2758
    %v2760 = vpop.f32.mrf.mxu0
    %v2761 = vadd.f32 %v2408, %v2760
    %v2762 = vpop.f32.mrf.mxu0
    %v2763 = vadd.f32 %v2410, %v2762
    %2764 = vmatprep.mubr.bf16.mxu0 %v1834
    %2765 = vmatmul.mubr.bf16.gmra.mxu0 %v1833
    %v2766 = vpop.f32.mrf.mxu0
    %v2767 = vadd.f32 %v2414, %v2766
    %v2768 = vpop.f32.mrf.mxu0
    %v2769 = vadd.f32 %v2416, %v2768
    %v2770 = vpop.f32.mrf.mxu0
    %v2771 = vadd.f32 %v2418, %v2770
    %v2772 = vpop.f32.mrf.mxu0
    %v2773 = vadd.f32 %v2420, %v2772
    %2774 = vmatprep.mubr.bf16.mxu0 %v1838
    %2775 = vmatmul.mubr.bf16.gmra.mxu0 %v1837
    %v2776 = vpop.f32.mrf.mxu0
    %v2777 = vadd.f32 %v2424, %v2776
    %v2778 = vpop.f32.mrf.mxu0
    %v2779 = vadd.f32 %v2426, %v2778
    %v2780 = vpop.f32.mrf.mxu0
    %v2781 = vadd.f32 %v2428, %v2780
    %v2782 = vpop.f32.mrf.mxu0
    %v2783 = vadd.f32 %v2430, %v2782
    %2784 = vmatprep.mubr.bf16.mxu0 %v1842
    %2785 = vmatmul.mubr.bf16.gmra.mxu0 %v1841
    %v2786 = vpop.f32.mrf.mxu0
    %v2787 = vadd.f32 %v2434, %v2786
    %v2788 = vpop.f32.mrf.mxu0
    %v2789 = vadd.f32 %v2436, %v2788
    %v2790 = vpop.f32.mrf.mxu0
    %v2791 = vadd.f32 %v2438, %v2790
    %v2792 = vpop.f32.mrf.mxu0
    %v2793 = vadd.f32 %v2440, %v2792
    %2794 = vmatprep.mubr.bf16.mxu0 %v1846
    %2795 = vmatmul.mubr.bf16.gmra.mxu0 %v1845
    %v2796 = vpop.f32.mrf.mxu0
    %v2797 = vadd.f32 %v2444, %v2796
    %v2798 = vpop.f32.mrf.mxu0
    %v2799 = vadd.f32 %v2446, %v2798
    %v2800 = vpop.f32.mrf.mxu0
    %v2801 = vadd.f32 %v2448, %v2800
    %v2802 = vpop.f32.mrf.mxu0
    %v2803 = vadd.f32 %v2450, %v2802
    %2804 = vmatprep.mubr.bf16.mxu0 %v1850
    %2805 = vmatmul.mubr.bf16.gmra.mxu0 %v1849
    %v2806 = vpop.f32.mrf.mxu0
    %v2807 = vadd.f32 %v2454, %v2806
    %v2808 = vpop.f32.mrf.mxu0
    %v2809 = vadd.f32 %v2456, %v2808
    %v2810 = vpop.f32.mrf.mxu0
    %v2811 = vadd.f32 %v2458, %v2810
    %v2812 = vpop.f32.mrf.mxu0
    %v2813 = vadd.f32 %v2460, %v2812
    %2814 = vmatprep.mubr.bf16.mxu0 %v1854
    %2815 = vmatmul.mubr.bf16.gmra.mxu0 %v1853
    %v2816 = vpop.f32.mrf.mxu0
    %v2817 = vadd.f32 %v2464, %v2816
    %v2818 = vpop.f32.mrf.mxu0
    %v2819 = vadd.f32 %v2466, %v2818
    %v2820 = vpop.f32.mrf.mxu0
    %v2821 = vadd.f32 %v2468, %v2820
    %v2822 = vpop.f32.mrf.mxu0
    %v2823 = vadd.f32 %v2470, %v2822
    %2824 = vmatprep.mubr.bf16.mxu0 %v1858
    %2825 = vmatmul.mubr.bf16.gmra.mxu0 %v1857
    %v2826 = vpop.f32.mrf.mxu0
    %v2827 = vadd.f32 %v2474, %v2826
    %v2828 = vpop.f32.mrf.mxu0
    %v2829 = vadd.f32 %v2476, %v2828
    %v2830 = vpop.f32.mrf.mxu0
    %v2831 = vadd.f32 %v2478, %v2830
    %v2832 = vpop.f32.mrf.mxu0
    %v2833 = vadd.f32 %v2480, %v2832
    %2834 = vmatprep.mubr.bf16.mxu0 %v1862
    %2835 = vmatmul.mubr.bf16.gmra.mxu0 %v1861
    %v2836 = vpop.f32.mrf.mxu0
    %v2837 = vadd.f32 %v2484, %v2836
    %v2838 = vpop.f32.mrf.mxu0
    %v2839 = vadd.f32 %v2486, %v2838
    %v2840 = vpop.f32.mrf.mxu0
    %v2841 = vadd.f32 %v2488, %v2840
    %v2842 = vpop.f32.mrf.mxu0
    %v2843 = vadd.f32 %v2490, %v2842
    %2844 = vmatprep.mubr.bf16.mxu0 %v1866
    %2845 = vmatmul.mubr.bf16.gmra.mxu0 %v1865
    %v2846 = vpop.f32.mrf.mxu0
    %v2847 = vadd.f32 %v2494, %v2846
    %v2848 = vpop.f32.mrf.mxu0
    %v2849 = vadd.f32 %v2496, %v2848
    %v2850 = vpop.f32.mrf.mxu0
    %v2851 = vadd.f32 %v2498, %v2850
    %v2852 = vpop.f32.mrf.mxu0
    %v2853 = vadd.f32 %v2500, %v2852
    %2854 = vmatprep.mubr.bf16.mxu0 %v1870
    %2855 = vmatmul.mubr.bf16.gmra.mxu0 %v1869
    %v2856 = vpop.f32.mrf.mxu0
    %v2857 = vadd.f32 %v2504, %v2856
    %v2858 = vpop.f32.mrf.mxu0
    %v2859 = vadd.f32 %v2506, %v2858
    %v2860 = vpop.f32.mrf.mxu0
    %v2861 = vadd.f32 %v2508, %v2860
    %v2862 = vpop.f32.mrf.mxu0
    %v2863 = vadd.f32 %v2510, %v2862
    %2864 = vmatprep.mubr.bf16.mxu0 %v1874
    %2865 = vmatmul.mubr.bf16.gmra.mxu0 %v1873
    %v2866 = vpop.f32.mrf.mxu0
    %v2867 = vadd.f32 %v2514, %v2866
    %v2868 = vpop.f32.mrf.mxu0
    %v2869 = vadd.f32 %v2516, %v2868
    %v2870 = vpop.f32.mrf.mxu0
    %v2871 = vadd.f32 %v2518, %v2870
    %v2872 = vpop.f32.mrf.mxu0
    %v2873 = vadd.f32 %v2520, %v2872
    %2874 = vmatprep.mubr.bf16.mxu0 %v1878
    %2875 = vmatmul.mubr.bf16.gmra.mxu0 %v1877
    %v2876 = vpop.f32.mrf.mxu0
    %v2877 = vadd.f32 %v2524, %v2876
    %v2878 = vpop.f32.mrf.mxu0
    %v2879 = vadd.f32 %v2526, %v2878
    %v2880 = vpop.f32.mrf.mxu0
    %v2881 = vadd.f32 %v2528, %v2880
    %v2882 = vpop.f32.mrf.mxu0
    %v2883 = vadd.f32 %v2530, %v2882
    %2884 = vmatprep.mubr.bf16.mxu0 %v1882
    %2885 = vmatmul.mubr.bf16.gmra.mxu0 %v1881
    %v2886 = vpop.f32.mrf.mxu0
    %v2887 = vadd.f32 %v2534, %v2886
    %v2888 = vpop.f32.mrf.mxu0
    %v2889 = vadd.f32 %v2536, %v2888
    %v2890 = vpop.f32.mrf.mxu0
    %v2891 = vadd.f32 %v2538, %v2890
    %v2892 = vpop.f32.mrf.mxu0
    %v2893 = vadd.f32 %v2540, %v2892
    %2894 = vmatprep.mubr.bf16.mxu0 %v1886
    %2895 = vmatmul.mubr.bf16.gmra.mxu0 %v1885
    %v2896 = vpop.f32.mrf.mxu0
    %v2897 = vadd.f32 %v2544, %v2896
    %v2898 = vpop.f32.mrf.mxu0
    %v2899 = vadd.f32 %v2546, %v2898
    %v2900 = vpop.f32.mrf.mxu0
    %v2901 = vadd.f32 %v2548, %v2900
    %v2902 = vpop.f32.mrf.mxu0
    %v2903 = vadd.f32 %v2550, %v2902
    %2904 = vmatprep.mubr.bf16.mxu0 %v1890
    %2905 = vmatmul.mubr.bf16.gmra.mxu0 %v1889
    %v2906 = vpop.f32.mrf.mxu0
    %v2907 = vadd.f32 %v2554, %v2906
    %v2908 = vpop.f32.mrf.mxu0
    %v2909 = vadd.f32 %v2556, %v2908
    %v2910 = vpop.f32.mrf.mxu0
    %v2911 = vadd.f32 %v2558, %v2910
    %v2912 = vpop.f32.mrf.mxu0
    %v2913 = vadd.f32 %v2560, %v2912
    %2914 = vmatprep.mubr.bf16.mxu0 %v1894
    %2915 = vmatmul.mubr.bf16.gmra.mxu0 %v1893
    %v2916 = vpop.f32.mrf.mxu0
    %v2917 = vadd.f32 %v2564, %v2916
    %v2918 = vpop.f32.mrf.mxu0
    %v2919 = vadd.f32 %v2566, %v2918
    %v2920 = vpop.f32.mrf.mxu0
    %v2921 = vadd.f32 %v2568, %v2920
    %v2922 = vpop.f32.mrf.mxu0
    %v2923 = vadd.f32 %v2570, %v2922
    %2924 = vmatprep.mubr.bf16.mxu0 %v1898
    %2925 = vmatmul.mubr.bf16.gmra.mxu0 %v1897
    %v2926 = vpop.f32.mrf.mxu0
    %v2927 = vadd.f32 %v2574, %v2926
    %v2928 = vpop.f32.mrf.mxu0
    %v2929 = vadd.f32 %v2576, %v2928
    %v2930 = vpop.f32.mrf.mxu0
    %v2931 = vadd.f32 %v2578, %v2930
    %v2932 = vpop.f32.mrf.mxu0
    %v2933 = vadd.f32 %v2580, %v2932
    %2934 = vmatprep.mubr.bf16.mxu0 %v1902
    %2935 = vmatmul.mubr.bf16.gmra.mxu0 %v1901
    %v2936 = vpop.f32.mrf.mxu0
    %v2937 = vadd.f32 %v2584, %v2936
    %v2938 = vpop.f32.mrf.mxu0
    %v2939 = vadd.f32 %v2586, %v2938
    %v2940 = vpop.f32.mrf.mxu0
    %v2941 = vadd.f32 %v2588, %v2940
    %v2942 = vpop.f32.mrf.mxu0
    %v2943 = vadd.f32 %v2590, %v2942
    %2944 = vmatprep.mubr.bf16.mxu0 %v1906
    %2945 = vmatmul.mubr.bf16.gmra.mxu0 %v1905
    %v2946 = vpop.f32.mrf.mxu0
    %v2947 = vadd.f32 %v2594, %v2946
    %v2948 = vpop.f32.mrf.mxu0
    %v2949 = vadd.f32 %v2596, %v2948
    %v2950 = vpop.f32.mrf.mxu0
    %v2951 = vadd.f32 %v2598, %v2950
    %v2952 = vpop.f32.mrf.mxu0
    %v2953 = vadd.f32 %v2600, %v2952
    %2954 = vmatprep.mubr.bf16.mxu0 %v1910
    %2955 = vmatmul.mubr.bf16.gmra.mxu0 %v1909
    %v2956 = vpop.f32.mrf.mxu0
    %v2957 = vadd.f32 %v2604, %v2956
    %v2958 = vpop.f32.mrf.mxu0
    %v2959 = vadd.f32 %v2606, %v2958
    %v2960 = vpop.f32.mrf.mxu0
    %v2961 = vadd.f32 %v2608, %v2960
    %v2962 = vpop.f32.mrf.mxu0
    %v2963 = vadd.f32 %v2610, %v2962
    %2964 = vmatprep.mubr.bf16.mxu0 %v1914
    %2965 = vmatmul.mubr.bf16.gmra.mxu0 %v1913
    %v2966 = vpop.f32.mrf.mxu0
    %v2967 = vadd.f32 %v2614, %v2966
    %v2968 = vpop.f32.mrf.mxu0
    %v2969 = vadd.f32 %v2616, %v2968
    %v2970 = vpop.f32.mrf.mxu0
    %v2971 = vadd.f32 %v2618, %v2970
    %v2972 = vpop.f32.mrf.mxu0
    %v2973 = vadd.f32 %v2620, %v2972
    %2974 = vmatprep.mubr.bf16.mxu0 %v1918
    %2975 = vmatmul.mubr.bf16.gmra.mxu0 %v1917
    %v2976 = vpop.f32.mrf.mxu0
    %v2977 = vadd.f32 %v2624, %v2976
    %v2978 = vpop.f32.mrf.mxu0
    %v2979 = vadd.f32 %v2626, %v2978
    %v2980 = vpop.f32.mrf.mxu0
    %v2981 = vadd.f32 %v2628, %v2980
    %v2982 = vpop.f32.mrf.mxu0
    %v2983 = vadd.f32 %v2630, %v2982
    %2984 = vmatprep.mubr.bf16.mxu0 %v1922
    %2985 = vmatmul.mubr.bf16.gmra.mxu0 %v1921
    %v2986 = vpop.f32.mrf.mxu0
    %v2987 = vadd.f32 %v2634, %v2986
    %v2988 = vpop.f32.mrf.mxu0
    %v2989 = vadd.f32 %v2636, %v2988
    %v2990 = vpop.f32.mrf.mxu0
    %v2991 = vadd.f32 %v2638, %v2990
    %v2992 = vpop.f32.mrf.mxu0
    %v2993 = vadd.f32 %v2640, %v2992
    %2994 = vmatprep.mubr.bf16.mxu0 %v1926
    %2995 = vmatmul.mubr.bf16.gmra.mxu0 %v1925
    %v2996 = vpop.f32.mrf.mxu0
    %v2997 = vadd.f32 %v2644, %v2996
    %v2998 = vpop.f32.mrf.mxu0
    %v2999 = vadd.f32 %v2646, %v2998
    %v3000 = vpop.f32.mrf.mxu0
    %v3001 = vadd.f32 %v2648, %v3000
    %v3002 = vpop.f32.mrf.mxu0
    %v3003 = vadd.f32 %v2650, %v3002
    %3004 = vmatprep.mubr.bf16.mxu0 %v1930
    %3005 = vmatmul.mubr.bf16.gmra.mxu0 %v1929
    %v3006 = vpop.f32.mrf.mxu0
    %v3007 = vadd.f32 %v2654, %v3006
    %v3008 = vpop.f32.mrf.mxu0
    %v3009 = vadd.f32 %v2656, %v3008
    %v3010 = vpop.f32.mrf.mxu0
    %v3011 = vadd.f32 %v2658, %v3010
    %v3012 = vpop.f32.mrf.mxu0
    %v3013 = vadd.f32 %v2660, %v3012
    %3014 = vmatprep.mubr.bf16.mxu0 %v1934
    %3015 = vmatmul.mubr.bf16.gmra.mxu0 %v1933
    %v3016 = vpop.f32.mrf.mxu0
    %v3017 = vadd.f32 %v2664, %v3016
    %v3018 = vpop.f32.mrf.mxu0
    %v3019 = vadd.f32 %v2666, %v3018
    %v3020 = vpop.f32.mrf.mxu0
    %v3021 = vadd.f32 %v2668, %v3020
    %v3022 = vpop.f32.mrf.mxu0
    %v3023 = vadd.f32 %v2670, %v3022
    %3024 = vmatprep.mubr.bf16.mxu0 %v1938
    %3025 = vmatmul.mubr.bf16.gmra.mxu0 %v1937
    %v3026 = vpop.f32.mrf.mxu0
    %v3027 = vadd.f32 %v2674, %v3026
    %v3028 = vpop.f32.mrf.mxu0
    %v3029 = vadd.f32 %v2676, %v3028
    %v3030 = vpop.f32.mrf.mxu0
    %v3031 = vadd.f32 %v2678, %v3030
    %v3032 = vpop.f32.mrf.mxu0
    %v3033 = vadd.f32 %v2680, %v3032
    %3034 = vmatprep.mubr.bf16.mxu0 %v1942
    %3035 = vmatmul.mubr.bf16.gmra.mxu0 %v1941
    %v3036 = vpop.f32.mrf.mxu0
    %v3037 = vadd.f32 %v2684, %v3036
    %v3038 = vpop.f32.mrf.mxu0
    %v3039 = vadd.f32 %v2686, %v3038
    %v3040 = vpop.f32.mrf.mxu0
    %v3041 = vadd.f32 %v2688, %v3040
    %v3042 = vpop.f32.mrf.mxu0
    %v3043 = vadd.f32 %v2690, %v3042
    %3044 = vdwg.mxu0
    %vm3045 = vcmp.gt.f32.partialorder %v2727, 0.0
    %vm3046 = vcmp.gt.f32.partialorder %v2729, 0.0
    %vm3047 = vcmp.gt.f32.partialorder %v2731, 0.0
    %vm3048 = vcmp.gt.f32.partialorder %v2733, 0.0
    %vm3049 = vcmp.gt.f32.partialorder %v2737, 0.0
    %vm3050 = vcmp.gt.f32.partialorder %v2739, 0.0
    %vm3051 = vcmp.gt.f32.partialorder %v2741, 0.0
    %vm3052 = vcmp.gt.f32.partialorder %v2743, 0.0
    %vm3053 = vcmp.gt.f32.partialorder %v2747, 0.0
    %vm3054 = vcmp.gt.f32.partialorder %v2749, 0.0
    %vm3055 = vcmp.gt.f32.partialorder %v2751, 0.0
    %vm3056 = vcmp.gt.f32.partialorder %v2753, 0.0
    %vm3057 = vcmp.gt.f32.partialorder %v2757, 0.0
    %vm3058 = vcmp.gt.f32.partialorder %v2759, 0.0
    %vm3059 = vcmp.gt.f32.partialorder %v2761, 0.0
    %vm3060 = vcmp.gt.f32.partialorder %v2763, 0.0
    %vm3061 = vcmp.gt.f32.partialorder %v2767, 0.0
    %vm3062 = vcmp.gt.f32.partialorder %v2769, 0.0
    %vm3063 = vcmp.gt.f32.partialorder %v2771, 0.0
    %vm3064 = vcmp.gt.f32.partialorder %v2773, 0.0
    %vm3065 = vcmp.gt.f32.partialorder %v2777, 0.0
    %vm3066 = vcmp.gt.f32.partialorder %v2779, 0.0
    %vm3067 = vcmp.gt.f32.partialorder %v2781, 0.0
    %vm3068 = vcmp.gt.f32.partialorder %v2783, 0.0
    %vm3069 = vcmp.gt.f32.partialorder %v2787, 0.0
    %vm3070 = vcmp.gt.f32.partialorder %v2789, 0.0
    %vm3071 = vcmp.gt.f32.partialorder %v2791, 0.0
    %vm3072 = vcmp.gt.f32.partialorder %v2793, 0.0
    %vm3073 = vcmp.gt.f32.partialorder %v2797, 0.0
    %vm3074 = vcmp.gt.f32.partialorder %v2799, 0.0
    %vm3075 = vcmp.gt.f32.partialorder %v2801, 0.0
    %vm3076 = vcmp.gt.f32.partialorder %v2803, 0.0
    %vm3077 = vcmp.gt.f32.partialorder %v2807, 0.0
    %vm3078 = vcmp.gt.f32.partialorder %v2809, 0.0
    %vm3079 = vcmp.gt.f32.partialorder %v2811, 0.0
    %vm3080 = vcmp.gt.f32.partialorder %v2813, 0.0
    %vm3081 = vcmp.gt.f32.partialorder %v2817, 0.0
    %vm3082 = vcmp.gt.f32.partialorder %v2819, 0.0
    %vm3083 = vcmp.gt.f32.partialorder %v2821, 0.0
    %vm3084 = vcmp.gt.f32.partialorder %v2823, 0.0
    %vm3085 = vcmp.gt.f32.partialorder %v2827, 0.0
    %vm3086 = vcmp.gt.f32.partialorder %v2829, 0.0
    %vm3087 = vcmp.gt.f32.partialorder %v2831, 0.0
    %vm3088 = vcmp.gt.f32.partialorder %v2833, 0.0
    %vm3089 = vcmp.gt.f32.partialorder %v2837, 0.0
    %vm3090 = vcmp.gt.f32.partialorder %v2839, 0.0
    %vm3091 = vcmp.gt.f32.partialorder %v2841, 0.0
    %vm3092 = vcmp.gt.f32.partialorder %v2843, 0.0
    %vm3093 = vcmp.gt.f32.partialorder %v2847, 0.0
    %vm3094 = vcmp.gt.f32.partialorder %v2849, 0.0
    %vm3095 = vcmp.gt.f32.partialorder %v2851, 0.0
    %vm3096 = vcmp.gt.f32.partialorder %v2853, 0.0
    %vm3097 = vcmp.gt.f32.partialorder %v2857, 0.0
    %vm3098 = vcmp.gt.f32.partialorder %v2859, 0.0
    %vm3099 = vcmp.gt.f32.partialorder %v2861, 0.0
    %vm3100 = vcmp.gt.f32.partialorder %v2863, 0.0
    %vm3101 = vcmp.gt.f32.partialorder %v2867, 0.0
    %vm3102 = vcmp.gt.f32.partialorder %v2869, 0.0
    %vm3103 = vcmp.gt.f32.partialorder %v2871, 0.0
    %vm3104 = vcmp.gt.f32.partialorder %v2873, 0.0
    %vm3105 = vcmp.gt.f32.partialorder %v2877, 0.0
    %vm3106 = vcmp.gt.f32.partialorder %v2879, 0.0
    %vm3107 = vcmp.gt.f32.partialorder %v2881, 0.0
    %vm3108 = vcmp.gt.f32.partialorder %v2883, 0.0
    %vm3109 = vcmp.gt.f32.partialorder %v2887, 0.0
    %vm3110 = vcmp.gt.f32.partialorder %v2889, 0.0
    %vm3111 = vcmp.gt.f32.partialorder %v2891, 0.0
    %vm3112 = vcmp.gt.f32.partialorder %v2893, 0.0
    %vm3113 = vcmp.gt.f32.partialorder %v2897, 0.0
    %vm3114 = vcmp.gt.f32.partialorder %v2899, 0.0
    %vm3115 = vcmp.gt.f32.partialorder %v2901, 0.0
    %vm3116 = vcmp.gt.f32.partialorder %v2903, 0.0
    %vm3117 = vcmp.gt.f32.partialorder %v2907, 0.0
    %vm3118 = vcmp.gt.f32.partialorder %v2909, 0.0
    %vm3119 = vcmp.gt.f32.partialorder %v2911, 0.0
    %vm3120 = vcmp.gt.f32.partialorder %v2913, 0.0
    %vm3121 = vcmp.gt.f32.partialorder %v2917, 0.0
    %vm3122 = vcmp.gt.f32.partialorder %v2919, 0.0
    %vm3123 = vcmp.gt.f32.partialorder %v2921, 0.0
    %vm3124 = vcmp.gt.f32.partialorder %v2923, 0.0
    %vm3125 = vcmp.gt.f32.partialorder %v2927, 0.0
    %vm3126 = vcmp.gt.f32.partialorder %v2929, 0.0
    %vm3127 = vcmp.gt.f32.partialorder %v2931, 0.0
    %vm3128 = vcmp.gt.f32.partialorder %v2933, 0.0
    %vm3129 = vcmp.gt.f32.partialorder %v2937, 0.0
    %vm3130 = vcmp.gt.f32.partialorder %v2939, 0.0
    %vm3131 = vcmp.gt.f32.partialorder %v2941, 0.0
    %vm3132 = vcmp.gt.f32.partialorder %v2943, 0.0
    %vm3133 = vcmp.gt.f32.partialorder %v2947, 0.0
    %vm3134 = vcmp.gt.f32.partialorder %v2949, 0.0
    %vm3135 = vcmp.gt.f32.partialorder %v2951, 0.0
    %vm3136 = vcmp.gt.f32.partialorder %v2953, 0.0
    %vm3137 = vcmp.gt.f32.partialorder %v2957, 0.0
    %vm3138 = vcmp.gt.f32.partialorder %v2959, 0.0
    %vm3139 = vcmp.gt.f32.partialorder %v2961, 0.0
    %vm3140 = vcmp.gt.f32.partialorder %v2963, 0.0
    %vm3141 = vcmp.gt.f32.partialorder %v2967, 0.0
    %vm3142 = vcmp.gt.f32.partialorder %v2969, 0.0
    %vm3143 = vcmp.gt.f32.partialorder %v2971, 0.0
    %vm3144 = vcmp.gt.f32.partialorder %v2973, 0.0
    %vm3145 = vcmp.gt.f32.partialorder %v2977, 0.0
    %vm3146 = vcmp.gt.f32.partialorder %v2979, 0.0
    %vm3147 = vcmp.gt.f32.partialorder %v2981, 0.0
    %vm3148 = vcmp.gt.f32.partialorder %v2983, 0.0
    %vm3149 = vcmp.gt.f32.partialorder %v2987, 0.0
    %vm3150 = vcmp.gt.f32.partialorder %v2989, 0.0
    %vm3151 = vcmp.gt.f32.partialorder %v2991, 0.0
    %vm3152 = vcmp.gt.f32.partialorder %v2993, 0.0
    %vm3153 = vcmp.gt.f32.partialorder %v2997, 0.0
    %vm3154 = vcmp.gt.f32.partialorder %v2999, 0.0
    %vm3155 = vcmp.gt.f32.partialorder %v3001, 0.0
    %vm3156 = vcmp.gt.f32.partialorder %v3003, 0.0
    %vm3157 = vcmp.gt.f32.partialorder %v3007, 0.0
    %vm3158 = vcmp.gt.f32.partialorder %v3009, 0.0
    %vm3159 = vcmp.gt.f32.partialorder %v3011, 0.0
    %vm3160 = vcmp.gt.f32.partialorder %v3013, 0.0
    %vm3161 = vcmp.gt.f32.partialorder %v3017, 0.0
    %vm3162 = vcmp.gt.f32.partialorder %v3019, 0.0
    %vm3163 = vcmp.gt.f32.partialorder %v3021, 0.0
    %vm3164 = vcmp.gt.f32.partialorder %v3023, 0.0
    %vm3165 = vcmp.gt.f32.partialorder %v3027, 0.0
    %vm3166 = vcmp.gt.f32.partialorder %v3029, 0.0
    %vm3167 = vcmp.gt.f32.partialorder %v3031, 0.0
    %vm3168 = vcmp.gt.f32.partialorder %v3033, 0.0
    %vm3169 = vcmp.gt.f32.partialorder %v3037, 0.0
    %vm3170 = vcmp.gt.f32.partialorder %v3039, 0.0
    %vm3171 = vcmp.gt.f32.partialorder %v3041, 0.0
    %vm3172 = vcmp.gt.f32.partialorder %v3043, 0.0
    %v3173 = vmul.f32 %v2727, 0.2
    %v3174 = vmul.f32 %v2729, 0.2
    %v3175 = vmul.f32 %v2731, 0.2
    %v3176 = vmul.f32 %v2733, 0.2
    %v3177 = vmul.f32 %v2737, 0.2
    %v3178 = vmul.f32 %v2739, 0.2
    %v3179 = vmul.f32 %v2741, 0.2
    %v3180 = vmul.f32 %v2743, 0.2
    %v3181 = vmul.f32 %v2747, 0.2
    %v3182 = vmul.f32 %v2749, 0.2
    %v3183 = vmul.f32 %v2751, 0.2
    %v3184 = vmul.f32 %v2753, 0.2
    %v3185 = vmul.f32 %v2757, 0.2
    %v3186 = vmul.f32 %v2759, 0.2
    %v3187 = vmul.f32 %v2761, 0.2
    %v3188 = vmul.f32 %v2763, 0.2
    %v3189 = vmul.f32 %v2767, 0.2
    %v3190 = vmul.f32 %v2769, 0.2
    %v3191 = vmul.f32 %v2771, 0.2
    %v3192 = vmul.f32 %v2773, 0.2
    %v3193 = vmul.f32 %v2777, 0.2
    %v3194 = vmul.f32 %v2779, 0.2
    %v3195 = vmul.f32 %v2781, 0.2
    %v3196 = vmul.f32 %v2783, 0.2
    %v3197 = vmul.f32 %v2787, 0.2
    %v3198 = vmul.f32 %v2789, 0.2
    %v3199 = vmul.f32 %v2791, 0.2
    %v3200 = vmul.f32 %v2793, 0.2
    %v3201 = vmul.f32 %v2797, 0.2
    %v3202 = vmul.f32 %v2799, 0.2
    %v3203 = vmul.f32 %v2801, 0.2
    %v3204 = vmul.f32 %v2803, 0.2
    %v3205 = vmul.f32 %v2807, 0.2
    %v3206 = vmul.f32 %v2809, 0.2
    %v3207 = vmul.f32 %v2811, 0.2
    %v3208 = vmul.f32 %v2813, 0.2
    %v3209 = vmul.f32 %v2817, 0.2
    %v3210 = vmul.f32 %v2819, 0.2
    %v3211 = vmul.f32 %v2821, 0.2
    %v3212 = vmul.f32 %v2823, 0.2
    %v3213 = vmul.f32 %v2827, 0.2
    %v3214 = vmul.f32 %v2829, 0.2
    %v3215 = vmul.f32 %v2831, 0.2
    %v3216 = vmul.f32 %v2833, 0.2
    %v3217 = vmul.f32 %v2837, 0.2
    %v3218 = vmul.f32 %v2839, 0.2
    %v3219 = vmul.f32 %v2841, 0.2
    %v3220 = vmul.f32 %v2843, 0.2
    %v3221 = vmul.f32 %v2847, 0.2
    %v3222 = vmul.f32 %v2849, 0.2
    %v3223 = vmul.f32 %v2851, 0.2
    %v3224 = vmul.f32 %v2853, 0.2
    %v3225 = vmul.f32 %v2857, 0.2
    %v3226 = vmul.f32 %v2859, 0.2
    %v3227 = vmul.f32 %v2861, 0.2
    %v3228 = vmul.f32 %v2863, 0.2
    %v3229 = vmul.f32 %v2867, 0.2
    %v3230 = vmul.f32 %v2869, 0.2
    %v3231 = vmul.f32 %v2871, 0.2
    %v3232 = vmul.f32 %v2873, 0.2
    %v3233 = vmul.f32 %v2877, 0.2
    %v3234 = vmul.f32 %v2879, 0.2
    %v3235 = vmul.f32 %v2881, 0.2
    %v3236 = vmul.f32 %v2883, 0.2
    %v3237 = vmul.f32 %v2887, 0.2
    %v3238 = vmul.f32 %v2889, 0.2
    %v3239 = vmul.f32 %v2891, 0.2
    %v3240 = vmul.f32 %v2893, 0.2
    %v3241 = vmul.f32 %v2897, 0.2
    %v3242 = vmul.f32 %v2899, 0.2
    %v3243 = vmul.f32 %v2901, 0.2
    %v3244 = vmul.f32 %v2903, 0.2
    %v3245 = vmul.f32 %v2907, 0.2
    %v3246 = vmul.f32 %v2909, 0.2
    %v3247 = vmul.f32 %v2911, 0.2
    %v3248 = vmul.f32 %v2913, 0.2
    %v3249 = vmul.f32 %v2917, 0.2
    %v3250 = vmul.f32 %v2919, 0.2
    %v3251 = vmul.f32 %v2921, 0.2
    %v3252 = vmul.f32 %v2923, 0.2
    %v3253 = vmul.f32 %v2927, 0.2
    %v3254 = vmul.f32 %v2929, 0.2
    %v3255 = vmul.f32 %v2931, 0.2
    %v3256 = vmul.f32 %v2933, 0.2
    %v3257 = vmul.f32 %v2937, 0.2
    %v3258 = vmul.f32 %v2939, 0.2
    %v3259 = vmul.f32 %v2941, 0.2
    %v3260 = vmul.f32 %v2943, 0.2
    %v3261 = vmul.f32 %v2947, 0.2
    %v3262 = vmul.f32 %v2949, 0.2
    %v3263 = vmul.f32 %v2951, 0.2
    %v3264 = vmul.f32 %v2953, 0.2
    %v3265 = vmul.f32 %v2957, 0.2
    %v3266 = vmul.f32 %v2959, 0.2
    %v3267 = vmul.f32 %v2961, 0.2
    %v3268 = vmul.f32 %v2963, 0.2
    %v3269 = vmul.f32 %v2967, 0.2
    %v3270 = vmul.f32 %v2969, 0.2
    %v3271 = vmul.f32 %v2971, 0.2
    %v3272 = vmul.f32 %v2973, 0.2
    %v3273 = vmul.f32 %v2977, 0.2
    %v3274 = vmul.f32 %v2979, 0.2
    %v3275 = vmul.f32 %v2981, 0.2
    %v3276 = vmul.f32 %v2983, 0.2
    %v3277 = vmul.f32 %v2987, 0.2
    %v3278 = vmul.f32 %v2989, 0.2
    %v3279 = vmul.f32 %v2991, 0.2
    %v3280 = vmul.f32 %v2993, 0.2
    %v3281 = vmul.f32 %v2997, 0.2
    %v3282 = vmul.f32 %v2999, 0.2
    %v3283 = vmul.f32 %v3001, 0.2
    %v3284 = vmul.f32 %v3003, 0.2
    %v3285 = vmul.f32 %v3007, 0.2
    %v3286 = vmul.f32 %v3009, 0.2
    %v3287 = vmul.f32 %v3011, 0.2
    %v3288 = vmul.f32 %v3013, 0.2
    %v3289 = vmul.f32 %v3017, 0.2
    %v3290 = vmul.f32 %v3019, 0.2
    %v3291 = vmul.f32 %v3021, 0.2
    %v3292 = vmul.f32 %v3023, 0.2
    %v3293 = vmul.f32 %v3027, 0.2
    %v3294 = vmul.f32 %v3029, 0.2
    %v3295 = vmul.f32 %v3031, 0.2
    %v3296 = vmul.f32 %v3033, 0.2
    %v3297 = vmul.f32 %v3037, 0.2
    %v3298 = vmul.f32 %v3039, 0.2
    %v3299 = vmul.f32 %v3041, 0.2
    %v3300 = vmul.f32 %v3043, 0.2
    %v3301 = vsel %vm3045, %v2727, %v3173
    %v3302 = vsel %vm3046, %v2729, %v3174
    %v3303 = vsel %vm3047, %v2731, %v3175
    %v3304 = vsel %vm3048, %v2733, %v3176
    %v3305 = vsel %vm3049, %v2737, %v3177
    %v3306 = vsel %vm3050, %v2739, %v3178
    %v3307 = vsel %vm3051, %v2741, %v3179
    %v3308 = vsel %vm3052, %v2743, %v3180
    %v3309 = vsel %vm3053, %v2747, %v3181
    %v3310 = vsel %vm3054, %v2749, %v3182
    %v3311 = vsel %vm3055, %v2751, %v3183
    %v3312 = vsel %vm3056, %v2753, %v3184
    %v3313 = vsel %vm3057, %v2757, %v3185
    %v3314 = vsel %vm3058, %v2759, %v3186
    %v3315 = vsel %vm3059, %v2761, %v3187
    %v3316 = vsel %vm3060, %v2763, %v3188
    %v3317 = vsel %vm3061, %v2767, %v3189
    %v3318 = vsel %vm3062, %v2769, %v3190
    %v3319 = vsel %vm3063, %v2771, %v3191
    %v3320 = vsel %vm3064, %v2773, %v3192
    %v3321 = vsel %vm3065, %v2777, %v3193
    %v3322 = vsel %vm3066, %v2779, %v3194
    %v3323 = vsel %vm3067, %v2781, %v3195
    %v3324 = vsel %vm3068, %v2783, %v3196
    %v3325 = vsel %vm3069, %v2787, %v3197
    %v3326 = vsel %vm3070, %v2789, %v3198
    %v3327 = vsel %vm3071, %v2791, %v3199
    %v3328 = vsel %vm3072, %v2793, %v3200
    %v3329 = vsel %vm3073, %v2797, %v3201
    %v3330 = vsel %vm3074, %v2799, %v3202
    %v3331 = vsel %vm3075, %v2801, %v3203
    %v3332 = vsel %vm3076, %v2803, %v3204
    %v3333 = vsel %vm3077, %v2807, %v3205
    %v3334 = vsel %vm3078, %v2809, %v3206
    %v3335 = vsel %vm3079, %v2811, %v3207
    %v3336 = vsel %vm3080, %v2813, %v3208
    %v3337 = vsel %vm3081, %v2817, %v3209
    %v3338 = vsel %vm3082, %v2819, %v3210
    %v3339 = vsel %vm3083, %v2821, %v3211
    %v3340 = vsel %vm3084, %v2823, %v3212
    %v3341 = vsel %vm3085, %v2827, %v3213
    %v3342 = vsel %vm3086, %v2829, %v3214
    %v3343 = vsel %vm3087, %v2831, %v3215
    %v3344 = vsel %vm3088, %v2833, %v3216
    %v3345 = vsel %vm3089, %v2837, %v3217
    %v3346 = vsel %vm3090, %v2839, %v3218
    %v3347 = vsel %vm3091, %v2841, %v3219
    %v3348 = vsel %vm3092, %v2843, %v3220
    %v3349 = vsel %vm3093, %v2847, %v3221
    %v3350 = vsel %vm3094, %v2849, %v3222
    %v3351 = vsel %vm3095, %v2851, %v3223
    %v3352 = vsel %vm3096, %v2853, %v3224
    %v3353 = vsel %vm3097, %v2857, %v3225
    %v3354 = vsel %vm3098, %v2859, %v3226
    %v3355 = vsel %vm3099, %v2861, %v3227
    %v3356 = vsel %vm3100, %v2863, %v3228
    %v3357 = vsel %vm3101, %v2867, %v3229
    %v3358 = vsel %vm3102, %v2869, %v3230
    %v3359 = vsel %vm3103, %v2871, %v3231
    %v3360 = vsel %vm3104, %v2873, %v3232
    %v3361 = vsel %vm3105, %v2877, %v3233
    %v3362 = vsel %vm3106, %v2879, %v3234
    %v3363 = vsel %vm3107, %v2881, %v3235
    %v3364 = vsel %vm3108, %v2883, %v3236
    %v3365 = vsel %vm3109, %v2887, %v3237
    %v3366 = vsel %vm3110, %v2889, %v3238
    %v3367 = vsel %vm3111, %v2891, %v3239
    %v3368 = vsel %vm3112, %v2893, %v3240
    %v3369 = vsel %vm3113, %v2897, %v3241
    %v3370 = vsel %vm3114, %v2899, %v3242
    %v3371 = vsel %vm3115, %v2901, %v3243
    %v3372 = vsel %vm3116, %v2903, %v3244
    %v3373 = vsel %vm3117, %v2907, %v3245
    %v3374 = vsel %vm3118, %v2909, %v3246
    %v3375 = vsel %vm3119, %v2911, %v3247
    %v3376 = vsel %vm3120, %v2913, %v3248
    %v3377 = vsel %vm3121, %v2917, %v3249
    %v3378 = vsel %vm3122, %v2919, %v3250
    %v3379 = vsel %vm3123, %v2921, %v3251
    %v3380 = vsel %vm3124, %v2923, %v3252
    %v3381 = vsel %vm3125, %v2927, %v3253
    %v3382 = vsel %vm3126, %v2929, %v3254
    %v3383 = vsel %vm3127, %v2931, %v3255
    %v3384 = vsel %vm3128, %v2933, %v3256
    %v3385 = vsel %vm3129, %v2937, %v3257
    %v3386 = vsel %vm3130, %v2939, %v3258
    %v3387 = vsel %vm3131, %v2941, %v3259
    %v3388 = vsel %vm3132, %v2943, %v3260
    %v3389 = vsel %vm3133, %v2947, %v3261
    %v3390 = vsel %vm3134, %v2949, %v3262
    %v3391 = vsel %vm3135, %v2951, %v3263
    %v3392 = vsel %vm3136, %v2953, %v3264
    %v3393 = vsel %vm3137, %v2957, %v3265
    %v3394 = vsel %vm3138, %v2959, %v3266
    %v3395 = vsel %vm3139, %v2961, %v3267
    %v3396 = vsel %vm3140, %v2963, %v3268
    %v3397 = vsel %vm3141, %v2967, %v3269
    %v3398 = vsel %vm3142, %v2969, %v3270
    %v3399 = vsel %vm3143, %v2971, %v3271
    %v3400 = vsel %vm3144, %v2973, %v3272
    %v3401 = vsel %vm3145, %v2977, %v3273
    %v3402 = vsel %vm3146, %v2979, %v3274
    %v3403 = vsel %vm3147, %v2981, %v3275
    %v3404 = vsel %vm3148, %v2983, %v3276
    %v3405 = vsel %vm3149, %v2987, %v3277
    %v3406 = vsel %vm3150, %v2989, %v3278
    %v3407 = vsel %vm3151, %v2991, %v3279
    %v3408 = vsel %vm3152, %v2993, %v3280
    %v3409 = vsel %vm3153, %v2997, %v3281
    %v3410 = vsel %vm3154, %v2999, %v3282
    %v3411 = vsel %vm3155, %v3001, %v3283
    %v3412 = vsel %vm3156, %v3003, %v3284
    %v3413 = vsel %vm3157, %v3007, %v3285
    %v3414 = vsel %vm3158, %v3009, %v3286
    %v3415 = vsel %vm3159, %v3011, %v3287
    %v3416 = vsel %vm3160, %v3013, %v3288
    %v3417 = vsel %vm3161, %v3017, %v3289
    %v3418 = vsel %vm3162, %v3019, %v3290
    %v3419 = vsel %vm3163, %v3021, %v3291
    %v3420 = vsel %vm3164, %v3023, %v3292
    %v3421 = vsel %vm3165, %v3027, %v3293
    %v3422 = vsel %vm3166, %v3029, %v3294
    %v3423 = vsel %vm3167, %v3031, %v3295
    %v3424 = vsel %vm3168, %v3033, %v3296
    %v3425 = vsel %vm3169, %v3037, %v3297
    %v3426 = vsel %vm3170, %v3039, %v3298
    %v3427 = vsel %vm3171, %v3041, %v3299
    %v3428 = vsel %vm3172, %v3043, %v3300
    %v3429 = vld [vmem:[%s5] sm:$0x3]
    %v3430 = vld [vmem:[#allocation2] sm:$0x1]
    %3432 = vset.pattern.permute.xlu0 0
    %3433 = vperm.xlu0 %3432, %v3430
    %v3434 = vpop.permute.xlu0 %3433
    %v3436 = vlaneseq
    %v3437 = vshrl.u32 %v3436, 7
    %v3438 = vsub.s32 0, %v3437
    %v3439 = vrot.slane %v3434, %v3438
    %v3441 = vlaneseq
    %v3442 = vshrl.u32 %v3441, 7
    %v3443 = vsub.s32 0, %v3442
    %v3444 = vrot.slane %v3429, %v3443
    %v3445 = vlaneseq
    %v3446 = vshrl.u32 %v3445, 7
    %v3447 = vsub.s32 1, %v3446
    %v3448 = vrot.slane %v3429, %v3447
    %3451 = vmatprep.subr.mxu0 %v3332
    %3452 = vmatpush1.xpose.msra.mxu0 %v3331
    %3453 = vmatprep.subr.mxu0 %v3330
    %3454 = vmatpush1.xpose.msra.mxu0 %v3329
    %3455 = vmatprep.subr.mxu0 %v3328
    %3456 = vmatpush1.xpose.msra.mxu0 %v3327
    %3457 = vmatprep.subr.mxu0 %v3326
    %3458 = vmatpush1.xpose.msra.mxu0 %v3325
    %3459 = vmatprep.subr.mxu0 %v3324
    %3460 = vmatpush1.xpose.msra.mxu0 %v3323
    %3461 = vmatprep.subr.mxu0 %v3322
    %3462 = vmatpush1.xpose.msra.mxu0 %v3321
    %3463 = vmatprep.subr.mxu0 %v3320
    %3464 = vmatpush1.xpose.msra.mxu0 %v3319
    %3465 = vmatprep.subr.mxu0 %v3318
    %3466 = vmatpush1.xpose.msra.mxu0 %v3317
    %3467 = vmatprep.subr.mxu0 %v3316
    %3468 = vmatpush1.xpose.msra.mxu0 %v3315
    %3469 = vmatprep.subr.mxu0 %v3314
    %3470 = vmatpush1.xpose.msra.mxu0 %v3313
    %3471 = vmatprep.subr.mxu0 %v3312
    %3472 = vmatpush1.xpose.msra.mxu0 %v3311
    %3473 = vmatprep.subr.mxu0 %v3310
    %3474 = vmatpush1.xpose.msra.mxu0 %v3309
    %3475 = vmatprep.subr.mxu0 %v3308
    %3476 = vmatpush1.xpose.msra.mxu0 %v3307
    %3477 = vmatprep.subr.mxu0 %v3306
    %3478 = vmatpush1.xpose.msra.mxu0 %v3305
    %3479 = vmatprep.subr.mxu0 %v3304
    %3480 = vmatpush1.xpose.msra.mxu0 %v3303
    %3481 = vmatprep.subr.mxu0 %v3302
    %3482 = vmatpush1.xpose.msra.mxu0 %v3301
    %3483 = vmatprep.subr.mxu0 %v3364
    %3484 = vmatpush2.xpose.msra.mxu0 %v3363
    %3485 = vmatprep.subr.mxu0 %v3362
    %3486 = vmatpush2.xpose.msra.mxu0 %v3361
    %3487 = vmatprep.subr.mxu0 %v3360
    %3488 = vmatpush2.xpose.msra.mxu0 %v3359
    %3489 = vmatprep.subr.mxu0 %v3358
    %3490 = vmatpush2.xpose.msra.mxu0 %v3357
    %3491 = vmatprep.subr.mxu0 %v3356
    %3492 = vmatpush2.xpose.msra.mxu0 %v3355
    %3493 = vmatprep.subr.mxu0 %v3354
    %3494 = vmatpush2.xpose.msra.mxu0 %v3353
    %3495 = vmatprep.subr.mxu0 %v3352
    %3496 = vmatpush2.xpose.msra.mxu0 %v3351
    %3497 = vmatprep.subr.mxu0 %v3350
    %3498 = vmatpush2.xpose.msra.mxu0 %v3349
    %3499 = vmatprep.subr.mxu0 %v3348
    %3500 = vmatpush2.xpose.msra.mxu0 %v3347
    %3501 = vmatprep.subr.mxu0 %v3346
    %3502 = vmatpush2.xpose.msra.mxu0 %v3345
    %3503 = vmatprep.subr.mxu0 %v3344
    %3504 = vmatpush2.xpose.msra.mxu0 %v3343
    %3505 = vmatprep.subr.mxu0 %v3342
    %3506 = vmatpush2.xpose.msra.mxu0 %v3341
    %3507 = vmatprep.subr.mxu0 %v3340
    %3508 = vmatpush2.xpose.msra.mxu0 %v3339
    %3509 = vmatprep.subr.mxu0 %v3338
    %3510 = vmatpush2.xpose.msra.mxu0 %v3337
    %3511 = vmatprep.subr.mxu0 %v3336
    %3512 = vmatpush2.xpose.msra.mxu0 %v3335
    %3513 = vmatprep.subr.mxu0 %v3334
    %3514 = vmatpush2.xpose.msra.mxu0 %v3333
    %3515 = vmatprep.mubr.f32.mxu0 %v3448
    %3516 = vmatmul.mubr.f32.gmra.mxu0 %v3444
    %v3517 = vpop.f32.mrf.mxu0
    %v3518 = vadd.f32 %v3439, %v3517
    %v3519 = vpop.f32.mrf.mxu0
    %v3520 = vadd.f32 %v3439, %v3519
    %3521 = vdwg.mxu0
    %3522 = vmatprep.subr.mxu0 %v3396
    %3523 = vmatpush1.xpose.msra.mxu0 %v3395
    %3524 = vmatprep.subr.mxu0 %v3394
    %3525 = vmatpush1.xpose.msra.mxu0 %v3393
    %3526 = vmatprep.subr.mxu0 %v3392
    %3527 = vmatpush1.xpose.msra.mxu0 %v3391
    %3528 = vmatprep.subr.mxu0 %v3390
    %3529 = vmatpush1.xpose.msra.mxu0 %v3389
    %3530 = vmatprep.subr.mxu0 %v3388
    %3531 = vmatpush1.xpose.msra.mxu0 %v3387
    %3532 = vmatprep.subr.mxu0 %v3386
    %3533 = vmatpush1.xpose.msra.mxu0 %v3385
    %3534 = vmatprep.subr.mxu0 %v3384
    %3535 = vmatpush1.xpose.msra.mxu0 %v3383
    %3536 = vmatprep.subr.mxu0 %v3382
    %3537 = vmatpush1.xpose.msra.mxu0 %v3381
    %3538 = vmatprep.subr.mxu0 %v3380
    %3539 = vmatpush1.xpose.msra.mxu0 %v3379
    %3540 = vmatprep.subr.mxu0 %v3378
    %3541 = vmatpush1.xpose.msra.mxu0 %v3377
    %3542 = vmatprep.subr.mxu0 %v3376
    %3543 = vmatpush1.xpose.msra.mxu0 %v3375
    %3544 = vmatprep.subr.mxu0 %v3374
    %3545 = vmatpush1.xpose.msra.mxu0 %v3373
    %3546 = vmatprep.subr.mxu0 %v3372
    %3547 = vmatpush1.xpose.msra.mxu0 %v3371
    %3548 = vmatprep.subr.mxu0 %v3370
    %3549 = vmatpush1.xpose.msra.mxu0 %v3369
    %3550 = vmatprep.subr.mxu0 %v3368
    %3551 = vmatpush1.xpose.msra.mxu0 %v3367
    %3552 = vmatprep.subr.mxu0 %v3366
    %3553 = vmatpush1.xpose.msra.mxu0 %v3365
    %3554 = vmatprep.subr.mxu0 %v3428
    %3555 = vmatpush2.xpose.msra.mxu0 %v3427
    %3556 = vmatprep.subr.mxu0 %v3426
    %3557 = vmatpush2.xpose.msra.mxu0 %v3425
    %3558 = vmatprep.subr.mxu0 %v3424
    %3559 = vmatpush2.xpose.msra.mxu0 %v3423
    %3560 = vmatprep.subr.mxu0 %v3422
    %3561 = vmatpush2.xpose.msra.mxu0 %v3421
    %3562 = vmatprep.subr.mxu0 %v3420
    %3563 = vmatpush2.xpose.msra.mxu0 %v3419
    %3564 = vmatprep.subr.mxu0 %v3418
    %3565 = vmatpush2.xpose.msra.mxu0 %v3417
    %3566 = vmatprep.subr.mxu0 %v3416
    %3567 = vmatpush2.xpose.msra.mxu0 %v3415
    %3568 = vmatprep.subr.mxu0 %v3414
    %3569 = vmatpush2.xpose.msra.mxu0 %v3413
    %3570 = vmatprep.subr.mxu0 %v3412
    %3571 = vmatpush2.xpose.msra.mxu0 %v3411
    %3572 = vmatprep.subr.mxu0 %v3410
    %3573 = vmatpush2.xpose.msra.mxu0 %v3409
    %3574 = vmatprep.subr.mxu0 %v3408
    %3575 = vmatpush2.xpose.msra.mxu0 %v3407
    %3576 = vmatprep.subr.mxu0 %v3406
    %3577 = vmatpush2.xpose.msra.mxu0 %v3405
    %3578 = vmatprep.subr.mxu0 %v3404
    %3579 = vmatpush2.xpose.msra.mxu0 %v3403
    %3580 = vmatprep.subr.mxu0 %v3402
    %3581 = vmatpush2.xpose.msra.mxu0 %v3401
    %3582 = vmatprep.subr.mxu0 %v3400
    %3583 = vmatpush2.xpose.msra.mxu0 %v3399
    %3584 = vmatprep.subr.mxu0 %v3398
    %3585 = vmatpush2.xpose.msra.mxu0 %v3397
    %3586 = vmatprep.mubr.f32.mxu0 %v3448
    %3587 = vmatmul.mubr.f32.gmra.mxu0 %v3444
    %v3588 = vpop.f32.mrf.mxu0
    %v3589 = vadd.f32 %v3439, %v3588
    %v3590 = vpop.f32.mrf.mxu0
    %v3591 = vadd.f32 %v3439, %v3590
    %3592 = vdwg.mxu0
    %v3593 = vsub.f32 0.0, %v3518
    %v3594 = vsub.f32 0.0, %v3520
    %v3595 = vsub.f32 0.0, %v3589
    %v3596 = vsub.f32 0.0, %v3591
    %v3597 = vmul.f32 %v3593, 1.442695
    %v3598 = vpow.pop %v3597
    %v3599 = vmul.f32 %v3594, 1.442695
    %v3600 = vpow.pop %v3599
    %v3601 = vmul.f32 %v3595, 1.442695
    %v3602 = vpow.pop %v3601
    %v3603 = vmul.f32 %v3596, 1.442695
    %v3604 = vpow.pop %v3603
    %v3605 = vadd.f32 %v3598, 1.0
    %v3606 = vadd.f32 %v3600, 1.0
    %v3607 = vadd.f32 %v3602, 1.0
    %v3608 = vadd.f32 %v3604, 1.0
    %v3609 = vrcp.pop %v3605
    %v3610 = vmul.f32 1.0, %v3609
    %v3611 = vrcp.pop %v3606
    %v3612 = vmul.f32 1.0, %v3611
    %v3613 = vrcp.pop %v3607
    %v3614 = vmul.f32 1.0, %v3613
    %v3615 = vrcp.pop %v3608
    %v3616 = vmul.f32 1.0, %v3615
    %v3621 = vcombine.low %v3610, %v3612
    %v3622 = vcombine.low %v3614, %v3616
    %v3624 = vunpack.c.l.s4 1966171168
    %v3625 = vunpack.c.0.s8 %v3624
    %v3626 = vlaneseq
    %v3627 = vshrl.u32 %v3626, 7
    %v3628 = vsub.s32 %v3625, %v3627
    %v3629 = vrot.slane %v3621, %v3628
    %v3631 = vunpack.c.l.s4 1966171168
    %v3632 = vunpack.c.0.s8 %v3631
    %v3633 = vlaneseq
    %v3634 = vshrl.u32 %v3633, 7
    %v3635 = vsub.s32 %v3632, %v3634
    %v3636 = vrot.slane %v3622, %v3635
    %v3637 = vcombine.low %v3629, %v3636
    %v3639 = vunpack.c.l.s4 1966171168
    %v3640 = vunpack.c.0.s8 %v3639
    %v3641 = vlaneseq
    %v3642 = vshrl.u32 %v3641, 7
    %v3643 = vsub.s32 %v3640, %v3642
    %v3644 = vrot.slane %v3637, %v3643
    %v3646 = vlaneseq
    %vm3647 = vcmp.ge.s32.totalorder %v3646, 0
    %vm3648 = vcmp.lt.s32.totalorder %v3646, 512
    %vm3649 = vmand %vm3647, %vm3648
    %3650 = vst.msk [vmem:[#allocation3] sm:$0xf] %vm3649, %v3644
    // Predicated region
    $region30: #{tpu_custom_call.1} parent=1 // pred_check
      _
    $region31: #{tpu_custom_call.1} parent=1 // pred_check_branch
      %3652 = sbr.rel (0) target = $region33
    $region32: #{tpu_custom_call.1} parent=1 // pred_region
      %s3654 = ssub.s32 64, 64
      %3655 = vsyncadd [#allocation4], %s3654
      %s3657 = sshll.u32 [#allocation3], 4
      %s3658 = int_to_ptr.vmem [resolvable:$true] %s3657
      %3660 = dma.vmem_to_hbm [thread:$0]  %s3658, 64, %s7, [#allocation4]
    $region33: #{tpu_custom_call.1} parent=1 // pred_fallthru
      _
    // Predicated region
    $region34: #{tpu_custom_call.1} parent=1 // pred_check
      _
    $region35: #{tpu_custom_call.1} parent=1 // pred_check_branch
      %3662 = sbr.rel (0) target = $region37
    $region36: #{tpu_custom_call.1} parent=1 // pred_region
      %3663 = dma.done [#allocation4], 64
    $region37: #{tpu_custom_call.1} parent=1 // pred_fallthru
      _
    %3664 = vsyncpa [#allocation4], 1

</llo_original>
